<compile_context>
chip_gen: v7x
topology: tpu7x:2x2x1
jax: 0.10.0
libtpu: 0.0.40
codegen_flags: <defaults>
</compile_context>

<pallas_src>
import numpy as np

import jax
import jax.numpy as jnp
from jax.experimental import pallas as pl
from jax.experimental.pallas import tpu as pltpu


# ----------------------------------------------------------------------------
# Fused forward kernel (one batch tile per grid step)
# ----------------------------------------------------------------------------
def _lenet_fused_kernel(x_ref, t1e_ref, t1o_ref, b1_ref,
                        t2e_ref, t2o_ref, b2_ref,
                        w3_ref, b3_ref, w4_ref, b4_ref, o_ref):
    f32, bf16 = jnp.float32, jnp.bfloat16
    TB = x_ref.shape[0]

    x = x_ref[...]                                        # (TB, 28, 28) f32

    # ---- conv1 (1->16, 5x5) + ReLU + 2x2 max-pool (implicit GEMM) ----------
    # acc_[eo][n*24+y, xw*16+c] = conv1 output at (y, 2*xw[+1]) before bias.
    acc_e = jnp.zeros((TB * 24, 12 * 16), f32)
    acc_o = jnp.zeros((TB * 24, 12 * 16), f32)
    for i in range(5):                                    # kernel row offset
        xi = x[:, i:i + 24, :].reshape(TB * 24, 28).astype(bf16)
        acc_e = acc_e + jnp.dot(xi, t1e_ref[i], preferred_element_type=f32)
        acc_o = acc_o + jnp.dot(xi, t1o_ref[i], preferred_element_type=f32)
    # pool over W (even/odd columns), add bias, ReLU (all commute with max)
    h1 = jnp.maximum(jnp.maximum(acc_e, acc_o) + b1_ref[...], 0.0)
    # pool over H: pairwise max of adjacent rows
    h1 = h1.reshape(TB, 12, 2, 12 * 16)
    p1 = jnp.maximum(h1[:, :, 0, :], h1[:, :, 1, :])      # (TB, 12, 192) = NHWC fused

    # ---- conv2 (16->36, 5x5) + ReLU + 2x2 max-pool (implicit GEMM) ---------
    acc_e = jnp.zeros((TB * 8, 4 * 36), f32)
    acc_o = jnp.zeros((TB * 8, 4 * 36), f32)
    for i in range(5):
        pi = p1[:, i:i + 8, :].reshape(TB * 8, 12 * 16).astype(bf16)
        acc_e = acc_e + jnp.dot(pi, t2e_ref[i], preferred_element_type=f32)
        acc_o = acc_o + jnp.dot(pi, t2o_ref[i], preferred_element_type=f32)
    h2 = jnp.maximum(jnp.maximum(acc_e, acc_o) + b2_ref[...], 0.0)
    h2 = h2.reshape(TB, 4, 2, 4 * 36)
    p2 = jnp.maximum(h2[:, :, 0, :], h2[:, :, 1, :])      # (TB, 4, 144)

    # ---- fc1 (576->128) + ReLU, as 4 partial matmuls over the pooled rows --
    z = jnp.zeros((TB, 128), f32)
    for h in range(4):
        z = z + jnp.dot(p2[:, h, :].astype(bf16), w3_ref[h],
                        preferred_element_type=f32)
    z = jnp.maximum(z + b3_ref[...], 0.0).astype(bf16)    # (TB, 128)

    # ---- fc2 (128->10, zero-padded to 128 lanes for an unmasked store) -----
    out = jnp.dot(z, w4_ref[...], preferred_element_type=f32) + b4_ref[...]
    o_ref[...] = out.astype(o_ref.dtype)


# ----------------------------------------------------------------------------
# One-time weight preparation (banded conv matrices, permuted/padded FCs)
# ----------------------------------------------------------------------------
def _banded_conv_weights(w, in_width, parity):
    """w: (Cout, Cin, KH, KW) torch layout.  Returns (KH, in_width*Cin,
    (Wo//2)*Cout) banded matrices T so that, with rows indexed [win*Cin+cin]
    and cols [xw*Cout+cout], (row-slab @ T[i]) is the contribution of kernel
    row i to output columns xo = 2*xw + parity."""
    Cout, Cin, KH, KW = w.shape
    Wo = in_width - KW + 1
    Wh = Wo // 2
    T = np.zeros((KH, in_width * Cin, Wh * Cout), np.float32)
    for i in range(KH):
        for xw in range(Wh):
            xo = 2 * xw + parity
            for j in range(KW):
                xin = xo + j
                T[i, xin * Cin:(xin + 1) * Cin,
                  xw * Cout:(xw + 1) * Cout] = w[:, :, i, j].T
    return T


def init_params(key):
    ks = jax.random.split(key, 8)
    p = {}
    p["conv1_w"] = 0.05 * jax.random.normal(ks[0], (16, 1, 5, 5), jnp.float32)
    p["conv1_b"] = 0.01 * jax.random.normal(ks[1], (16,), jnp.float32)
    p["conv2_w"] = 0.05 * jax.random.normal(ks[2], (36, 16, 5, 5), jnp.float32)
    p["conv2_b"] = 0.01 * jax.random.normal(ks[3], (36,), jnp.float32)
    p["fc1_w"] = 0.05 * jax.random.normal(ks[4], (128, 576), jnp.float32)  # torch (out,in)
    p["fc1_b"] = 0.01 * jax.random.normal(ks[5], (128,), jnp.float32)
    p["fc2_w"] = 0.05 * jax.random.normal(ks[6], (10, 128), jnp.float32)
    p["fc2_b"] = 0.01 * jax.random.normal(ks[7], (10,), jnp.float32)
    return p


def prepare_params(p):
    """Pre-lay-out all weights once (outside the jitted forward)."""
    w1 = np.asarray(p["conv1_w"], np.float32)
    b1 = np.asarray(p["conv1_b"], np.float32)
    w2 = np.asarray(p["conv2_w"], np.float32)
    b2 = np.asarray(p["conv2_b"], np.float32)
    fw1 = np.asarray(p["fc1_w"], np.float32)
    fb1 = np.asarray(p["fc1_b"], np.float32)
    fw2 = np.asarray(p["fc2_w"], np.float32)
    fb2 = np.asarray(p["fc2_b"], np.float32)

    # fc1 weight permuted to the kernel's [h, w*36+c] activation layout
    # (PyTorch flatten order of (N,36,4,4) is c*16 + h*4 + w).
    w3 = fw1.reshape(128, 36, 4, 4).transpose(2, 3, 1, 0).reshape(4, 4 * 36, 128)
    # fc2 padded to 128 output lanes.
    w4 = np.zeros((128, 128), np.float32)
    w4[:, :10] = fw2.T
    b4 = np.zeros((1, 128), np.float32)
    b4[0, :10] = fb2

    bf16 = jnp.bfloat16
    return {
        "t1e": jnp.asarray(_banded_conv_weights(w1, 28, 0), bf16),  # (5, 28, 192)
        "t1o": jnp.asarray(_banded_conv_weights(w1, 28, 1), bf16),
        "b1": jnp.asarray(np.tile(b1, 12)[None, :], jnp.float32),   # (1, 192)
        "t2e": jnp.asarray(_banded_conv_weights(w2, 12, 0), bf16),  # (5, 192, 144)
        "t2o": jnp.asarray(_banded_conv_weights(w2, 12, 1), bf16),
        "b2": jnp.asarray(np.tile(b2, 4)[None, :], jnp.float32),    # (1, 144)
        "w3": jnp.asarray(w3, bf16),                                # (4, 144, 128)
        "b3": jnp.asarray(fb1[None, :], jnp.float32),               # (1, 128)
        "w4": jnp.asarray(w4, bf16),                                # (128, 128)
        "b4": jnp.asarray(b4, jnp.float32),                         # (1, 128)
    }


_WEIGHT_ORDER = ("t1e", "t1o", "b1", "t2e", "t2o", "b2", "w3", "b3", "w4", "b4")


def _const_spec(arr):
    zeros = (0,) * arr.ndim
    return pl.BlockSpec(arr.shape, lambda b: zeros)     # fetched once, stays resident


# ----------------------------------------------------------------------------
# Forward pass (single fused pallas_call, gridded over batch tiles)
# ----------------------------------------------------------------------------
@jax.jit
def net_forward(prep, x):
    # x: (N, 1, 28, 28) NCHW float32 (28x28 is forced by Linear(576)).
    N = x.shape[0]
    x2 = x.astype(jnp.float32).reshape(N, 28, 28)
    tb = N if N < 8 else 8                              # batch tile
    n_pad = ((N + tb - 1) // tb) * tb
    if n_pad != N:
        x2 = jnp.concatenate(
            [x2, jnp.zeros((n_pad - N, 28, 28), jnp.float32)], axis=0)

    weights = [prep[k] for k in _WEIGHT_ORDER]
    out = pl.pallas_call(
        _lenet_fused_kernel,
        out_shape=jax.ShapeDtypeStruct((n_pad, 128), jnp.float32),
        grid=(n_pad // tb,),
        in_specs=[pl.BlockSpec((tb, 28, 28), lambda b: (b, 0, 0))]
                 + [_const_spec(w) for w in weights],
        out_specs=pl.BlockSpec((tb, 128), lambda b: (b, 0)),
        compiler_params=pltpu.CompilerParams(
            dimension_semantics=("parallel",)),         # megacore on v7x
    )(x2, *weights)
    return out[:N, :10]


# ----------------------------------------------------------------------------
# Plain-JAX/XLA reference (for a sanity check only)
# ----------------------------------------------------------------------------
def reference_forward(p, x):
    def conv(h, w, b):
        out = jax.lax.conv_general_dilated(
            h, w, window_strides=(1, 1), padding="VALID",
            dimension_numbers=("NCHW", "OIHW", "NCHW"))
        return out + b[None, :, None, None]

    def pool(h):
        return jax.lax.reduce_window(
            h, -jnp.inf, jax.lax.max, (1, 1, 2, 2), (1, 1, 2, 2), "VALID")

    h = pool(jax.nn.relu(conv(x, p["conv1_w"], p["conv1_b"])))
    h = pool(jax.nn.relu(conv(h, p["conv2_w"], p["conv2_b"])))
    h = h.reshape(h.shape[0], -1)
    h = jax.nn.relu(h @ p["fc1_w"].T + p["fc1_b"])
    return h @ p["fc2_w"].T + p["fc2_b"]


if __name__ == "__main__":
    key = jax.random.PRNGKey(0)
    pkey, xkey = jax.random.split(key)
    params = init_params(pkey)
    prep = prepare_params(params)

    # Linear(576) after two 5x5 VALID convs + two 2x2 pools forces 28x28 input.
    x = jax.random.normal(xkey, (2, 1, 28, 28), jnp.float32)

    out = net_forward(prep, x)
    out = jax.block_until_ready(out)
    assert out.shape == (2, 10) and out.dtype == jnp.float32

    # Loose tolerance: kernel uses bf16 matmul operands (f32 accumulation).
    ref = reference_forward(params, x)
    err = float(jnp.max(jnp.abs(out - ref)))
    assert err < 5e-2, f"kernel/reference mismatch: max abs err = {err}"

    print("KERNEL_OK")
</pallas_src>

<mosaic_0001>
module attributes {stable_mosaic.version = 11 : i64} {
  func.func @_lenet_fused_kernel(%arg0: i32, %arg1: memref<2x28x28xf32, #tpu.memory_space<vmem>>, %arg2: memref<5x28x192xbf16, #tpu.memory_space<vmem>>, %arg3: memref<5x28x192xbf16, #tpu.memory_space<vmem>>, %arg4: memref<1x192xf32, #tpu.memory_space<vmem>>, %arg5: memref<5x192x144xbf16, #tpu.memory_space<vmem>>, %arg6: memref<5x192x144xbf16, #tpu.memory_space<vmem>>, %arg7: memref<1x144xf32, #tpu.memory_space<vmem>>, %arg8: memref<4x144x128xbf16, #tpu.memory_space<vmem>>, %arg9: memref<1x128xf32, #tpu.memory_space<vmem>>, %arg10: memref<128x128xbf16, #tpu.memory_space<vmem>>, %arg11: memref<1x128xf32, #tpu.memory_space<vmem>>, %arg12: memref<2x128xf32, #tpu.memory_space<vmem>>) attributes {dimension_semantics = [#tpu.dimension_semantics<parallel>], iteration_bounds = array<i64: 1>, scalar_prefetch = 0 : i64, scratch_operands = 0 : i64, tpu.core_type = #tpu.core_type<tc>, window_params = [{transform_indices = @transform_0, window_bounds = array<i64: 2, 28, 28>}, {pipeline_mode = #tpu.pipeline_mode<synchronous>, transform_indices = @transform_1, window_bounds = array<i64: 5, 28, 192>}, {pipeline_mode = #tpu.pipeline_mode<synchronous>, transform_indices = @transform_2, window_bounds = array<i64: 5, 28, 192>}, {pipeline_mode = #tpu.pipeline_mode<synchronous>, transform_indices = @transform_3, window_bounds = array<i64: 1, 192>}, {pipeline_mode = #tpu.pipeline_mode<synchronous>, transform_indices = @transform_4, window_bounds = array<i64: 5, 192, 144>}, {pipeline_mode = #tpu.pipeline_mode<synchronous>, transform_indices = @transform_5, window_bounds = array<i64: 5, 192, 144>}, {pipeline_mode = #tpu.pipeline_mode<synchronous>, transform_indices = @transform_6, window_bounds = array<i64: 1, 144>}, {pipeline_mode = #tpu.pipeline_mode<synchronous>, transform_indices = @transform_7, window_bounds = array<i64: 4, 144, 128>}, {pipeline_mode = #tpu.pipeline_mode<synchronous>, transform_indices = @transform_8, window_bounds = array<i64: 1, 128>}, {pipeline_mode = #tpu.pipeline_mode<synchronous>, transform_indices = @transform_9, window_bounds = array<i64: 128, 128>}, {pipeline_mode = #tpu.pipeline_mode<synchronous>, transform_indices = @transform_10, window_bounds = array<i64: 1, 128>}, {transform_indices = @transform_11, window_bounds = array<i64: 2, 128>}]} {
    %c0 = arith.constant 0 : index
    %c0_0 = arith.constant 0 : index
    %c0_1 = arith.constant 0 : index
    %0 = vector.load %arg1[%c0, %c0_0, %c0_1] : memref<2x28x28xf32, #tpu.memory_space<vmem>>, vector<2x28x28xf32>
    %cst = arith.constant 0.000000e+00 : f32
    %1 = vector.broadcast %cst : f32 to vector<48x192xf32>
    %cst_2 = arith.constant 0.000000e+00 : f32
    %2 = vector.broadcast %cst_2 : f32 to vector<48x192xf32>
    %3 = vector.extract_strided_slice %0 {offsets = [0, 0, 0], sizes = [2, 24, 28], strides = [1, 1, 1]} : vector<2x28x28xf32> to vector<2x24x28xf32>
    %4 = vector.shape_cast %3 : vector<2x24x28xf32> to vector<48x28xf32>
    %5 = arith.truncf %4 : vector<48x28xf32> to vector<48x28xbf16>
    %c0_3 = arith.constant 0 : index
    %c0_4 = arith.constant 0 : index
    %c0_5 = arith.constant 0 : index
    %6 = vector.load %arg2[%c0_3, %c0_4, %c0_5] : memref<5x28x192xbf16, #tpu.memory_space<vmem>>, vector<1x28x192xbf16>
    %7 = vector.shape_cast %6 : vector<1x28x192xbf16> to vector<28x192xbf16>
    %cst_6 = arith.constant dense<0.000000e+00> : vector<48x192xf32>
    %8 = tpu.matmul %5, %7, %cst_6 {dimension_numbers = #tpu.dot_dimension_numbers<[1], [0], [0], [1], [0, 0, 1, 1], [], []>} : vector<48x28xbf16>, vector<28x192xbf16>, vector<48x192xf32> -> vector<48x192xf32>
    %9 = arith.addf %1, %8 : vector<48x192xf32>
    %c0_7 = arith.constant 0 : index
    %c0_8 = arith.constant 0 : index
    %c0_9 = arith.constant 0 : index
    %10 = vector.load %arg3[%c0_7, %c0_8, %c0_9] : memref<5x28x192xbf16, #tpu.memory_space<vmem>>, vector<1x28x192xbf16>
    %11 = vector.shape_cast %10 : vector<1x28x192xbf16> to vector<28x192xbf16>
    %cst_10 = arith.constant dense<0.000000e+00> : vector<48x192xf32>
    %12 = tpu.matmul %5, %11, %cst_10 {dimension_numbers = #tpu.dot_dimension_numbers<[1], [0], [0], [1], [0, 0, 1, 1], [], []>} : vector<48x28xbf16>, vector<28x192xbf16>, vector<48x192xf32> -> vector<48x192xf32>
    %13 = arith.addf %2, %12 : vector<48x192xf32>
    %14 = vector.extract_strided_slice %0 {offsets = [0, 1, 0], sizes = [2, 24, 28], strides = [1, 1, 1]} : vector<2x28x28xf32> to vector<2x24x28xf32>
    %15 = vector.shape_cast %14 : vector<2x24x28xf32> to vector<48x28xf32>
    %16 = arith.truncf %15 : vector<48x28xf32> to vector<48x28xbf16>
    %c1 = arith.constant 1 : index
    %c0_11 = arith.constant 0 : index
    %c0_12 = arith.constant 0 : index
    %17 = vector.load %arg2[%c1, %c0_11, %c0_12] : memref<5x28x192xbf16, #tpu.memory_space<vmem>>, vector<1x28x192xbf16>
    %18 = vector.shape_cast %17 : vector<1x28x192xbf16> to vector<28x192xbf16>
    %cst_13 = arith.constant dense<0.000000e+00> : vector<48x192xf32>
    %19 = tpu.matmul %16, %18, %cst_13 {dimension_numbers = #tpu.dot_dimension_numbers<[1], [0], [0], [1], [0, 0, 1, 1], [], []>} : vector<48x28xbf16>, vector<28x192xbf16>, vector<48x192xf32> -> vector<48x192xf32>
    %20 = arith.addf %9, %19 : vector<48x192xf32>
    %c1_14 = arith.constant 1 : index
    %c0_15 = arith.constant 0 : index
    %c0_16 = arith.constant 0 : index
    %21 = vector.load %arg3[%c1_14, %c0_15, %c0_16] : memref<5x28x192xbf16, #tpu.memory_space<vmem>>, vector<1x28x192xbf16>
    %22 = vector.shape_cast %21 : vector<1x28x192xbf16> to vector<28x192xbf16>
    %cst_17 = arith.constant dense<0.000000e+00> : vector<48x192xf32>
    %23 = tpu.matmul %16, %22, %cst_17 {dimension_numbers = #tpu.dot_dimension_numbers<[1], [0], [0], [1], [0, 0, 1, 1], [], []>} : vector<48x28xbf16>, vector<28x192xbf16>, vector<48x192xf32> -> vector<48x192xf32>
    %24 = arith.addf %13, %23 : vector<48x192xf32>
    %25 = vector.extract_strided_slice %0 {offsets = [0, 2, 0], sizes = [2, 24, 28], strides = [1, 1, 1]} : vector<2x28x28xf32> to vector<2x24x28xf32>
    %26 = vector.shape_cast %25 : vector<2x24x28xf32> to vector<48x28xf32>
    %27 = arith.truncf %26 : vector<48x28xf32> to vector<48x28xbf16>
    %c2 = arith.constant 2 : index
    %c0_18 = arith.constant 0 : index
    %c0_19 = arith.constant 0 : index
    %28 = vector.load %arg2[%c2, %c0_18, %c0_19] : memref<5x28x192xbf16, #tpu.memory_space<vmem>>, vector<1x28x192xbf16>
    %29 = vector.shape_cast %28 : vector<1x28x192xbf16> to vector<28x192xbf16>
    %cst_20 = arith.constant dense<0.000000e+00> : vector<48x192xf32>
    %30 = tpu.matmul %27, %29, %cst_20 {dimension_numbers = #tpu.dot_dimension_numbers<[1], [0], [0], [1], [0, 0, 1, 1], [], []>} : vector<48x28xbf16>, vector<28x192xbf16>, vector<48x192xf32> -> vector<48x192xf32>
    %31 = arith.addf %20, %30 : vector<48x192xf32>
    %c2_21 = arith.constant 2 : index
    %c0_22 = arith.constant 0 : index
    %c0_23 = arith.constant 0 : index
    %32 = vector.load %arg3[%c2_21, %c0_22, %c0_23] : memref<5x28x192xbf16, #tpu.memory_space<vmem>>, vector<1x28x192xbf16>
    %33 = vector.shape_cast %32 : vector<1x28x192xbf16> to vector<28x192xbf16>
    %cst_24 = arith.constant dense<0.000000e+00> : vector<48x192xf32>
    %34 = tpu.matmul %27, %33, %cst_24 {dimension_numbers = #tpu.dot_dimension_numbers<[1], [0], [0], [1], [0, 0, 1, 1], [], []>} : vector<48x28xbf16>, vector<28x192xbf16>, vector<48x192xf32> -> vector<48x192xf32>
    %35 = arith.addf %24, %34 : vector<48x192xf32>
    %36 = vector.extract_strided_slice %0 {offsets = [0, 3, 0], sizes = [2, 24, 28], strides = [1, 1, 1]} : vector<2x28x28xf32> to vector<2x24x28xf32>
    %37 = vector.shape_cast %36 : vector<2x24x28xf32> to vector<48x28xf32>
    %38 = arith.truncf %37 : vector<48x28xf32> to vector<48x28xbf16>
    %c3 = arith.constant 3 : index
    %c0_25 = arith.constant 0 : index
    %c0_26 = arith.constant 0 : index
    %39 = vector.load %arg2[%c3, %c0_25, %c0_26] : memref<5x28x192xbf16, #tpu.memory_space<vmem>>, vector<1x28x192xbf16>
    %40 = vector.shape_cast %39 : vector<1x28x192xbf16> to vector<28x192xbf16>
    %cst_27 = arith.constant dense<0.000000e+00> : vector<48x192xf32>
    %41 = tpu.matmul %38, %40, %cst_27 {dimension_numbers = #tpu.dot_dimension_numbers<[1], [0], [0], [1], [0, 0, 1, 1], [], []>} : vector<48x28xbf16>, vector<28x192xbf16>, vector<48x192xf32> -> vector<48x192xf32>
    %42 = arith.addf %31, %41 : vector<48x192xf32>
    %c3_28 = arith.constant 3 : index
    %c0_29 = arith.constant 0 : index
    %c0_30 = arith.constant 0 : index
    %43 = vector.load %arg3[%c3_28, %c0_29, %c0_30] : memref<5x28x192xbf16, #tpu.memory_space<vmem>>, vector<1x28x192xbf16>
    %44 = vector.shape_cast %43 : vector<1x28x192xbf16> to vector<28x192xbf16>
    %cst_31 = arith.constant dense<0.000000e+00> : vector<48x192xf32>
    %45 = tpu.matmul %38, %44, %cst_31 {dimension_numbers = #tpu.dot_dimension_numbers<[1], [0], [0], [1], [0, 0, 1, 1], [], []>} : vector<48x28xbf16>, vector<28x192xbf16>, vector<48x192xf32> -> vector<48x192xf32>
    %46 = arith.addf %35, %45 : vector<48x192xf32>
    %47 = vector.extract_strided_slice %0 {offsets = [0, 4, 0], sizes = [2, 24, 28], strides = [1, 1, 1]} : vector<2x28x28xf32> to vector<2x24x28xf32>
    %48 = vector.shape_cast %47 : vector<2x24x28xf32> to vector<48x28xf32>
    %49 = arith.truncf %48 : vector<48x28xf32> to vector<48x28xbf16>
    %c4 = arith.constant 4 : index
    %c0_32 = arith.constant 0 : index
    %c0_33 = arith.constant 0 : index
    %50 = vector.load %arg2[%c4, %c0_32, %c0_33] : memref<5x28x192xbf16, #tpu.memory_space<vmem>>, vector<1x28x192xbf16>
    %51 = vector.shape_cast %50 : vector<1x28x192xbf16> to vector<28x192xbf16>
    %cst_34 = arith.constant dense<0.000000e+00> : vector<48x192xf32>
    %52 = tpu.matmul %49, %51, %cst_34 {dimension_numbers = #tpu.dot_dimension_numbers<[1], [0], [0], [1], [0, 0, 1, 1], [], []>} : vector<48x28xbf16>, vector<28x192xbf16>, vector<48x192xf32> -> vector<48x192xf32>
    %53 = arith.addf %42, %52 : vector<48x192xf32>
    %c4_35 = arith.constant 4 : index
    %c0_36 = arith.constant 0 : index
    %c0_37 = arith.constant 0 : index
    %54 = vector.load %arg3[%c4_35, %c0_36, %c0_37] : memref<5x28x192xbf16, #tpu.memory_space<vmem>>, vector<1x28x192xbf16>
    %55 = vector.shape_cast %54 : vector<1x28x192xbf16> to vector<28x192xbf16>
    %cst_38 = arith.constant dense<0.000000e+00> : vector<48x192xf32>
    %56 = tpu.matmul %49, %55, %cst_38 {dimension_numbers = #tpu.dot_dimension_numbers<[1], [0], [0], [1], [0, 0, 1, 1], [], []>} : vector<48x28xbf16>, vector<28x192xbf16>, vector<48x192xf32> -> vector<48x192xf32>
    %57 = arith.addf %46, %56 : vector<48x192xf32>
    %58 = arith.maximumf %53, %57 : vector<48x192xf32>
    %c0_39 = arith.constant 0 : index
    %c0_40 = arith.constant 0 : index
    %59 = vector.load %arg4[%c0_39, %c0_40] : memref<1x192xf32, #tpu.memory_space<vmem>>, vector<1x192xf32>
    %60 = vector.broadcast %59 : vector<1x192xf32> to vector<48x192xf32>
    %61 = arith.addf %58, %60 : vector<48x192xf32>
    %cst_41 = arith.constant 0.000000e+00 : f32
    %62 = vector.broadcast %cst_41 : f32 to vector<48x192xf32>
    %63 = arith.maximumf %61, %62 : vector<48x192xf32>
    %64 = vector.shape_cast %63 : vector<48x192xf32> to vector<2x12x2x192xf32>
    %65 = vector.extract_strided_slice %64 {offsets = [0, 0, 0, 0], sizes = [2, 12, 1, 192], strides = [1, 1, 1, 1]} : vector<2x12x2x192xf32> to vector<2x12x1x192xf32>
    %66 = vector.shape_cast %65 : vector<2x12x1x192xf32> to vector<2x12x192xf32>
    %67 = vector.extract_strided_slice %64 {offsets = [0, 0, 1, 0], sizes = [2, 12, 1, 192], strides = [1, 1, 1, 1]} : vector<2x12x2x192xf32> to vector<2x12x1x192xf32>
    %68 = vector.shape_cast %67 : vector<2x12x1x192xf32> to vector<2x12x192xf32>
    %69 = arith.maximumf %66, %68 : vector<2x12x192xf32>
    %cst_42 = arith.constant 0.000000e+00 : f32
    %70 = vector.broadcast %cst_42 : f32 to vector<16x144xf32>
    %cst_43 = arith.constant 0.000000e+00 : f32
    %71 = vector.broadcast %cst_43 : f32 to vector<16x144xf32>
    %72 = vector.extract_strided_slice %69 {offsets = [0, 0, 0], sizes = [2, 8, 192], strides = [1, 1, 1]} : vector<2x12x192xf32> to vector<2x8x192xf32>
    %73 = vector.shape_cast %72 : vector<2x8x192xf32> to vector<16x192xf32>
    %74 = arith.truncf %73 : vector<16x192xf32> to vector<16x192xbf16>
    %c0_44 = arith.constant 0 : index
    %c0_45 = arith.constant 0 : index
    %c0_46 = arith.constant 0 : index
    %75 = vector.load %arg5[%c0_44, %c0_45, %c0_46] : memref<5x192x144xbf16, #tpu.memory_space<vmem>>, vector<1x192x144xbf16>
    %76 = vector.shape_cast %75 : vector<1x192x144xbf16> to vector<192x144xbf16>
    %cst_47 = arith.constant dense<0.000000e+00> : vector<16x144xf32>
    %77 = tpu.matmul %74, %76, %cst_47 {dimension_numbers = #tpu.dot_dimension_numbers<[1], [0], [0], [1], [0, 0, 1, 1], [], []>} : vector<16x192xbf16>, vector<192x144xbf16>, vector<16x144xf32> -> vector<16x144xf32>
    %78 = arith.addf %70, %77 : vector<16x144xf32>
    %c0_48 = arith.constant 0 : index
    %c0_49 = arith.constant 0 : index
    %c0_50 = arith.constant 0 : index
    %79 = vector.load %arg6[%c0_48, %c0_49, %c0_50] : memref<5x192x144xbf16, #tpu.memory_space<vmem>>, vector<1x192x144xbf16>
    %80 = vector.shape_cast %79 : vector<1x192x144xbf16> to vector<192x144xbf16>
    %cst_51 = arith.constant dense<0.000000e+00> : vector<16x144xf32>
    %81 = tpu.matmul %74, %80, %cst_51 {dimension_numbers = #tpu.dot_dimension_numbers<[1], [0], [0], [1], [0, 0, 1, 1], [], []>} : vector<16x192xbf16>, vector<192x144xbf16>, vector<16x144xf32> -> vector<16x144xf32>
    %82 = arith.addf %71, %81 : vector<16x144xf32>
    %83 = vector.extract_strided_slice %69 {offsets = [0, 1, 0], sizes = [2, 8, 192], strides = [1, 1, 1]} : vector<2x12x192xf32> to vector<2x8x192xf32>
    %84 = vector.shape_cast %83 : vector<2x8x192xf32> to vector<16x192xf32>
    %85 = arith.truncf %84 : vector<16x192xf32> to vector<16x192xbf16>
    %c1_52 = arith.constant 1 : index
    %c0_53 = arith.constant 0 : index
    %c0_54 = arith.constant 0 : index
    %86 = vector.load %arg5[%c1_52, %c0_53, %c0_54] : memref<5x192x144xbf16, #tpu.memory_space<vmem>>, vector<1x192x144xbf16>
    %87 = vector.shape_cast %86 : vector<1x192x144xbf16> to vector<192x144xbf16>
    %cst_55 = arith.constant dense<0.000000e+00> : vector<16x144xf32>
    %88 = tpu.matmul %85, %87, %cst_55 {dimension_numbers = #tpu.dot_dimension_numbers<[1], [0], [0], [1], [0, 0, 1, 1], [], []>} : vector<16x192xbf16>, vector<192x144xbf16>, vector<16x144xf32> -> vector<16x144xf32>
    %89 = arith.addf %78, %88 : vector<16x144xf32>
    %c1_56 = arith.constant 1 : index
    %c0_57 = arith.constant 0 : index
    %c0_58 = arith.constant 0 : index
    %90 = vector.load %arg6[%c1_56, %c0_57, %c0_58] : memref<5x192x144xbf16, #tpu.memory_space<vmem>>, vector<1x192x144xbf16>
    %91 = vector.shape_cast %90 : vector<1x192x144xbf16> to vector<192x144xbf16>
    %cst_59 = arith.constant dense<0.000000e+00> : vector<16x144xf32>
    %92 = tpu.matmul %85, %91, %cst_59 {dimension_numbers = #tpu.dot_dimension_numbers<[1], [0], [0], [1], [0, 0, 1, 1], [], []>} : vector<16x192xbf16>, vector<192x144xbf16>, vector<16x144xf32> -> vector<16x144xf32>
    %93 = arith.addf %82, %92 : vector<16x144xf32>
    %94 = vector.extract_strided_slice %69 {offsets = [0, 2, 0], sizes = [2, 8, 192], strides = [1, 1, 1]} : vector<2x12x192xf32> to vector<2x8x192xf32>
    %95 = vector.shape_cast %94 : vector<2x8x192xf32> to vector<16x192xf32>
    %96 = arith.truncf %95 : vector<16x192xf32> to vector<16x192xbf16>
    %c2_60 = arith.constant 2 : index
    %c0_61 = arith.constant 0 : index
    %c0_62 = arith.constant 0 : index
    %97 = vector.load %arg5[%c2_60, %c0_61, %c0_62] : memref<5x192x144xbf16, #tpu.memory_space<vmem>>, vector<1x192x144xbf16>
    %98 = vector.shape_cast %97 : vector<1x192x144xbf16> to vector<192x144xbf16>
    %cst_63 = arith.constant dense<0.000000e+00> : vector<16x144xf32>
    %99 = tpu.matmul %96, %98, %cst_63 {dimension_numbers = #tpu.dot_dimension_numbers<[1], [0], [0], [1], [0, 0, 1, 1], [], []>} : vector<16x192xbf16>, vector<192x144xbf16>, vector<16x144xf32> -> vector<16x144xf32>
    %100 = arith.addf %89, %99 : vector<16x144xf32>
    %c2_64 = arith.constant 2 : index
    %c0_65 = arith.constant 0 : index
    %c0_66 = arith.constant 0 : index
    %101 = vector.load %arg6[%c2_64, %c0_65, %c0_66] : memref<5x192x144xbf16, #tpu.memory_space<vmem>>, vector<1x192x144xbf16>
    %102 = vector.shape_cast %101 : vector<1x192x144xbf16> to vector<192x144xbf16>
    %cst_67 = arith.constant dense<0.000000e+00> : vector<16x144xf32>
    %103 = tpu.matmul %96, %102, %cst_67 {dimension_numbers = #tpu.dot_dimension_numbers<[1], [0], [0], [1], [0, 0, 1, 1], [], []>} : vector<16x192xbf16>, vector<192x144xbf16>, vector<16x144xf32> -> vector<16x144xf32>
    %104 = arith.addf %93, %103 : vector<16x144xf32>
    %105 = vector.extract_strided_slice %69 {offsets = [0, 3, 0], sizes = [2, 8, 192], strides = [1, 1, 1]} : vector<2x12x192xf32> to vector<2x8x192xf32>
    %106 = vector.shape_cast %105 : vector<2x8x192xf32> to vector<16x192xf32>
    %107 = arith.truncf %106 : vector<16x192xf32> to vector<16x192xbf16>
    %c3_68 = arith.constant 3 : index
    %c0_69 = arith.constant 0 : index
    %c0_70 = arith.constant 0 : index
    %108 = vector.load %arg5[%c3_68, %c0_69, %c0_70] : memref<5x192x144xbf16, #tpu.memory_space<vmem>>, vector<1x192x144xbf16>
    %109 = vector.shape_cast %108 : vector<1x192x144xbf16> to vector<192x144xbf16>
    %cst_71 = arith.constant dense<0.000000e+00> : vector<16x144xf32>
    %110 = tpu.matmul %107, %109, %cst_71 {dimension_numbers = #tpu.dot_dimension_numbers<[1], [0], [0], [1], [0, 0, 1, 1], [], []>} : vector<16x192xbf16>, vector<192x144xbf16>, vector<16x144xf32> -> vector<16x144xf32>
    %111 = arith.addf %100, %110 : vector<16x144xf32>
    %c3_72 = arith.constant 3 : index
    %c0_73 = arith.constant 0 : index
    %c0_74 = arith.constant 0 : index
    %112 = vector.load %arg6[%c3_72, %c0_73, %c0_74] : memref<5x192x144xbf16, #tpu.memory_space<vmem>>, vector<1x192x144xbf16>
    %113 = vector.shape_cast %112 : vector<1x192x144xbf16> to vector<192x144xbf16>
    %cst_75 = arith.constant dense<0.000000e+00> : vector<16x144xf32>
    %114 = tpu.matmul %107, %113, %cst_75 {dimension_numbers = #tpu.dot_dimension_numbers<[1], [0], [0], [1], [0, 0, 1, 1], [], []>} : vector<16x192xbf16>, vector<192x144xbf16>, vector<16x144xf32> -> vector<16x144xf32>
    %115 = arith.addf %104, %114 : vector<16x144xf32>
    %116 = vector.extract_strided_slice %69 {offsets = [0, 4, 0], sizes = [2, 8, 192], strides = [1, 1, 1]} : vector<2x12x192xf32> to vector<2x8x192xf32>
    %117 = vector.shape_cast %116 : vector<2x8x192xf32> to vector<16x192xf32>
    %118 = arith.truncf %117 : vector<16x192xf32> to vector<16x192xbf16>
    %c4_76 = arith.constant 4 : index
    %c0_77 = arith.constant 0 : index
    %c0_78 = arith.constant 0 : index
    %119 = vector.load %arg5[%c4_76, %c0_77, %c0_78] : memref<5x192x144xbf16, #tpu.memory_space<vmem>>, vector<1x192x144xbf16>
    %120 = vector.shape_cast %119 : vector<1x192x144xbf16> to vector<192x144xbf16>
    %cst_79 = arith.constant dense<0.000000e+00> : vector<16x144xf32>
    %121 = tpu.matmul %118, %120, %cst_79 {dimension_numbers = #tpu.dot_dimension_numbers<[1], [0], [0], [1], [0, 0, 1, 1], [], []>} : vector<16x192xbf16>, vector<192x144xbf16>, vector<16x144xf32> -> vector<16x144xf32>
    %122 = arith.addf %111, %121 : vector<16x144xf32>
    %c4_80 = arith.constant 4 : index
    %c0_81 = arith.constant 0 : index
    %c0_82 = arith.constant 0 : index
    %123 = vector.load %arg6[%c4_80, %c0_81, %c0_82] : memref<5x192x144xbf16, #tpu.memory_space<vmem>>, vector<1x192x144xbf16>
    %124 = vector.shape_cast %123 : vector<1x192x144xbf16> to vector<192x144xbf16>
    %cst_83 = arith.constant dense<0.000000e+00> : vector<16x144xf32>
    %125 = tpu.matmul %118, %124, %cst_83 {dimension_numbers = #tpu.dot_dimension_numbers<[1], [0], [0], [1], [0, 0, 1, 1], [], []>} : vector<16x192xbf16>, vector<192x144xbf16>, vector<16x144xf32> -> vector<16x144xf32>
    %126 = arith.addf %115, %125 : vector<16x144xf32>
    %127 = arith.maximumf %122, %126 : vector<16x144xf32>
    %c0_84 = arith.constant 0 : index
    %c0_85 = arith.constant 0 : index
    %128 = vector.load %arg7[%c0_84, %c0_85] : memref<1x144xf32, #tpu.memory_space<vmem>>, vector<1x144xf32>
    %129 = vector.broadcast %128 : vector<1x144xf32> to vector<16x144xf32>
    %130 = arith.addf %127, %129 : vector<16x144xf32>
    %cst_86 = arith.constant 0.000000e+00 : f32
    %131 = vector.broadcast %cst_86 : f32 to vector<16x144xf32>
    %132 = arith.maximumf %130, %131 : vector<16x144xf32>
    %133 = vector.shape_cast %132 : vector<16x144xf32> to vector<2x4x2x144xf32>
    %134 = vector.extract_strided_slice %133 {offsets = [0, 0, 0, 0], sizes = [2, 4, 1, 144], strides = [1, 1, 1, 1]} : vector<2x4x2x144xf32> to vector<2x4x1x144xf32>
    %135 = vector.shape_cast %134 : vector<2x4x1x144xf32> to vector<2x4x144xf32>
    %136 = vector.extract_strided_slice %133 {offsets = [0, 0, 1, 0], sizes = [2, 4, 1, 144], strides = [1, 1, 1, 1]} : vector<2x4x2x144xf32> to vector<2x4x1x144xf32>
    %137 = vector.shape_cast %136 : vector<2x4x1x144xf32> to vector<2x4x144xf32>
    %138 = arith.maximumf %135, %137 : vector<2x4x144xf32>
    %cst_87 = arith.constant 0.000000e+00 : f32
    %139 = vector.broadcast %cst_87 : f32 to vector<2x128xf32>
    %140 = vector.extract_strided_slice %138 {offsets = [0, 0, 0], sizes = [2, 1, 144], strides = [1, 1, 1]} : vector<2x4x144xf32> to vector<2x1x144xf32>
    %141 = vector.shape_cast %140 : vector<2x1x144xf32> to vector<2x144xf32>
    %142 = arith.truncf %141 : vector<2x144xf32> to vector<2x144xbf16>
    %c0_88 = arith.constant 0 : index
    %c0_89 = arith.constant 0 : index
    %c0_90 = arith.constant 0 : index
    %143 = vector.load %arg8[%c0_88, %c0_89, %c0_90] : memref<4x144x128xbf16, #tpu.memory_space<vmem>>, vector<1x144x128xbf16>
    %144 = vector.shape_cast %143 : vector<1x144x128xbf16> to vector<144x128xbf16>
    %cst_91 = arith.constant dense<0.000000e+00> : vector<2x128xf32>
    %145 = tpu.matmul %142, %144, %cst_91 {dimension_numbers = #tpu.dot_dimension_numbers<[1], [0], [0], [1], [0, 0, 1, 1], [], []>} : vector<2x144xbf16>, vector<144x128xbf16>, vector<2x128xf32> -> vector<2x128xf32>
    %146 = arith.addf %139, %145 : vector<2x128xf32>
    %147 = vector.extract_strided_slice %138 {offsets = [0, 1, 0], sizes = [2, 1, 144], strides = [1, 1, 1]} : vector<2x4x144xf32> to vector<2x1x144xf32>
    %148 = vector.shape_cast %147 : vector<2x1x144xf32> to vector<2x144xf32>
    %149 = arith.truncf %148 : vector<2x144xf32> to vector<2x144xbf16>
    %c1_92 = arith.constant 1 : index
    %c0_93 = arith.constant 0 : index
    %c0_94 = arith.constant 0 : index
    %150 = vector.load %arg8[%c1_92, %c0_93, %c0_94] : memref<4x144x128xbf16, #tpu.memory_space<vmem>>, vector<1x144x128xbf16>
    %151 = vector.shape_cast %150 : vector<1x144x128xbf16> to vector<144x128xbf16>
    %cst_95 = arith.constant dense<0.000000e+00> : vector<2x128xf32>
    %152 = tpu.matmul %149, %151, %cst_95 {dimension_numbers = #tpu.dot_dimension_numbers<[1], [0], [0], [1], [0, 0, 1, 1], [], []>} : vector<2x144xbf16>, vector<144x128xbf16>, vector<2x128xf32> -> vector<2x128xf32>
    %153 = arith.addf %146, %152 : vector<2x128xf32>
    %154 = vector.extract_strided_slice %138 {offsets = [0, 2, 0], sizes = [2, 1, 144], strides = [1, 1, 1]} : vector<2x4x144xf32> to vector<2x1x144xf32>
    %155 = vector.shape_cast %154 : vector<2x1x144xf32> to vector<2x144xf32>
    %156 = arith.truncf %155 : vector<2x144xf32> to vector<2x144xbf16>
    %c2_96 = arith.constant 2 : index
    %c0_97 = arith.constant 0 : index
    %c0_98 = arith.constant 0 : index
    %157 = vector.load %arg8[%c2_96, %c0_97, %c0_98] : memref<4x144x128xbf16, #tpu.memory_space<vmem>>, vector<1x144x128xbf16>
    %158 = vector.shape_cast %157 : vector<1x144x128xbf16> to vector<144x128xbf16>
    %cst_99 = arith.constant dense<0.000000e+00> : vector<2x128xf32>
    %159 = tpu.matmul %156, %158, %cst_99 {dimension_numbers = #tpu.dot_dimension_numbers<[1], [0], [0], [1], [0, 0, 1, 1], [], []>} : vector<2x144xbf16>, vector<144x128xbf16>, vector<2x128xf32> -> vector<2x128xf32>
    %160 = arith.addf %153, %159 : vector<2x128xf32>
    %161 = vector.extract_strided_slice %138 {offsets = [0, 3, 0], sizes = [2, 1, 144], strides = [1, 1, 1]} : vector<2x4x144xf32> to vector<2x1x144xf32>
    %162 = vector.shape_cast %161 : vector<2x1x144xf32> to vector<2x144xf32>
    %163 = arith.truncf %162 : vector<2x144xf32> to vector<2x144xbf16>
    %c3_100 = arith.constant 3 : index
    %c0_101 = arith.constant 0 : index
    %c0_102 = arith.constant 0 : index
    %164 = vector.load %arg8[%c3_100, %c0_101, %c0_102] : memref<4x144x128xbf16, #tpu.memory_space<vmem>>, vector<1x144x128xbf16>
    %165 = vector.shape_cast %164 : vector<1x144x128xbf16> to vector<144x128xbf16>
    %cst_103 = arith.constant dense<0.000000e+00> : vector<2x128xf32>
    %166 = tpu.matmul %163, %165, %cst_103 {dimension_numbers = #tpu.dot_dimension_numbers<[1], [0], [0], [1], [0, 0, 1, 1], [], []>} : vector<2x144xbf16>, vector<144x128xbf16>, vector<2x128xf32> -> vector<2x128xf32>
    %167 = arith.addf %160, %166 : vector<2x128xf32>
    %c0_104 = arith.constant 0 : index
    %c0_105 = arith.constant 0 : index
    %168 = vector.load %arg9[%c0_104, %c0_105] : memref<1x128xf32, #tpu.memory_space<vmem>>, vector<1x128xf32>
    %169 = vector.broadcast %168 : vector<1x128xf32> to vector<2x128xf32>
    %170 = arith.addf %167, %169 : vector<2x128xf32>
    %cst_106 = arith.constant 0.000000e+00 : f32
    %171 = vector.broadcast %cst_106 : f32 to vector<2x128xf32>
    %172 = arith.maximumf %170, %171 : vector<2x128xf32>
    %173 = arith.truncf %172 : vector<2x128xf32> to vector<2x128xbf16>
    %c0_107 = arith.constant 0 : index
    %c0_108 = arith.constant 0 : index
    %174 = vector.load %arg10[%c0_107, %c0_108] : memref<128x128xbf16, #tpu.memory_space<vmem>>, vector<128x128xbf16>
    %cst_109 = arith.constant dense<0.000000e+00> : vector<2x128xf32>
    %175 = tpu.matmul %173, %174, %cst_109 {dimension_numbers = #tpu.dot_dimension_numbers<[1], [0], [0], [1], [0, 0, 1, 1], [], []>} : vector<2x128xbf16>, vector<128x128xbf16>, vector<2x128xf32> -> vector<2x128xf32>
    %c0_110 = arith.constant 0 : index
    %c0_111 = arith.constant 0 : index
    %176 = vector.load %arg11[%c0_110, %c0_111] : memref<1x128xf32, #tpu.memory_space<vmem>>, vector<1x128xf32>
    %177 = vector.broadcast %176 : vector<1x128xf32> to vector<2x128xf32>
    %178 = arith.addf %175, %177 : vector<2x128xf32>
    %c0_112 = arith.constant 0 : index
    %c0_113 = arith.constant 0 : index
    %179 = vector.load %arg12[%c0_112, %c0_113] : memref<2x128xf32, #tpu.memory_space<vmem>>, vector<2x128xf32>
    tpu.vector_store %arg12[%c0_112, %c0_113], %178 {strides = array<i32>} : memref<2x128xf32, #tpu.memory_space<vmem>>, vector<2x128xf32>,
    return
  }
  func.func @transform_0(%arg0: i32) -> (i32, i32, i32) {
    %c0_i32 = arith.constant 0 : i32
    %c0_i32_0 = arith.constant 0 : i32
    %c0_i32_1 = arith.constant 0 : i32
    return %arg0, %c0_i32, %c0_i32_0 : i32, i32, i32
  }
  func.func @transform_1(%arg0: i32) -> (i32, i32, i32) {
    %c0_i32 = arith.constant 0 : i32
    %c0_i32_0 = arith.constant 0 : i32
    %c0_i32_1 = arith.constant 0 : i32
    %c0_i32_2 = arith.constant 0 : i32
    return %c0_i32, %c0_i32_0, %c0_i32_1 : i32, i32, i32
  }
  func.func @transform_2(%arg0: i32) -> (i32, i32, i32) {
    %c0_i32 = arith.constant 0 : i32
    %c0_i32_0 = arith.constant 0 : i32
    %c0_i32_1 = arith.constant 0 : i32
    %c0_i32_2 = arith.constant 0 : i32
    return %c0_i32, %c0_i32_0, %c0_i32_1 : i32, i32, i32
  }
  func.func @transform_3(%arg0: i32) -> (i32, i32) {
    %c0_i32 = arith.constant 0 : i32
    %c0_i32_0 = arith.constant 0 : i32
    %c0_i32_1 = arith.constant 0 : i32
    return %c0_i32, %c0_i32_0 : i32, i32
  }
  func.func @transform_4(%arg0: i32) -> (i32, i32, i32) {
    %c0_i32 = arith.constant 0 : i32
    %c0_i32_0 = arith.constant 0 : i32
    %c0_i32_1 = arith.constant 0 : i32
    %c0_i32_2 = arith.constant 0 : i32
    return %c0_i32, %c0_i32_0, %c0_i32_1 : i32, i32, i32
  }
  func.func @transform_5(%arg0: i32) -> (i32, i32, i32) {
    %c0_i32 = arith.constant 0 : i32
    %c0_i32_0 = arith.constant 0 : i32
    %c0_i32_1 = arith.constant 0 : i32
    %c0_i32_2 = arith.constant 0 : i32
    return %c0_i32, %c0_i32_0, %c0_i32_1 : i32, i32, i32
  }
  func.func @transform_6(%arg0: i32) -> (i32, i32) {
    %c0_i32 = arith.constant 0 : i32
    %c0_i32_0 = arith.constant 0 : i32
    %c0_i32_1 = arith.constant 0 : i32
    return %c0_i32, %c0_i32_0 : i32, i32
  }
  func.func @transform_7(%arg0: i32) -> (i32, i32, i32) {
    %c0_i32 = arith.constant 0 : i32
    %c0_i32_0 = arith.constant 0 : i32
    %c0_i32_1 = arith.constant 0 : i32
    %c0_i32_2 = arith.constant 0 : i32
    return %c0_i32, %c0_i32_0, %c0_i32_1 : i32, i32, i32
  }
  func.func @transform_8(%arg0: i32) -> (i32, i32) {
    %c0_i32 = arith.constant 0 : i32
    %c0_i32_0 = arith.constant 0 : i32
    %c0_i32_1 = arith.constant 0 : i32
    return %c0_i32, %c0_i32_0 : i32, i32
  }
  func.func @transform_9(%arg0: i32) -> (i32, i32) {
    %c0_i32 = arith.constant 0 : i32
    %c0_i32_0 = arith.constant 0 : i32
    %c0_i32_1 = arith.constant 0 : i32
    return %c0_i32, %c0_i32_0 : i32, i32
  }
  func.func @transform_10(%arg0: i32) -> (i32, i32) {
    %c0_i32 = arith.constant 0 : i32
    %c0_i32_0 = arith.constant 0 : i32
    %c0_i32_1 = arith.constant 0 : i32
    return %c0_i32, %c0_i32_0 : i32, i32
  }
  func.func @transform_11(%arg0: i32) -> (i32, i32) {
    %c0_i32 = arith.constant 0 : i32
    %c0_i32_0 = arith.constant 0 : i32
    return %arg0, %c0_i32 : i32, i32
  }
}

</mosaic_0001>

<llo_original>
// kernel: net_forward.1
$region0: #{net_forward.1}
  #allocation0 [shape = 'u32[]', space=smem, size = 0x4, offset = 0x4, fixed_abs, tag = 'smem constant byte address 0x4 - core index']
  #allocation1 [shape = 'u32[144,128]{1,0:T(1,128)}', space=vmem, size = 0x12000, scoped, tag = 'internal scratch']
  %s0 = inlined_call_operand.vmem [shape: f32[2,28,28], index: 0, kind: input, shape index: {}]
  %s1 = inlined_call_operand.vmem [shape: bf16[5,28,192], index: 1, kind: input, shape index: {}]
  %s2 = inlined_call_operand.vmem [shape: bf16[5,28,192], index: 2, kind: input, shape index: {}]
  %s3 = inlined_call_operand.vmem [shape: f32[1,192], index: 3, kind: input, shape index: {}]
  %s4 = inlined_call_operand.vmem [shape: bf16[5,192,144], index: 4, kind: input, shape index: {}]
  %s5 = inlined_call_operand.vmem [shape: bf16[5,192,144], index: 5, kind: input, shape index: {}]
  %s6 = inlined_call_operand.vmem [shape: f32[1,144], index: 6, kind: input, shape index: {}]
  %s7 = inlined_call_operand.vmem [shape: bf16[4,144,128], index: 7, kind: input, shape index: {}]
  %s8 = inlined_call_operand.vmem [shape: f32[1,128], index: 8, kind: input, shape index: {}]
  %s9 = inlined_call_operand.vmem [shape: bf16[128,128], index: 9, kind: input, shape index: {}]
  %s10 = inlined_call_operand.vmem [shape: f32[1,128], index: 10, kind: input, shape index: {}]
  %s11 = inlined_call_operand.hbm [shape: f32[2,128], index: 11, kind: output, shape index: {}]
  %s12 = sld [smem:[#allocation0]]
  $region54: #{net_forward.1} parent=0
    _
  %s14 = ssub.s32 1, %s12
  %s15 = scalar_select 0, %s14, %s12
  $region1: #{net_forward.1} parent=0
    #allocation2 [shape = 'u8[1024]{0}', space=vmem, size = 0x400, scoped, tag = 'output window, operand 0, single buffered']
    #allocation3 [shape = 's32[1]{0}', space=sflag, size = 0x4, scoped, tag = 'scoped memory for net_forward.1']
    %16 = vsyncpa [#allocation3], 0
    // Predicated region
    $region2: #{net_forward.1} parent=1 // pred_check
      _
    $region3: #{net_forward.1} parent=1 // pred_check_branch
      %18 = sbr.rel (0) target = $region5
    $region4: #{net_forward.1} parent=1 // pred_region
      _
    $region5: #{net_forward.1} parent=1 // pred_fallthru
      _
    // Predicated region
    $region6: #{net_forward.1} parent=1 // pred_check
      _
    $region7: #{net_forward.1} parent=1 // pred_check_branch
      %20 = sbr.rel (0) target = $region9
    $region8: #{net_forward.1} parent=1 // pred_region
      _
    $region9: #{net_forward.1} parent=1 // pred_fallthru
      _
    // Predicated region
    $region10: #{net_forward.1} parent=1 // pred_check
      _
    $region11: #{net_forward.1} parent=1 // pred_check_branch
      %22 = sbr.rel (0) target = $region13
    $region12: #{net_forward.1} parent=1 // pred_region
      _
    $region13: #{net_forward.1} parent=1 // pred_fallthru
      _
    // Predicated region
    $region14: #{net_forward.1} parent=1 // pred_check
      _
    $region15: #{net_forward.1} parent=1 // pred_check_branch
      %24 = sbr.rel (0) target = $region17
    $region16: #{net_forward.1} parent=1 // pred_region
      _
    $region17: #{net_forward.1} parent=1 // pred_fallthru
      _
    // Predicated region
    $region18: #{net_forward.1} parent=1 // pred_check
      _
    $region19: #{net_forward.1} parent=1 // pred_check_branch
      %26 = sbr.rel (0) target = $region21
    $region20: #{net_forward.1} parent=1 // pred_region
      _
    $region21: #{net_forward.1} parent=1 // pred_fallthru
      _
    // Predicated region
    $region22: #{net_forward.1} parent=1 // pred_check
      _
    $region23: #{net_forward.1} parent=1 // pred_check_branch
      %28 = sbr.rel (0) target = $region25
    $region24: #{net_forward.1} parent=1 // pred_region
      _
    $region25: #{net_forward.1} parent=1 // pred_fallthru
      _
    // Predicated region
    $region26: #{net_forward.1} parent=1 // pred_check
      _
    $region27: #{net_forward.1} parent=1 // pred_check_branch
      %30 = sbr.rel (0) target = $region29
    $region28: #{net_forward.1} parent=1 // pred_region
      _
    $region29: #{net_forward.1} parent=1 // pred_fallthru
      _
    // Predicated region
    $region30: #{net_forward.1} parent=1 // pred_check
      _
    $region31: #{net_forward.1} parent=1 // pred_check_branch
      %32 = sbr.rel (0) target = $region33
    $region32: #{net_forward.1} parent=1 // pred_region
      _
    $region33: #{net_forward.1} parent=1 // pred_fallthru
      _
    // Predicated region
    $region34: #{net_forward.1} parent=1 // pred_check
      _
    $region35: #{net_forward.1} parent=1 // pred_check_branch
      %34 = sbr.rel (0) target = $region37
    $region36: #{net_forward.1} parent=1 // pred_region
      _
    $region37: #{net_forward.1} parent=1 // pred_fallthru
      _
    // Predicated region
    $region38: #{net_forward.1} parent=1 // pred_check
      _
    $region39: #{net_forward.1} parent=1 // pred_check_branch
      %36 = sbr.rel (0) target = $region41
    $region40: #{net_forward.1} parent=1 // pred_region
      _
    $region41: #{net_forward.1} parent=1 // pred_fallthru
      _
    // Predicated region
    $region42: #{net_forward.1} parent=1 // pred_check
      _
    $region43: #{net_forward.1} parent=1 // pred_check_branch
      %38 = sbr.rel (0) target = $region45
    $region44: #{net_forward.1} parent=1 // pred_region
      _
    $region45: #{net_forward.1} parent=1 // pred_fallthru
      _
    %v40 = vld [vmem:[%s0] sm:$0xff]
    %v41 = vld [vmem:[%s0 + $0x8] sm:$0xff]
    %v42 = vld [vmem:[%s0 + $0x10] sm:$0xff]
    %v43 = vld [vmem:[%s0 + $0x18] sm:$0xf]
    %v44 = vld [vmem:[%s0 + $0x20] sm:$0xff]
    %v45 = vld [vmem:[%s0 + $0x28] sm:$0xff]
    %v46 = vld [vmem:[%s0 + $0x30] sm:$0xff]
    %v47 = vld [vmem:[%s0 + $0x38] sm:$0xf]
    %v48 = vpack.c.bf16 %v41, %v40
    %v49 = vpack.c.bf16 %v44, %v42
    %v50 = vpack.c.bf16 %v46, %v45
    %v51 = vld [vmem:[%s1] sm:$0xff]
    %v52 = vld [vmem:[%s1 + $0x8] sm:$0xff]
    %v53 = vld [vmem:[%s1 + $0x10] sm:$0xff]
    %v54 = vld [vmem:[%s1 + $0x18] sm:$0x33]
    %v55 = vld [vmem:[%s2] sm:$0xff]
    %v56 = vld [vmem:[%s2 + $0x8] sm:$0xff]
    %v57 = vld [vmem:[%s2 + $0x10] sm:$0xff]
    %v58 = vld [vmem:[%s2 + $0x18] sm:$0x33]
    %vm67 = vcmask 1046528
    %v68 = vrot.slane %v40, 1
    %v69 = vrot.slane %v41, 1
    %v70 = vsel %vm67, %v68, %v69
    %v71 = vrot.slane %v42, 1
    %v72 = vsel %vm67, %v69, %v71
    %v73 = vrot.slane %v43, 1
    %v74 = vsel %vm67, %v71, %v73
    %v75 = vrot.slane %v44, 1
    %v76 = vrot.slane %v45, 1
    %v77 = vsel %vm67, %v75, %v76
    %v78 = vrot.slane %v46, 1
    %v79 = vsel %vm67, %v76, %v78
    %v80 = vrot.slane %v47, 1
    %v81 = vsel %vm67, %v78, %v80
    %v88 = vpack.c.bf16 %v72, %v70
    %v89 = vpack.c.bf16 %v77, %v74
    %v90 = vpack.c.bf16 %v81, %v79
    %s91 = scalar_lea.vmem %s1, 32
    %v92 = vld [vmem:[%s91] sm:$0xff]
    %v93 = vld [vmem:[%s91 + $0x8] sm:$0xff]
    %v94 = vld [vmem:[%s91 + $0x10] sm:$0xff]
    %v95 = vld [vmem:[%s91 + $0x18] sm:$0x33]
    %v100 = vunpack.c.l.b16 %v92
    %v101 = vunpack.c.h.b16 %v92
    %v102 = vunpack.c.l.b16 %v93
    %v103 = vunpack.c.h.b16 %v93
    %v104 = vunpack.c.l.b16 %v94
    %v105 = vunpack.c.h.b16 %v94
    %v106 = vunpack.c.l.b16 %v95
    %v107 = vunpack.c.h.b16 %v95
    %v108 = vpack.c.b16 %v102, %v100
    %v109 = vpack.c.b16 %v103, %v101
    %v110 = vpack.c.b16 %v106, %v104
    %v111 = vpack.c.b16 %v107, %v105
    %vm114 = vcmask 228352
    %v116 = vsel %vm114, %v88, 0
    %v119 = vsel %vm114, %v89, 0
    %v122 = vsel %vm114, %v90, 0
    %vm124 = vcmask 1045504
    %v126 = vsel %vm124, %v110, 0
    %v129 = vsel %vm124, %v111, 0
    %131 = vmatprep.subr.bf16.mxu0 %v109
    %132 = vmatpush1.bf16.msra.mxu0 %v108
    %133 = vmatprep.subr.bf16.mxu0 %v129
    %134 = vmatpush1.bf16.msra.mxu0 %v126
    %135 = vmatprep.subr.bf16.mxu0 0
    %136 = vmatpush1.bf16.msra.mxu0 0
    %137 = vmatprep.subr.bf16.mxu0 0
    %138 = vmatpush1.bf16.msra.mxu0 0
    %139 = vmatprep.subr.bf16.mxu0 0
    %140 = vmatpush1.bf16.msra.mxu0 0
    %141 = vmatprep.subr.bf16.mxu0 0
    %142 = vmatpush1.bf16.msra.mxu0 0
    %143 = vmatprep.subr.bf16.mxu0 0
    %144 = vmatpush1.bf16.msra.mxu0 0
    %145 = vmatprep.subr.bf16.mxu0 0
    %146 = vmatpush1.bf16.msra.mxu0 0
    %147 = vmatprep.subr.bf16.mxu0 0
    %148 = vmatpush1.bf16.msra.mxu0 0
    %149 = vmatprep.subr.bf16.mxu0 0
    %150 = vmatpush1.bf16.msra.mxu0 0
    %151 = vmatprep.subr.bf16.mxu0 0
    %152 = vmatpush1.bf16.msra.mxu0 0
    %153 = vmatprep.subr.bf16.mxu0 0
    %154 = vmatpush1.bf16.msra.mxu0 0
    %155 = vmatprep.subr.bf16.mxu0 0
    %156 = vmatpush1.bf16.msra.mxu0 0
    %157 = vmatprep.subr.bf16.mxu0 0
    %158 = vmatpush1.bf16.msra.mxu0 0
    %159 = vmatprep.subr.bf16.mxu0 0
    %160 = vmatpush1.bf16.msra.mxu0 0
    %161 = vmatprep.subr.bf16.mxu0 0
    %162 = vmatpush1.bf16.msra.mxu0 0
    %163 = vmatprep.mubr.bf16.mxu0 0
    %164 = vmatmul.mubr.bf16.gmra.mrb[0].mxu0 %v116
    %v165 = vpop.f32.mrb[0].mxu0
    %v166 = vadd.f32 0.0, %v165
    %v167 = vpop.f32.mrb[0].mxu0
    %v168 = vadd.f32 0.0, %v167
    %v169 = vpop.f32.mrb[0].mxu0
    %v170 = vadd.f32 0.0, %v169
    %v171 = vpop.f32.mrb[0].mxu0
    %v172 = vadd.f32 0.0, %v171
    %173 = vmatprep.mubr.bf16.mxu0 0
    %174 = vmatmul.mubr.bf16.gmra.mrb[0].mxu0 %v119
    %v175 = vpop.f32.mrb[0].mxu0
    %v176 = vadd.f32 0.0, %v175
    %v177 = vpop.f32.mrb[0].mxu0
    %v178 = vadd.f32 0.0, %v177
    %v179 = vpop.f32.mrb[0].mxu0
    %v180 = vadd.f32 0.0, %v179
    %v181 = vpop.f32.mrb[0].mxu0
    %v182 = vadd.f32 0.0, %v181
    %183 = vmatprep.mubr.bf16.mxu0 0
    %184 = vmatmul.mubr.bf16.gmra.mrb[0].mxu0 %v122
    %v185 = vpop.f32.mrb[0].mxu0
    %v186 = vadd.f32 0.0, %v185
    %v187 = vpop.f32.mrb[0].mxu0
    %v188 = vadd.f32 0.0, %v187
    %v189 = vpop.f32.mrb[0].mxu0
    %v190 = vadd.f32 0.0, %v189
    %v191 = vpop.f32.mrb[0].mxu0
    %v192 = vadd.f32 0.0, %v191
    %193 = vdwg.mxu0
    %v198 = vunpack.c.l.b16 %v51
    %v199 = vunpack.c.h.b16 %v51
    %v200 = vunpack.c.l.b16 %v52
    %v201 = vunpack.c.h.b16 %v52
    %v202 = vunpack.c.l.b16 %v53
    %v203 = vunpack.c.h.b16 %v53
    %v204 = vunpack.c.l.b16 %v54
    %v205 = vunpack.c.h.b16 %v54
    %v206 = vpack.c.b16 %v200, %v198
    %v207 = vpack.c.b16 %v201, %v199
    %v208 = vpack.c.b16 %v204, %v202
    %v209 = vpack.c.b16 %v205, %v203
    %v213 = vsel %vm114, %v48, 0
    %v216 = vsel %vm114, %v49, 0
    %v219 = vsel %vm114, %v50, 0
    %v222 = vsel %vm124, %v208, 0
    %v225 = vsel %vm124, %v209, 0
    %227 = vmatprep.subr.bf16.mxu0 %v207
    %228 = vmatpush1.bf16.msra.mxu0 %v206
    %229 = vmatprep.subr.bf16.mxu0 %v225
    %230 = vmatpush1.bf16.msra.mxu0 %v222
    %231 = vmatprep.subr.bf16.mxu0 0
    %232 = vmatpush1.bf16.msra.mxu0 0
    %233 = vmatprep.subr.bf16.mxu0 0
    %234 = vmatpush1.bf16.msra.mxu0 0
    %235 = vmatprep.subr.bf16.mxu0 0
    %236 = vmatpush1.bf16.msra.mxu0 0
    %237 = vmatprep.subr.bf16.mxu0 0
    %238 = vmatpush1.bf16.msra.mxu0 0
    %239 = vmatprep.subr.bf16.mxu0 0
    %240 = vmatpush1.bf16.msra.mxu0 0
    %241 = vmatprep.subr.bf16.mxu0 0
    %242 = vmatpush1.bf16.msra.mxu0 0
    %243 = vmatprep.subr.bf16.mxu0 0
    %244 = vmatpush1.bf16.msra.mxu0 0
    %245 = vmatprep.subr.bf16.mxu0 0
    %246 = vmatpush1.bf16.msra.mxu0 0
    %247 = vmatprep.subr.bf16.mxu0 0
    %248 = vmatpush1.bf16.msra.mxu0 0
    %249 = vmatprep.subr.bf16.mxu0 0
    %250 = vmatpush1.bf16.msra.mxu0 0
    %251 = vmatprep.subr.bf16.mxu0 0
    %252 = vmatpush1.bf16.msra.mxu0 0
    %253 = vmatprep.subr.bf16.mxu0 0
    %254 = vmatpush1.bf16.msra.mxu0 0
    %255 = vmatprep.subr.bf16.mxu0 0
    %256 = vmatpush1.bf16.msra.mxu0 0
    %257 = vmatprep.subr.bf16.mxu0 0
    %258 = vmatpush1.bf16.msra.mxu0 0
    %259 = vmatprep.mubr.bf16.mxu0 0
    %260 = vmatmul.mubr.bf16.gmra.mrb[0].mxu0 %v213
    %v261 = vpop.f32.mrb[0].mxu0
    %v262 = vadd.f32 %v166, %v261
    %v263 = vpop.f32.mrb[0].mxu0
    %v264 = vadd.f32 %v168, %v263
    %v265 = vpop.f32.mrb[0].mxu0
    %v266 = vadd.f32 %v170, %v265
    %v267 = vpop.f32.mrb[0].mxu0
    %v268 = vadd.f32 %v172, %v267
    %269 = vmatprep.mubr.bf16.mxu0 0
    %270 = vmatmul.mubr.bf16.gmra.mrb[0].mxu0 %v216
    %v271 = vpop.f32.mrb[0].mxu0
    %v272 = vadd.f32 %v176, %v271
    %v273 = vpop.f32.mrb[0].mxu0
    %v274 = vadd.f32 %v178, %v273
    %v275 = vpop.f32.mrb[0].mxu0
    %v276 = vadd.f32 %v180, %v275
    %v277 = vpop.f32.mrb[0].mxu0
    %v278 = vadd.f32 %v182, %v277
    %279 = vmatprep.mubr.bf16.mxu0 0
    %280 = vmatmul.mubr.bf16.gmra.mrb[0].mxu0 %v219
    %v281 = vpop.f32.mrb[0].mxu0
    %v282 = vadd.f32 %v186, %v281
    %v283 = vpop.f32.mrb[0].mxu0
    %v284 = vadd.f32 %v188, %v283
    %v285 = vpop.f32.mrb[0].mxu0
    %v286 = vadd.f32 %v190, %v285
    %v287 = vpop.f32.mrb[0].mxu0
    %v288 = vadd.f32 %v192, %v287
    %289 = vdwg.mxu0
    %s290 = scalar_lea.vmem %s2, 32
    %v291 = vld [vmem:[%s290] sm:$0xff]
    %v292 = vld [vmem:[%s290 + $0x8] sm:$0xff]
    %v293 = vld [vmem:[%s290 + $0x10] sm:$0xff]
    %v294 = vld [vmem:[%s290 + $0x18] sm:$0x33]
    %v299 = vunpack.c.l.b16 %v291
    %v300 = vunpack.c.h.b16 %v291
    %v301 = vunpack.c.l.b16 %v292
    %v302 = vunpack.c.h.b16 %v292
    %v303 = vunpack.c.l.b16 %v293
    %v304 = vunpack.c.h.b16 %v293
    %v305 = vunpack.c.l.b16 %v294
    %v306 = vunpack.c.h.b16 %v294
    %v307 = vpack.c.b16 %v301, %v299
    %v308 = vpack.c.b16 %v302, %v300
    %v309 = vpack.c.b16 %v305, %v303
    %v310 = vpack.c.b16 %v306, %v304
    %v314 = vsel %vm124, %v309, 0
    %v317 = vsel %vm124, %v310, 0
    %319 = vmatprep.subr.bf16.mxu0 %v308
    %320 = vmatpush1.bf16.msra.mxu0 %v307
    %321 = vmatprep.subr.bf16.mxu0 %v317
    %322 = vmatpush1.bf16.msra.mxu0 %v314
    %323 = vmatprep.subr.bf16.mxu0 0
    %324 = vmatpush1.bf16.msra.mxu0 0
    %325 = vmatprep.subr.bf16.mxu0 0
    %326 = vmatpush1.bf16.msra.mxu0 0
    %327 = vmatprep.subr.bf16.mxu0 0
    %328 = vmatpush1.bf16.msra.mxu0 0
    %329 = vmatprep.subr.bf16.mxu0 0
    %330 = vmatpush1.bf16.msra.mxu0 0
    %331 = vmatprep.subr.bf16.mxu0 0
    %332 = vmatpush1.bf16.msra.mxu0 0
    %333 = vmatprep.subr.bf16.mxu0 0
    %334 = vmatpush1.bf16.msra.mxu0 0
    %335 = vmatprep.subr.bf16.mxu0 0
    %336 = vmatpush1.bf16.msra.mxu0 0
    %337 = vmatprep.subr.bf16.mxu0 0
    %338 = vmatpush1.bf16.msra.mxu0 0
    %339 = vmatprep.subr.bf16.mxu0 0
    %340 = vmatpush1.bf16.msra.mxu0 0
    %341 = vmatprep.subr.bf16.mxu0 0
    %342 = vmatpush1.bf16.msra.mxu0 0
    %343 = vmatprep.subr.bf16.mxu0 0
    %344 = vmatpush1.bf16.msra.mxu0 0
    %345 = vmatprep.subr.bf16.mxu0 0
    %346 = vmatpush1.bf16.msra.mxu0 0
    %347 = vmatprep.subr.bf16.mxu0 0
    %348 = vmatpush1.bf16.msra.mxu0 0
    %349 = vmatprep.subr.bf16.mxu0 0
    %350 = vmatpush1.bf16.msra.mxu0 0
    %351 = vmatprep.mubr.bf16.mxu0 0
    %352 = vmatmul.mubr.bf16.gmra.mrb[0].mxu0 %v116
    %v353 = vpop.f32.mrb[0].mxu0
    %v354 = vadd.f32 0.0, %v353
    %v355 = vpop.f32.mrb[0].mxu0
    %v356 = vadd.f32 0.0, %v355
    %v357 = vpop.f32.mrb[0].mxu0
    %v358 = vadd.f32 0.0, %v357
    %v359 = vpop.f32.mrb[0].mxu0
    %v360 = vadd.f32 0.0, %v359
    %361 = vmatprep.mubr.bf16.mxu0 0
    %362 = vmatmul.mubr.bf16.gmra.mrb[0].mxu0 %v119
    %v363 = vpop.f32.mrb[0].mxu0
    %v364 = vadd.f32 0.0, %v363
    %v365 = vpop.f32.mrb[0].mxu0
    %v366 = vadd.f32 0.0, %v365
    %v367 = vpop.f32.mrb[0].mxu0
    %v368 = vadd.f32 0.0, %v367
    %v369 = vpop.f32.mrb[0].mxu0
    %v370 = vadd.f32 0.0, %v369
    %371 = vmatprep.mubr.bf16.mxu0 0
    %372 = vmatmul.mubr.bf16.gmra.mrb[0].mxu0 %v122
    %v373 = vpop.f32.mrb[0].mxu0
    %v374 = vadd.f32 0.0, %v373
    %v375 = vpop.f32.mrb[0].mxu0
    %v376 = vadd.f32 0.0, %v375
    %v377 = vpop.f32.mrb[0].mxu0
    %v378 = vadd.f32 0.0, %v377
    %v379 = vpop.f32.mrb[0].mxu0
    %v380 = vadd.f32 0.0, %v379
    %381 = vdwg.mxu0
    %v386 = vunpack.c.l.b16 %v55
    %v387 = vunpack.c.h.b16 %v55
    %v388 = vunpack.c.l.b16 %v56
    %v389 = vunpack.c.h.b16 %v56
    %v390 = vunpack.c.l.b16 %v57
    %v391 = vunpack.c.h.b16 %v57
    %v392 = vunpack.c.l.b16 %v58
    %v393 = vunpack.c.h.b16 %v58
    %v394 = vpack.c.b16 %v388, %v386
    %v395 = vpack.c.b16 %v389, %v387
    %v396 = vpack.c.b16 %v392, %v390
    %v397 = vpack.c.b16 %v393, %v391
    %v401 = vsel %vm124, %v396, 0
    %v404 = vsel %vm124, %v397, 0
    %406 = vmatprep.subr.bf16.mxu0 %v395
    %407 = vmatpush1.bf16.msra.mxu0 %v394
    %408 = vmatprep.subr.bf16.mxu0 %v404
    %409 = vmatpush1.bf16.msra.mxu0 %v401
    %410 = vmatprep.subr.bf16.mxu0 0
    %411 = vmatpush1.bf16.msra.mxu0 0
    %412 = vmatprep.subr.bf16.mxu0 0
    %413 = vmatpush1.bf16.msra.mxu0 0
    %414 = vmatprep.subr.bf16.mxu0 0
    %415 = vmatpush1.bf16.msra.mxu0 0
    %416 = vmatprep.subr.bf16.mxu0 0
    %417 = vmatpush1.bf16.msra.mxu0 0
    %418 = vmatprep.subr.bf16.mxu0 0
    %419 = vmatpush1.bf16.msra.mxu0 0
    %420 = vmatprep.subr.bf16.mxu0 0
    %421 = vmatpush1.bf16.msra.mxu0 0
    %422 = vmatprep.subr.bf16.mxu0 0
    %423 = vmatpush1.bf16.msra.mxu0 0
    %424 = vmatprep.subr.bf16.mxu0 0
    %425 = vmatpush1.bf16.msra.mxu0 0
    %426 = vmatprep.subr.bf16.mxu0 0
    %427 = vmatpush1.bf16.msra.mxu0 0
    %428 = vmatprep.subr.bf16.mxu0 0
    %429 = vmatpush1.bf16.msra.mxu0 0
    %430 = vmatprep.subr.bf16.mxu0 0
    %431 = vmatpush1.bf16.msra.mxu0 0
    %432 = vmatprep.subr.bf16.mxu0 0
    %433 = vmatpush1.bf16.msra.mxu0 0
    %434 = vmatprep.subr.bf16.mxu0 0
    %435 = vmatpush1.bf16.msra.mxu0 0
    %436 = vmatprep.subr.bf16.mxu0 0
    %437 = vmatpush1.bf16.msra.mxu0 0
    %438 = vmatprep.mubr.bf16.mxu0 0
    %439 = vmatmul.mubr.bf16.gmra.mrb[0].mxu0 %v213
    %v440 = vpop.f32.mrb[0].mxu0
    %v441 = vadd.f32 %v354, %v440
    %v442 = vpop.f32.mrb[0].mxu0
    %v443 = vadd.f32 %v356, %v442
    %v444 = vpop.f32.mrb[0].mxu0
    %v445 = vadd.f32 %v358, %v444
    %v446 = vpop.f32.mrb[0].mxu0
    %v447 = vadd.f32 %v360, %v446
    %448 = vmatprep.mubr.bf16.mxu0 0
    %449 = vmatmul.mubr.bf16.gmra.mrb[0].mxu0 %v216
    %v450 = vpop.f32.mrb[0].mxu0
    %v451 = vadd.f32 %v364, %v450
    %v452 = vpop.f32.mrb[0].mxu0
    %v453 = vadd.f32 %v366, %v452
    %v454 = vpop.f32.mrb[0].mxu0
    %v455 = vadd.f32 %v368, %v454
    %v456 = vpop.f32.mrb[0].mxu0
    %v457 = vadd.f32 %v370, %v456
    %458 = vmatprep.mubr.bf16.mxu0 0
    %459 = vmatmul.mubr.bf16.gmra.mrb[0].mxu0 %v219
    %v460 = vpop.f32.mrb[0].mxu0
    %v461 = vadd.f32 %v374, %v460
    %v462 = vpop.f32.mrb[0].mxu0
    %v463 = vadd.f32 %v376, %v462
    %v464 = vpop.f32.mrb[0].mxu0
    %v465 = vadd.f32 %v378, %v464
    %v466 = vpop.f32.mrb[0].mxu0
    %v467 = vadd.f32 %v380, %v466
    %468 = vdwg.mxu0
    %v469 = vrot.slane %v40, 2
    %v470 = vrot.slane %v41, 2
    %v471 = vsel %vm124, %v469, %v470
    %v472 = vrot.slane %v42, 2
    %v473 = vsel %vm124, %v470, %v472
    %v474 = vrot.slane %v43, 2
    %v475 = vsel %vm124, %v472, %v474
    %v476 = vrot.slane %v44, 2
    %v477 = vrot.slane %v45, 2
    %v478 = vsel %vm124, %v476, %v477
    %v479 = vrot.slane %v46, 2
    %v480 = vsel %vm124, %v477, %v479
    %v481 = vrot.slane %v47, 2
    %v482 = vsel %vm124, %v479, %v481
    %v489 = vpack.c.bf16 %v473, %v471
    %v490 = vpack.c.bf16 %v478, %v475
    %v491 = vpack.c.bf16 %v482, %v480
    %s492 = scalar_lea.vmem %s1, 64
    %v493 = vld [vmem:[%s492] sm:$0xff]
    %v494 = vld [vmem:[%s492 + $0x8] sm:$0xff]
    %v495 = vld [vmem:[%s492 + $0x10] sm:$0xff]
    %v496 = vld [vmem:[%s492 + $0x18] sm:$0x33]
    %v501 = vunpack.c.l.b16 %v493
    %v502 = vunpack.c.h.b16 %v493
    %v503 = vunpack.c.l.b16 %v494
    %v504 = vunpack.c.h.b16 %v494
    %v505 = vunpack.c.l.b16 %v495
    %v506 = vunpack.c.h.b16 %v495
    %v507 = vunpack.c.l.b16 %v496
    %v508 = vunpack.c.h.b16 %v496
    %v509 = vpack.c.b16 %v503, %v501
    %v510 = vpack.c.b16 %v504, %v502
    %v511 = vpack.c.b16 %v507, %v505
    %v512 = vpack.c.b16 %v508, %v506
    %v516 = vsel %vm114, %v489, 0
    %v519 = vsel %vm114, %v490, 0
    %v522 = vsel %vm114, %v491, 0
    %v525 = vsel %vm124, %v511, 0
    %v528 = vsel %vm124, %v512, 0
    %530 = vmatprep.subr.bf16.mxu0 %v510
    %531 = vmatpush1.bf16.msra.mxu0 %v509
    %532 = vmatprep.subr.bf16.mxu0 %v528
    %533 = vmatpush1.bf16.msra.mxu0 %v525
    %534 = vmatprep.subr.bf16.mxu0 0
    %535 = vmatpush1.bf16.msra.mxu0 0
    %536 = vmatprep.subr.bf16.mxu0 0
    %537 = vmatpush1.bf16.msra.mxu0 0
    %538 = vmatprep.subr.bf16.mxu0 0
    %539 = vmatpush1.bf16.msra.mxu0 0
    %540 = vmatprep.subr.bf16.mxu0 0
    %541 = vmatpush1.bf16.msra.mxu0 0
    %542 = vmatprep.subr.bf16.mxu0 0
    %543 = vmatpush1.bf16.msra.mxu0 0
    %544 = vmatprep.subr.bf16.mxu0 0
    %545 = vmatpush1.bf16.msra.mxu0 0
    %546 = vmatprep.subr.bf16.mxu0 0
    %547 = vmatpush1.bf16.msra.mxu0 0
    %548 = vmatprep.subr.bf16.mxu0 0
    %549 = vmatpush1.bf16.msra.mxu0 0
    %550 = vmatprep.subr.bf16.mxu0 0
    %551 = vmatpush1.bf16.msra.mxu0 0
    %552 = vmatprep.subr.bf16.mxu0 0
    %553 = vmatpush1.bf16.msra.mxu0 0
    %554 = vmatprep.subr.bf16.mxu0 0
    %555 = vmatpush1.bf16.msra.mxu0 0
    %556 = vmatprep.subr.bf16.mxu0 0
    %557 = vmatpush1.bf16.msra.mxu0 0
    %558 = vmatprep.subr.bf16.mxu0 0
    %559 = vmatpush1.bf16.msra.mxu0 0
    %560 = vmatprep.subr.bf16.mxu0 0
    %561 = vmatpush1.bf16.msra.mxu0 0
    %562 = vmatprep.mubr.bf16.mxu0 0
    %563 = vmatmul.mubr.bf16.gmra.mrb[0].mxu0 %v516
    %v564 = vpop.f32.mrb[0].mxu0
    %v565 = vadd.f32 0.0, %v564
    %v566 = vpop.f32.mrb[0].mxu0
    %v567 = vadd.f32 0.0, %v566
    %v568 = vpop.f32.mrb[0].mxu0
    %v569 = vadd.f32 0.0, %v568
    %v570 = vpop.f32.mrb[0].mxu0
    %v571 = vadd.f32 0.0, %v570
    %572 = vmatprep.mubr.bf16.mxu0 0
    %573 = vmatmul.mubr.bf16.gmra.mrb[0].mxu0 %v519
    %v574 = vpop.f32.mrb[0].mxu0
    %v575 = vadd.f32 0.0, %v574
    %v576 = vpop.f32.mrb[0].mxu0
    %v577 = vadd.f32 0.0, %v576
    %v578 = vpop.f32.mrb[0].mxu0
    %v579 = vadd.f32 0.0, %v578
    %v580 = vpop.f32.mrb[0].mxu0
    %v581 = vadd.f32 0.0, %v580
    %582 = vmatprep.mubr.bf16.mxu0 0
    %583 = vmatmul.mubr.bf16.gmra.mrb[0].mxu0 %v522
    %v584 = vpop.f32.mrb[0].mxu0
    %v585 = vadd.f32 0.0, %v584
    %v586 = vpop.f32.mrb[0].mxu0
    %v587 = vadd.f32 0.0, %v586
    %v588 = vpop.f32.mrb[0].mxu0
    %v589 = vadd.f32 0.0, %v588
    %v590 = vpop.f32.mrb[0].mxu0
    %v591 = vadd.f32 0.0, %v590
    %592 = vdwg.mxu0
    %v593 = vadd.f32 %v262, %v565
    %v594 = vadd.f32 %v264, %v567
    %v595 = vadd.f32 %v266, %v569
    %v596 = vadd.f32 %v268, %v571
    %v597 = vadd.f32 %v272, %v575
    %v598 = vadd.f32 %v274, %v577
    %v599 = vadd.f32 %v276, %v579
    %v600 = vadd.f32 %v278, %v581
    %v601 = vadd.f32 %v282, %v585
    %v602 = vadd.f32 %v284, %v587
    %v603 = vadd.f32 %v286, %v589
    %v604 = vadd.f32 %v288, %v591
    %s605 = scalar_lea.vmem %s2, 64
    %v606 = vld [vmem:[%s605] sm:$0xff]
    %v607 = vld [vmem:[%s605 + $0x8] sm:$0xff]
    %v608 = vld [vmem:[%s605 + $0x10] sm:$0xff]
    %v609 = vld [vmem:[%s605 + $0x18] sm:$0x33]
    %v614 = vunpack.c.l.b16 %v606
    %v615 = vunpack.c.h.b16 %v606
    %v616 = vunpack.c.l.b16 %v607
    %v617 = vunpack.c.h.b16 %v607
    %v618 = vunpack.c.l.b16 %v608
    %v619 = vunpack.c.h.b16 %v608
    %v620 = vunpack.c.l.b16 %v609
    %v621 = vunpack.c.h.b16 %v609
    %v622 = vpack.c.b16 %v616, %v614
    %v623 = vpack.c.b16 %v617, %v615
    %v624 = vpack.c.b16 %v620, %v618
    %v625 = vpack.c.b16 %v621, %v619
    %v629 = vsel %vm124, %v624, 0
    %v632 = vsel %vm124, %v625, 0
    %634 = vmatprep.subr.bf16.mxu0 %v623
    %635 = vmatpush1.bf16.msra.mxu0 %v622
    %636 = vmatprep.subr.bf16.mxu0 %v632
    %637 = vmatpush1.bf16.msra.mxu0 %v629
    %638 = vmatprep.subr.bf16.mxu0 0
    %639 = vmatpush1.bf16.msra.mxu0 0
    %640 = vmatprep.subr.bf16.mxu0 0
    %641 = vmatpush1.bf16.msra.mxu0 0
    %642 = vmatprep.subr.bf16.mxu0 0
    %643 = vmatpush1.bf16.msra.mxu0 0
    %644 = vmatprep.subr.bf16.mxu0 0
    %645 = vmatpush1.bf16.msra.mxu0 0
    %646 = vmatprep.subr.bf16.mxu0 0
    %647 = vmatpush1.bf16.msra.mxu0 0
    %648 = vmatprep.subr.bf16.mxu0 0
    %649 = vmatpush1.bf16.msra.mxu0 0
    %650 = vmatprep.subr.bf16.mxu0 0
    %651 = vmatpush1.bf16.msra.mxu0 0
    %652 = vmatprep.subr.bf16.mxu0 0
    %653 = vmatpush1.bf16.msra.mxu0 0
    %654 = vmatprep.subr.bf16.mxu0 0
    %655 = vmatpush1.bf16.msra.mxu0 0
    %656 = vmatprep.subr.bf16.mxu0 0
    %657 = vmatpush1.bf16.msra.mxu0 0
    %658 = vmatprep.subr.bf16.mxu0 0
    %659 = vmatpush1.bf16.msra.mxu0 0
    %660 = vmatprep.subr.bf16.mxu0 0
    %661 = vmatpush1.bf16.msra.mxu0 0
    %662 = vmatprep.subr.bf16.mxu0 0
    %663 = vmatpush1.bf16.msra.mxu0 0
    %664 = vmatprep.subr.bf16.mxu0 0
    %665 = vmatpush1.bf16.msra.mxu0 0
    %666 = vmatprep.mubr.bf16.mxu0 0
    %667 = vmatmul.mubr.bf16.gmra.mrb[0].mxu0 %v516
    %v668 = vpop.f32.mrb[0].mxu0
    %v669 = vadd.f32 0.0, %v668
    %v670 = vpop.f32.mrb[0].mxu0
    %v671 = vadd.f32 0.0, %v670
    %v672 = vpop.f32.mrb[0].mxu0
    %v673 = vadd.f32 0.0, %v672
    %v674 = vpop.f32.mrb[0].mxu0
    %v675 = vadd.f32 0.0, %v674
    %676 = vmatprep.mubr.bf16.mxu0 0
    %677 = vmatmul.mubr.bf16.gmra.mrb[0].mxu0 %v519
    %v678 = vpop.f32.mrb[0].mxu0
    %v679 = vadd.f32 0.0, %v678
    %v680 = vpop.f32.mrb[0].mxu0
    %v681 = vadd.f32 0.0, %v680
    %v682 = vpop.f32.mrb[0].mxu0
    %v683 = vadd.f32 0.0, %v682
    %v684 = vpop.f32.mrb[0].mxu0
    %v685 = vadd.f32 0.0, %v684
    %686 = vmatprep.mubr.bf16.mxu0 0
    %687 = vmatmul.mubr.bf16.gmra.mrb[0].mxu0 %v522
    %v688 = vpop.f32.mrb[0].mxu0
    %v689 = vadd.f32 0.0, %v688
    %v690 = vpop.f32.mrb[0].mxu0
    %v691 = vadd.f32 0.0, %v690
    %v692 = vpop.f32.mrb[0].mxu0
    %v693 = vadd.f32 0.0, %v692
    %v694 = vpop.f32.mrb[0].mxu0
    %v695 = vadd.f32 0.0, %v694
    %696 = vdwg.mxu0
    %v697 = vadd.f32 %v441, %v669
    %v698 = vadd.f32 %v443, %v671
    %v699 = vadd.f32 %v445, %v673
    %v700 = vadd.f32 %v447, %v675
    %v701 = vadd.f32 %v451, %v679
    %v702 = vadd.f32 %v453, %v681
    %v703 = vadd.f32 %v455, %v683
    %v704 = vadd.f32 %v457, %v685
    %v705 = vadd.f32 %v461, %v689
    %v706 = vadd.f32 %v463, %v691
    %v707 = vadd.f32 %v465, %v693
    %v708 = vadd.f32 %v467, %v695
    %vm709 = vcmask 1044480
    %v710 = vrot.slane %v40, 3
    %v711 = vrot.slane %v41, 3
    %v712 = vsel %vm709, %v710, %v711
    %v713 = vrot.slane %v42, 3
    %v714 = vsel %vm709, %v711, %v713
    %v715 = vrot.slane %v43, 3
    %v716 = vsel %vm709, %v713, %v715
    %v717 = vrot.slane %v44, 3
    %v718 = vrot.slane %v45, 3
    %v719 = vsel %vm709, %v717, %v718
    %v720 = vrot.slane %v46, 3
    %v721 = vsel %vm709, %v718, %v720
    %v722 = vrot.slane %v47, 3
    %v723 = vsel %vm709, %v720, %v722
    %v730 = vpack.c.bf16 %v714, %v712
    %v731 = vpack.c.bf16 %v719, %v716
    %v732 = vpack.c.bf16 %v723, %v721
    %s733 = scalar_lea.vmem %s1, 96
    %v734 = vld [vmem:[%s733] sm:$0xff]
    %v735 = vld [vmem:[%s733 + $0x8] sm:$0xff]
    %v736 = vld [vmem:[%s733 + $0x10] sm:$0xff]
    %v737 = vld [vmem:[%s733 + $0x18] sm:$0x33]
    %v742 = vunpack.c.l.b16 %v734
    %v743 = vunpack.c.h.b16 %v734
    %v744 = vunpack.c.l.b16 %v735
    %v745 = vunpack.c.h.b16 %v735
    %v746 = vunpack.c.l.b16 %v736
    %v747 = vunpack.c.h.b16 %v736
    %v748 = vunpack.c.l.b16 %v737
    %v749 = vunpack.c.h.b16 %v737
    %v750 = vpack.c.b16 %v744, %v742
    %v751 = vpack.c.b16 %v745, %v743
    %v752 = vpack.c.b16 %v748, %v746
    %v753 = vpack.c.b16 %v749, %v747
    %v757 = vsel %vm114, %v730, 0
    %v760 = vsel %vm114, %v731, 0
    %v763 = vsel %vm114, %v732, 0
    %v766 = vsel %vm124, %v752, 0
    %v769 = vsel %vm124, %v753, 0
    %771 = vmatprep.subr.bf16.mxu0 %v751
    %772 = vmatpush1.bf16.msra.mxu0 %v750
    %773 = vmatprep.subr.bf16.mxu0 %v769
    %774 = vmatpush1.bf16.msra.mxu0 %v766
    %775 = vmatprep.subr.bf16.mxu0 0
    %776 = vmatpush1.bf16.msra.mxu0 0
    %777 = vmatprep.subr.bf16.mxu0 0
    %778 = vmatpush1.bf16.msra.mxu0 0
    %779 = vmatprep.subr.bf16.mxu0 0
    %780 = vmatpush1.bf16.msra.mxu0 0
    %781 = vmatprep.subr.bf16.mxu0 0
    %782 = vmatpush1.bf16.msra.mxu0 0
    %783 = vmatprep.subr.bf16.mxu0 0
    %784 = vmatpush1.bf16.msra.mxu0 0
    %785 = vmatprep.subr.bf16.mxu0 0
    %786 = vmatpush1.bf16.msra.mxu0 0
    %787 = vmatprep.subr.bf16.mxu0 0
    %788 = vmatpush1.bf16.msra.mxu0 0
    %789 = vmatprep.subr.bf16.mxu0 0
    %790 = vmatpush1.bf16.msra.mxu0 0
    %791 = vmatprep.subr.bf16.mxu0 0
    %792 = vmatpush1.bf16.msra.mxu0 0
    %793 = vmatprep.subr.bf16.mxu0 0
    %794 = vmatpush1.bf16.msra.mxu0 0
    %795 = vmatprep.subr.bf16.mxu0 0
    %796 = vmatpush1.bf16.msra.mxu0 0
    %797 = vmatprep.subr.bf16.mxu0 0
    %798 = vmatpush1.bf16.msra.mxu0 0
    %799 = vmatprep.subr.bf16.mxu0 0
    %800 = vmatpush1.bf16.msra.mxu0 0
    %801 = vmatprep.subr.bf16.mxu0 0
    %802 = vmatpush1.bf16.msra.mxu0 0
    %803 = vmatprep.mubr.bf16.mxu0 0
    %804 = vmatmul.mubr.bf16.gmra.mrb[0].mxu0 %v757
    %v805 = vpop.f32.mrb[0].mxu0
    %v806 = vadd.f32 0.0, %v805
    %v807 = vpop.f32.mrb[0].mxu0
    %v808 = vadd.f32 0.0, %v807
    %v809 = vpop.f32.mrb[0].mxu0
    %v810 = vadd.f32 0.0, %v809
    %v811 = vpop.f32.mrb[0].mxu0
    %v812 = vadd.f32 0.0, %v811
    %813 = vmatprep.mubr.bf16.mxu0 0
    %814 = vmatmul.mubr.bf16.gmra.mrb[0].mxu0 %v760
    %v815 = vpop.f32.mrb[0].mxu0
    %v816 = vadd.f32 0.0, %v815
    %v817 = vpop.f32.mrb[0].mxu0
    %v818 = vadd.f32 0.0, %v817
    %v819 = vpop.f32.mrb[0].mxu0
    %v820 = vadd.f32 0.0, %v819
    %v821 = vpop.f32.mrb[0].mxu0
    %v822 = vadd.f32 0.0, %v821
    %823 = vmatprep.mubr.bf16.mxu0 0
    %824 = vmatmul.mubr.bf16.gmra.mrb[0].mxu0 %v763
    %v825 = vpop.f32.mrb[0].mxu0
    %v826 = vadd.f32 0.0, %v825
    %v827 = vpop.f32.mrb[0].mxu0
    %v828 = vadd.f32 0.0, %v827
    %v829 = vpop.f32.mrb[0].mxu0
    %v830 = vadd.f32 0.0, %v829
    %v831 = vpop.f32.mrb[0].mxu0
    %v832 = vadd.f32 0.0, %v831
    %833 = vdwg.mxu0
    %v834 = vadd.f32 %v593, %v806
    %v835 = vadd.f32 %v594, %v808
    %v836 = vadd.f32 %v595, %v810
    %v837 = vadd.f32 %v596, %v812
    %v838 = vadd.f32 %v597, %v816
    %v839 = vadd.f32 %v598, %v818
    %v840 = vadd.f32 %v599, %v820
    %v841 = vadd.f32 %v600, %v822
    %v842 = vadd.f32 %v601, %v826
    %v843 = vadd.f32 %v602, %v828
    %v844 = vadd.f32 %v603, %v830
    %v845 = vadd.f32 %v604, %v832
    %s846 = scalar_lea.vmem %s2, 96
    %v847 = vld [vmem:[%s846] sm:$0xff]
    %v848 = vld [vmem:[%s846 + $0x8] sm:$0xff]
    %v849 = vld [vmem:[%s846 + $0x10] sm:$0xff]
    %v850 = vld [vmem:[%s846 + $0x18] sm:$0x33]
    %v855 = vunpack.c.l.b16 %v847
    %v856 = vunpack.c.h.b16 %v847
    %v857 = vunpack.c.l.b16 %v848
    %v858 = vunpack.c.h.b16 %v848
    %v859 = vunpack.c.l.b16 %v849
    %v860 = vunpack.c.h.b16 %v849
    %v861 = vunpack.c.l.b16 %v850
    %v862 = vunpack.c.h.b16 %v850
    %v863 = vpack.c.b16 %v857, %v855
    %v864 = vpack.c.b16 %v858, %v856
    %v865 = vpack.c.b16 %v861, %v859
    %v866 = vpack.c.b16 %v862, %v860
    %v870 = vsel %vm124, %v865, 0
    %v873 = vsel %vm124, %v866, 0
    %875 = vmatprep.subr.bf16.mxu0 %v864
    %876 = vmatpush1.bf16.msra.mxu0 %v863
    %877 = vmatprep.subr.bf16.mxu0 %v873
    %878 = vmatpush1.bf16.msra.mxu0 %v870
    %879 = vmatprep.subr.bf16.mxu0 0
    %880 = vmatpush1.bf16.msra.mxu0 0
    %881 = vmatprep.subr.bf16.mxu0 0
    %882 = vmatpush1.bf16.msra.mxu0 0
    %883 = vmatprep.subr.bf16.mxu0 0
    %884 = vmatpush1.bf16.msra.mxu0 0
    %885 = vmatprep.subr.bf16.mxu0 0
    %886 = vmatpush1.bf16.msra.mxu0 0
    %887 = vmatprep.subr.bf16.mxu0 0
    %888 = vmatpush1.bf16.msra.mxu0 0
    %889 = vmatprep.subr.bf16.mxu0 0
    %890 = vmatpush1.bf16.msra.mxu0 0
    %891 = vmatprep.subr.bf16.mxu0 0
    %892 = vmatpush1.bf16.msra.mxu0 0
    %893 = vmatprep.subr.bf16.mxu0 0
    %894 = vmatpush1.bf16.msra.mxu0 0
    %895 = vmatprep.subr.bf16.mxu0 0
    %896 = vmatpush1.bf16.msra.mxu0 0
    %897 = vmatprep.subr.bf16.mxu0 0
    %898 = vmatpush1.bf16.msra.mxu0 0
    %899 = vmatprep.subr.bf16.mxu0 0
    %900 = vmatpush1.bf16.msra.mxu0 0
    %901 = vmatprep.subr.bf16.mxu0 0
    %902 = vmatpush1.bf16.msra.mxu0 0
    %903 = vmatprep.subr.bf16.mxu0 0
    %904 = vmatpush1.bf16.msra.mxu0 0
    %905 = vmatprep.subr.bf16.mxu0 0
    %906 = vmatpush1.bf16.msra.mxu0 0
    %907 = vmatprep.mubr.bf16.mxu0 0
    %908 = vmatmul.mubr.bf16.gmra.mrb[0].mxu0 %v757
    %v909 = vpop.f32.mrb[0].mxu0
    %v910 = vadd.f32 0.0, %v909
    %v911 = vpop.f32.mrb[0].mxu0
    %v912 = vadd.f32 0.0, %v911
    %v913 = vpop.f32.mrb[0].mxu0
    %v914 = vadd.f32 0.0, %v913
    %v915 = vpop.f32.mrb[0].mxu0
    %v916 = vadd.f32 0.0, %v915
    %917 = vmatprep.mubr.bf16.mxu0 0
    %918 = vmatmul.mubr.bf16.gmra.mrb[0].mxu0 %v760
    %v919 = vpop.f32.mrb[0].mxu0
    %v920 = vadd.f32 0.0, %v919
    %v921 = vpop.f32.mrb[0].mxu0
    %v922 = vadd.f32 0.0, %v921
    %v923 = vpop.f32.mrb[0].mxu0
    %v924 = vadd.f32 0.0, %v923
    %v925 = vpop.f32.mrb[0].mxu0
    %v926 = vadd.f32 0.0, %v925
    %927 = vmatprep.mubr.bf16.mxu0 0
    %928 = vmatmul.mubr.bf16.gmra.mrb[0].mxu0 %v763
    %v929 = vpop.f32.mrb[0].mxu0
    %v930 = vadd.f32 0.0, %v929
    %v931 = vpop.f32.mrb[0].mxu0
    %v932 = vadd.f32 0.0, %v931
    %v933 = vpop.f32.mrb[0].mxu0
    %v934 = vadd.f32 0.0, %v933
    %v935 = vpop.f32.mrb[0].mxu0
    %v936 = vadd.f32 0.0, %v935
    %937 = vdwg.mxu0
    %v938 = vadd.f32 %v697, %v910
    %v939 = vadd.f32 %v698, %v912
    %v940 = vadd.f32 %v699, %v914
    %v941 = vadd.f32 %v700, %v916
    %v942 = vadd.f32 %v701, %v920
    %v943 = vadd.f32 %v702, %v922
    %v944 = vadd.f32 %v703, %v924
    %v945 = vadd.f32 %v704, %v926
    %v946 = vadd.f32 %v705, %v930
    %v947 = vadd.f32 %v706, %v932
    %v948 = vadd.f32 %v707, %v934
    %v949 = vadd.f32 %v708, %v936
    %vm950 = vcmask 1043456
    %v951 = vrot.slane %v40, 4
    %v952 = vrot.slane %v41, 4
    %v953 = vsel %vm950, %v951, %v952
    %v954 = vrot.slane %v42, 4
    %v955 = vsel %vm950, %v952, %v954
    %v956 = vrot.slane %v43, 4
    %v957 = vsel %vm950, %v954, %v956
    %v958 = vrot.slane %v44, 4
    %v959 = vrot.slane %v45, 4
    %v960 = vsel %vm950, %v958, %v959
    %v961 = vrot.slane %v46, 4
    %v962 = vsel %vm950, %v959, %v961
    %v963 = vrot.slane %v47, 4
    %v964 = vsel %vm950, %v961, %v963
    %v971 = vpack.c.bf16 %v955, %v953
    %v972 = vpack.c.bf16 %v960, %v957
    %v973 = vpack.c.bf16 %v964, %v962
    %s974 = scalar_lea.vmem %s1, 128
    %v975 = vld [vmem:[%s974] sm:$0xff]
    %v976 = vld [vmem:[%s974 + $0x8] sm:$0xff]
    %v977 = vld [vmem:[%s974 + $0x10] sm:$0xff]
    %v978 = vld [vmem:[%s974 + $0x18] sm:$0x33]
    %v983 = vunpack.c.l.b16 %v975
    %v984 = vunpack.c.h.b16 %v975
    %v985 = vunpack.c.l.b16 %v976
    %v986 = vunpack.c.h.b16 %v976
    %v987 = vunpack.c.l.b16 %v977
    %v988 = vunpack.c.h.b16 %v977
    %v989 = vunpack.c.l.b16 %v978
    %v990 = vunpack.c.h.b16 %v978
    %v991 = vpack.c.b16 %v985, %v983
    %v992 = vpack.c.b16 %v986, %v984
    %v993 = vpack.c.b16 %v989, %v987
    %v994 = vpack.c.b16 %v990, %v988
    %v998 = vsel %vm114, %v971, 0
    %v1001 = vsel %vm114, %v972, 0
    %v1004 = vsel %vm114, %v973, 0
    %v1007 = vsel %vm124, %v993, 0
    %v1010 = vsel %vm124, %v994, 0
    %1012 = vmatprep.subr.bf16.mxu0 %v992
    %1013 = vmatpush1.bf16.msra.mxu0 %v991
    %1014 = vmatprep.subr.bf16.mxu0 %v1010
    %1015 = vmatpush1.bf16.msra.mxu0 %v1007
    %1016 = vmatprep.subr.bf16.mxu0 0
    %1017 = vmatpush1.bf16.msra.mxu0 0
    %1018 = vmatprep.subr.bf16.mxu0 0
    %1019 = vmatpush1.bf16.msra.mxu0 0
    %1020 = vmatprep.subr.bf16.mxu0 0
    %1021 = vmatpush1.bf16.msra.mxu0 0
    %1022 = vmatprep.subr.bf16.mxu0 0
    %1023 = vmatpush1.bf16.msra.mxu0 0
    %1024 = vmatprep.subr.bf16.mxu0 0
    %1025 = vmatpush1.bf16.msra.mxu0 0
    %1026 = vmatprep.subr.bf16.mxu0 0
    %1027 = vmatpush1.bf16.msra.mxu0 0
    %1028 = vmatprep.subr.bf16.mxu0 0
    %1029 = vmatpush1.bf16.msra.mxu0 0
    %1030 = vmatprep.subr.bf16.mxu0 0
    %1031 = vmatpush1.bf16.msra.mxu0 0
    %1032 = vmatprep.subr.bf16.mxu0 0
    %1033 = vmatpush1.bf16.msra.mxu0 0
    %1034 = vmatprep.subr.bf16.mxu0 0
    %1035 = vmatpush1.bf16.msra.mxu0 0
    %1036 = vmatprep.subr.bf16.mxu0 0
    %1037 = vmatpush1.bf16.msra.mxu0 0
    %1038 = vmatprep.subr.bf16.mxu0 0
    %1039 = vmatpush1.bf16.msra.mxu0 0
    %1040 = vmatprep.subr.bf16.mxu0 0
    %1041 = vmatpush1.bf16.msra.mxu0 0
    %1042 = vmatprep.subr.bf16.mxu0 0
    %1043 = vmatpush1.bf16.msra.mxu0 0
    %1044 = vmatprep.mubr.bf16.mxu0 0
    %1045 = vmatmul.mubr.bf16.gmra.mrb[0].mxu0 %v998
    %v1046 = vpop.f32.mrb[0].mxu0
    %v1047 = vadd.f32 0.0, %v1046
    %v1048 = vpop.f32.mrb[0].mxu0
    %v1049 = vadd.f32 0.0, %v1048
    %v1050 = vpop.f32.mrb[0].mxu0
    %v1051 = vadd.f32 0.0, %v1050
    %v1052 = vpop.f32.mrb[0].mxu0
    %v1053 = vadd.f32 0.0, %v1052
    %1054 = vmatprep.mubr.bf16.mxu0 0
    %1055 = vmatmul.mubr.bf16.gmra.mrb[0].mxu0 %v1001
    %v1056 = vpop.f32.mrb[0].mxu0
    %v1057 = vadd.f32 0.0, %v1056
    %v1058 = vpop.f32.mrb[0].mxu0
    %v1059 = vadd.f32 0.0, %v1058
    %v1060 = vpop.f32.mrb[0].mxu0
    %v1061 = vadd.f32 0.0, %v1060
    %v1062 = vpop.f32.mrb[0].mxu0
    %v1063 = vadd.f32 0.0, %v1062
    %1064 = vmatprep.mubr.bf16.mxu0 0
    %1065 = vmatmul.mubr.bf16.gmra.mrb[0].mxu0 %v1004
    %v1066 = vpop.f32.mrb[0].mxu0
    %v1067 = vadd.f32 0.0, %v1066
    %v1068 = vpop.f32.mrb[0].mxu0
    %v1069 = vadd.f32 0.0, %v1068
    %v1070 = vpop.f32.mrb[0].mxu0
    %v1071 = vadd.f32 0.0, %v1070
    %v1072 = vpop.f32.mrb[0].mxu0
    %v1073 = vadd.f32 0.0, %v1072
    %1074 = vdwg.mxu0
    %v1075 = vadd.f32 %v834, %v1047
    %v1076 = vadd.f32 %v835, %v1049
    %v1077 = vadd.f32 %v836, %v1051
    %v1078 = vadd.f32 %v837, %v1053
    %v1079 = vadd.f32 %v838, %v1057
    %v1080 = vadd.f32 %v839, %v1059
    %v1081 = vadd.f32 %v840, %v1061
    %v1082 = vadd.f32 %v841, %v1063
    %v1083 = vadd.f32 %v842, %v1067
    %v1084 = vadd.f32 %v843, %v1069
    %v1085 = vadd.f32 %v844, %v1071
    %v1086 = vadd.f32 %v845, %v1073
    %s1087 = scalar_lea.vmem %s2, 128
    %v1088 = vld [vmem:[%s1087] sm:$0xff]
    %v1089 = vld [vmem:[%s1087 + $0x8] sm:$0xff]
    %v1090 = vld [vmem:[%s1087 + $0x10] sm:$0xff]
    %v1091 = vld [vmem:[%s1087 + $0x18] sm:$0x33]
    %v1096 = vunpack.c.l.b16 %v1088
    %v1097 = vunpack.c.h.b16 %v1088
    %v1098 = vunpack.c.l.b16 %v1089
    %v1099 = vunpack.c.h.b16 %v1089
    %v1100 = vunpack.c.l.b16 %v1090
    %v1101 = vunpack.c.h.b16 %v1090
    %v1102 = vunpack.c.l.b16 %v1091
    %v1103 = vunpack.c.h.b16 %v1091
    %v1104 = vpack.c.b16 %v1098, %v1096
    %v1105 = vpack.c.b16 %v1099, %v1097
    %v1106 = vpack.c.b16 %v1102, %v1100
    %v1107 = vpack.c.b16 %v1103, %v1101
    %v1111 = vsel %vm124, %v1106, 0
    %v1114 = vsel %vm124, %v1107, 0
    %1116 = vmatprep.subr.bf16.mxu0 %v1105
    %1117 = vmatpush1.bf16.msra.mxu0 %v1104
    %1118 = vmatprep.subr.bf16.mxu0 %v1114
    %1119 = vmatpush1.bf16.msra.mxu0 %v1111
    %1120 = vmatprep.subr.bf16.mxu0 0
    %1121 = vmatpush1.bf16.msra.mxu0 0
    %1122 = vmatprep.subr.bf16.mxu0 0
    %1123 = vmatpush1.bf16.msra.mxu0 0
    %1124 = vmatprep.subr.bf16.mxu0 0
    %1125 = vmatpush1.bf16.msra.mxu0 0
    %1126 = vmatprep.subr.bf16.mxu0 0
    %1127 = vmatpush1.bf16.msra.mxu0 0
    %1128 = vmatprep.subr.bf16.mxu0 0
    %1129 = vmatpush1.bf16.msra.mxu0 0
    %1130 = vmatprep.subr.bf16.mxu0 0
    %1131 = vmatpush1.bf16.msra.mxu0 0
    %1132 = vmatprep.subr.bf16.mxu0 0
    %1133 = vmatpush1.bf16.msra.mxu0 0
    %1134 = vmatprep.subr.bf16.mxu0 0
    %1135 = vmatpush1.bf16.msra.mxu0 0
    %1136 = vmatprep.subr.bf16.mxu0 0
    %1137 = vmatpush1.bf16.msra.mxu0 0
    %1138 = vmatprep.subr.bf16.mxu0 0
    %1139 = vmatpush1.bf16.msra.mxu0 0
    %1140 = vmatprep.subr.bf16.mxu0 0
    %1141 = vmatpush1.bf16.msra.mxu0 0
    %1142 = vmatprep.subr.bf16.mxu0 0
    %1143 = vmatpush1.bf16.msra.mxu0 0
    %1144 = vmatprep.subr.bf16.mxu0 0
    %1145 = vmatpush1.bf16.msra.mxu0 0
    %1146 = vmatprep.subr.bf16.mxu0 0
    %1147 = vmatpush1.bf16.msra.mxu0 0
    %1148 = vmatprep.mubr.bf16.mxu0 0
    %1149 = vmatmul.mubr.bf16.gmra.mrb[0].mxu0 %v998
    %v1150 = vpop.f32.mrb[0].mxu0
    %v1151 = vadd.f32 0.0, %v1150
    %v1152 = vpop.f32.mrb[0].mxu0
    %v1153 = vadd.f32 0.0, %v1152
    %v1154 = vpop.f32.mrb[0].mxu0
    %v1155 = vadd.f32 0.0, %v1154
    %v1156 = vpop.f32.mrb[0].mxu0
    %v1157 = vadd.f32 0.0, %v1156
    %1158 = vmatprep.mubr.bf16.mxu0 0
    %1159 = vmatmul.mubr.bf16.gmra.mrb[0].mxu0 %v1001
    %v1160 = vpop.f32.mrb[0].mxu0
    %v1161 = vadd.f32 0.0, %v1160
    %v1162 = vpop.f32.mrb[0].mxu0
    %v1163 = vadd.f32 0.0, %v1162
    %v1164 = vpop.f32.mrb[0].mxu0
    %v1165 = vadd.f32 0.0, %v1164
    %v1166 = vpop.f32.mrb[0].mxu0
    %v1167 = vadd.f32 0.0, %v1166
    %1168 = vmatprep.mubr.bf16.mxu0 0
    %1169 = vmatmul.mubr.bf16.gmra.mrb[0].mxu0 %v1004
    %v1170 = vpop.f32.mrb[0].mxu0
    %v1171 = vadd.f32 0.0, %v1170
    %v1172 = vpop.f32.mrb[0].mxu0
    %v1173 = vadd.f32 0.0, %v1172
    %v1174 = vpop.f32.mrb[0].mxu0
    %v1175 = vadd.f32 0.0, %v1174
    %v1176 = vpop.f32.mrb[0].mxu0
    %v1177 = vadd.f32 0.0, %v1176
    %1178 = vdwg.mxu0
    %v1179 = vadd.f32 %v938, %v1151
    %v1180 = vadd.f32 %v939, %v1153
    %v1181 = vadd.f32 %v940, %v1155
    %v1182 = vadd.f32 %v941, %v1157
    %v1183 = vadd.f32 %v942, %v1161
    %v1184 = vadd.f32 %v943, %v1163
    %v1185 = vadd.f32 %v944, %v1165
    %v1186 = vadd.f32 %v945, %v1167
    %v1187 = vadd.f32 %v946, %v1171
    %v1188 = vadd.f32 %v947, %v1173
    %v1189 = vadd.f32 %v948, %v1175
    %v1190 = vadd.f32 %v949, %v1177
    %v1191 = vmax.f32 %v1075, %v1179
    %v1192 = vmax.f32 %v1076, %v1180
    %v1193 = vmax.f32 %v1077, %v1181
    %v1194 = vmax.f32 %v1078, %v1182
    %v1195 = vmax.f32 %v1079, %v1183
    %v1196 = vmax.f32 %v1080, %v1184
    %v1197 = vmax.f32 %v1081, %v1185
    %v1198 = vmax.f32 %v1082, %v1186
    %v1199 = vmax.f32 %v1083, %v1187
    %v1200 = vmax.f32 %v1084, %v1188
    %v1201 = vmax.f32 %v1085, %v1189
    %v1202 = vmax.f32 %v1086, %v1190
    %v1203 = vld [vmem:[%s3] sm:$0x3]
    %v1205 = vlaneseq
    %v1206 = vshrl.u32 %v1205, 7
    %v1207 = vsub.s32 0, %v1206
    %v1208 = vrot.slane %v1203, %v1207
    %v1209 = vlaneseq
    %v1210 = vshrl.u32 %v1209, 7
    %v1211 = vsub.s32 1, %v1210
    %v1212 = vrot.slane %v1203, %v1211
    %v1215 = vadd.f32 %v1191, %v1208
    %v1216 = vadd.f32 %v1192, %v1212
    %v1217 = vadd.f32 %v1193, %v1208
    %v1218 = vadd.f32 %v1194, %v1212
    %v1219 = vadd.f32 %v1195, %v1208
    %v1220 = vadd.f32 %v1196, %v1212
    %v1221 = vadd.f32 %v1197, %v1208
    %v1222 = vadd.f32 %v1198, %v1212
    %v1223 = vadd.f32 %v1199, %v1208
    %v1224 = vadd.f32 %v1200, %v1212
    %v1225 = vadd.f32 %v1201, %v1208
    %v1226 = vadd.f32 %v1202, %v1212
    %v1227 = vmax.f32 %v1215, 0.0
    %v1228 = vmax.f32 %v1216, 0.0
    %v1229 = vmax.f32 %v1217, 0.0
    %v1230 = vmax.f32 %v1218, 0.0
    %v1231 = vmax.f32 %v1219, 0.0
    %v1232 = vmax.f32 %v1220, 0.0
    %v1233 = vmax.f32 %v1221, 0.0
    %v1234 = vmax.f32 %v1222, 0.0
    %v1235 = vmax.f32 %v1223, 0.0
    %v1236 = vmax.f32 %v1224, 0.0
    %v1237 = vmax.f32 %v1225, 0.0
    %v1238 = vmax.f32 %v1226, 0.0
    %v1251 = vcombine.low %v1227, %v1228
    %v1252 = vcombine.high %v1227, %v1228
    %v1254 = vunpack.c.l.s4 1983009808
    %v1255 = vunpack.c.0.s8 %v1254
    %v1256 = vlaneseq
    %v1257 = vshrl.u32 %v1256, 7
    %v1258 = vsub.s32 %v1255, %v1257
    %v1259 = vrot.slane %v1251, %v1258
    %v1261 = vunpack.c.l.s4 1983009808
    %v1262 = vunpack.c.0.s8 %v1261
    %v1263 = vlaneseq
    %v1264 = vshrl.u32 %v1263, 7
    %v1265 = vsub.s32 %v1262, %v1264
    %v1266 = vrot.slane %v1252, %v1265
    %v1267 = vcombine.high %v1259, %v1259
    %v1268 = vcombine.high %v1266, %v1266
    %v1269 = vcombine.low %v1229, %v1230
    %v1270 = vcombine.high %v1229, %v1230
    %v1272 = vunpack.c.l.s4 1983009808
    %v1273 = vunpack.c.0.s8 %v1272
    %v1274 = vlaneseq
    %v1275 = vshrl.u32 %v1274, 7
    %v1276 = vsub.s32 %v1273, %v1275
    %v1277 = vrot.slane %v1269, %v1276
    %v1279 = vunpack.c.l.s4 1983009808
    %v1280 = vunpack.c.0.s8 %v1279
    %v1281 = vlaneseq
    %v1282 = vshrl.u32 %v1281, 7
    %v1283 = vsub.s32 %v1280, %v1282
    %v1284 = vrot.slane %v1270, %v1283
    %v1285 = vcombine.high %v1277, %v1277
    %v1286 = vcombine.high %v1284, %v1284
    %v1287 = vcombine.low %v1231, %v1232
    %v1288 = vcombine.high %v1231, %v1232
    %v1290 = vunpack.c.l.s4 1983009808
    %v1291 = vunpack.c.0.s8 %v1290
    %v1292 = vlaneseq
    %v1293 = vshrl.u32 %v1292, 7
    %v1294 = vsub.s32 %v1291, %v1293
    %v1295 = vrot.slane %v1287, %v1294
    %v1297 = vunpack.c.l.s4 1983009808
    %v1298 = vunpack.c.0.s8 %v1297
    %v1299 = vlaneseq
    %v1300 = vshrl.u32 %v1299, 7
    %v1301 = vsub.s32 %v1298, %v1300
    %v1302 = vrot.slane %v1288, %v1301
    %v1303 = vcombine.high %v1295, %v1295
    %v1304 = vcombine.high %v1302, %v1302
    %v1305 = vcombine.low %v1233, %v1234
    %v1306 = vcombine.high %v1233, %v1234
    %v1308 = vunpack.c.l.s4 1983009808
    %v1309 = vunpack.c.0.s8 %v1308
    %v1310 = vlaneseq
    %v1311 = vshrl.u32 %v1310, 7
    %v1312 = vsub.s32 %v1309, %v1311
    %v1313 = vrot.slane %v1305, %v1312
    %v1315 = vunpack.c.l.s4 1983009808
    %v1316 = vunpack.c.0.s8 %v1315
    %v1317 = vlaneseq
    %v1318 = vshrl.u32 %v1317, 7
    %v1319 = vsub.s32 %v1316, %v1318
    %v1320 = vrot.slane %v1306, %v1319
    %v1321 = vcombine.high %v1313, %v1313
    %v1322 = vcombine.high %v1320, %v1320
    %v1323 = vcombine.low %v1235, %v1236
    %v1324 = vcombine.high %v1235, %v1236
    %v1326 = vunpack.c.l.s4 1983009808
    %v1327 = vunpack.c.0.s8 %v1326
    %v1328 = vlaneseq
    %v1329 = vshrl.u32 %v1328, 7
    %v1330 = vsub.s32 %v1327, %v1329
    %v1331 = vrot.slane %v1323, %v1330
    %v1333 = vunpack.c.l.s4 1983009808
    %v1334 = vunpack.c.0.s8 %v1333
    %v1335 = vlaneseq
    %v1336 = vshrl.u32 %v1335, 7
    %v1337 = vsub.s32 %v1334, %v1336
    %v1338 = vrot.slane %v1324, %v1337
    %v1339 = vcombine.high %v1331, %v1331
    %v1340 = vcombine.high %v1338, %v1338
    %v1341 = vcombine.low %v1237, %v1238
    %v1342 = vcombine.high %v1237, %v1238
    %v1344 = vunpack.c.l.s4 1983009808
    %v1345 = vunpack.c.0.s8 %v1344
    %v1346 = vlaneseq
    %v1347 = vshrl.u32 %v1346, 7
    %v1348 = vsub.s32 %v1345, %v1347
    %v1349 = vrot.slane %v1341, %v1348
    %v1351 = vunpack.c.l.s4 1983009808
    %v1352 = vunpack.c.0.s8 %v1351
    %v1353 = vlaneseq
    %v1354 = vshrl.u32 %v1353, 7
    %v1355 = vsub.s32 %v1352, %v1354
    %v1356 = vrot.slane %v1342, %v1355
    %v1357 = vcombine.high %v1349, %v1349
    %v1358 = vcombine.high %v1356, %v1356
    %v1383 = vrot.slane %v1259, 7
    %v1384 = vrot.slane %v1383, 2
    %v1385 = vrot.slane %v1267, 7
    %v1386 = vrot.slane %v1385, 2
    %v1387 = vrot.slane %v1266, 7
    %v1388 = vrot.slane %v1387, 2
    %v1389 = vrot.slane %v1268, 7
    %v1390 = vrot.slane %v1389, 2
    %v1391 = vrot.slane %v1277, 7
    %v1392 = vrot.slane %v1391, 2
    %v1393 = vrot.slane %v1285, 7
    %v1394 = vrot.slane %v1393, 2
    %v1395 = vrot.slane %v1284, 7
    %v1396 = vrot.slane %v1395, 2
    %v1397 = vrot.slane %v1286, 7
    %v1398 = vrot.slane %v1397, 2
    %v1399 = vrot.slane %v1295, 7
    %v1400 = vrot.slane %v1399, 2
    %v1401 = vrot.slane %v1303, 7
    %v1402 = vrot.slane %v1401, 2
    %v1403 = vrot.slane %v1302, 7
    %v1404 = vrot.slane %v1403, 2
    %v1405 = vrot.slane %v1304, 7
    %v1406 = vrot.slane %v1405, 2
    %v1407 = vrot.slane %v1313, 7
    %v1408 = vrot.slane %v1407, 2
    %v1409 = vrot.slane %v1321, 7
    %v1410 = vrot.slane %v1409, 2
    %v1411 = vrot.slane %v1320, 7
    %v1412 = vrot.slane %v1411, 2
    %v1413 = vrot.slane %v1322, 7
    %v1414 = vrot.slane %v1413, 2
    %v1415 = vrot.slane %v1331, 7
    %v1416 = vrot.slane %v1415, 2
    %v1417 = vrot.slane %v1339, 7
    %v1418 = vrot.slane %v1417, 2
    %v1419 = vrot.slane %v1338, 7
    %v1420 = vrot.slane %v1419, 2
    %v1421 = vrot.slane %v1340, 7
    %v1422 = vrot.slane %v1421, 2
    %v1423 = vrot.slane %v1349, 7
    %v1424 = vrot.slane %v1423, 2
    %v1425 = vrot.slane %v1357, 7
    %v1426 = vrot.slane %v1425, 2
    %v1427 = vrot.slane %v1356, 7
    %v1428 = vrot.slane %v1427, 2
    %v1429 = vrot.slane %v1358, 7
    %v1430 = vrot.slane %v1429, 2
    %v1455 = vmax.f32 %v1259, %v1384
    %v1456 = vmax.f32 %v1267, %v1386
    %v1457 = vmax.f32 %v1266, %v1388
    %v1458 = vmax.f32 %v1268, %v1390
    %v1459 = vmax.f32 %v1277, %v1392
    %v1460 = vmax.f32 %v1285, %v1394
    %v1461 = vmax.f32 %v1284, %v1396
    %v1462 = vmax.f32 %v1286, %v1398
    %v1463 = vmax.f32 %v1295, %v1400
    %v1464 = vmax.f32 %v1303, %v1402
    %v1465 = vmax.f32 %v1302, %v1404
    %v1466 = vmax.f32 %v1304, %v1406
    %v1467 = vmax.f32 %v1313, %v1408
    %v1468 = vmax.f32 %v1321, %v1410
    %v1469 = vmax.f32 %v1320, %v1412
    %v1470 = vmax.f32 %v1322, %v1414
    %v1471 = vmax.f32 %v1331, %v1416
    %v1472 = vmax.f32 %v1339, %v1418
    %v1473 = vmax.f32 %v1338, %v1420
    %v1474 = vmax.f32 %v1340, %v1422
    %v1475 = vmax.f32 %v1349, %v1424
    %v1476 = vmax.f32 %v1357, %v1426
    %v1477 = vmax.f32 %v1356, %v1428
    %v1478 = vmax.f32 %v1358, %v1430
    %v1495 = vlaneseq
    %v1496 = vshrl.u32 %v1495, 7
    %v1497 = vsub.s32 0, %v1496
    %v1498 = vrot.slane %v1455, %v1497
    %v1499 = vlaneseq
    %v1500 = vshrl.u32 %v1499, 7
    %v1501 = vsub.s32 2, %v1500
    %v1502 = vrot.slane %v1455, %v1501
    %v1503 = vlaneseq
    %v1504 = vshrl.u32 %v1503, 7
    %v1505 = vsub.s32 0, %v1504
    %v1506 = vrot.slane %v1456, %v1505
    %v1507 = vlaneseq
    %v1508 = vshrl.u32 %v1507, 7
    %v1509 = vsub.s32 2, %v1508
    %v1510 = vrot.slane %v1456, %v1509
    %v1511 = vlaneseq
    %v1512 = vshrl.u32 %v1511, 7
    %v1513 = vsub.s32 0, %v1512
    %v1514 = vrot.slane %v1457, %v1513
    %v1515 = vlaneseq
    %v1516 = vshrl.u32 %v1515, 7
    %v1517 = vsub.s32 2, %v1516
    %v1518 = vrot.slane %v1457, %v1517
    %v1519 = vlaneseq
    %v1520 = vshrl.u32 %v1519, 7
    %v1521 = vsub.s32 0, %v1520
    %v1522 = vrot.slane %v1458, %v1521
    %v1523 = vlaneseq
    %v1524 = vshrl.u32 %v1523, 7
    %v1525 = vsub.s32 2, %v1524
    %v1526 = vrot.slane %v1458, %v1525
    %v1527 = vlaneseq
    %v1528 = vshrl.u32 %v1527, 7
    %v1529 = vsub.s32 0, %v1528
    %v1530 = vrot.slane %v1459, %v1529
    %v1531 = vlaneseq
    %v1532 = vshrl.u32 %v1531, 7
    %v1533 = vsub.s32 2, %v1532
    %v1534 = vrot.slane %v1459, %v1533
    %v1535 = vlaneseq
    %v1536 = vshrl.u32 %v1535, 7
    %v1537 = vsub.s32 0, %v1536
    %v1538 = vrot.slane %v1460, %v1537
    %v1539 = vlaneseq
    %v1540 = vshrl.u32 %v1539, 7
    %v1541 = vsub.s32 2, %v1540
    %v1542 = vrot.slane %v1460, %v1541
    %v1543 = vlaneseq
    %v1544 = vshrl.u32 %v1543, 7
    %v1545 = vsub.s32 0, %v1544
    %v1546 = vrot.slane %v1461, %v1545
    %v1547 = vlaneseq
    %v1548 = vshrl.u32 %v1547, 7
    %v1549 = vsub.s32 2, %v1548
    %v1550 = vrot.slane %v1461, %v1549
    %v1551 = vlaneseq
    %v1552 = vshrl.u32 %v1551, 7
    %v1553 = vsub.s32 0, %v1552
    %v1554 = vrot.slane %v1462, %v1553
    %v1555 = vlaneseq
    %v1556 = vshrl.u32 %v1555, 7
    %v1557 = vsub.s32 2, %v1556
    %v1558 = vrot.slane %v1462, %v1557
    %v1559 = vlaneseq
    %v1560 = vshrl.u32 %v1559, 7
    %v1561 = vsub.s32 0, %v1560
    %v1562 = vrot.slane %v1467, %v1561
    %v1563 = vlaneseq
    %v1564 = vshrl.u32 %v1563, 7
    %v1565 = vsub.s32 2, %v1564
    %v1566 = vrot.slane %v1467, %v1565
    %v1567 = vlaneseq
    %v1568 = vshrl.u32 %v1567, 7
    %v1569 = vsub.s32 0, %v1568
    %v1570 = vrot.slane %v1468, %v1569
    %v1571 = vlaneseq
    %v1572 = vshrl.u32 %v1571, 7
    %v1573 = vsub.s32 2, %v1572
    %v1574 = vrot.slane %v1468, %v1573
    %v1575 = vlaneseq
    %v1576 = vshrl.u32 %v1575, 7
    %v1577 = vsub.s32 0, %v1576
    %v1578 = vrot.slane %v1469, %v1577
    %v1579 = vlaneseq
    %v1580 = vshrl.u32 %v1579, 7
    %v1581 = vsub.s32 2, %v1580
    %v1582 = vrot.slane %v1469, %v1581
    %v1583 = vlaneseq
    %v1584 = vshrl.u32 %v1583, 7
    %v1585 = vsub.s32 0, %v1584
    %v1586 = vrot.slane %v1470, %v1585
    %v1587 = vlaneseq
    %v1588 = vshrl.u32 %v1587, 7
    %v1589 = vsub.s32 2, %v1588
    %v1590 = vrot.slane %v1470, %v1589
    %v1591 = vlaneseq
    %v1592 = vshrl.u32 %v1591, 7
    %v1593 = vsub.s32 0, %v1592
    %v1594 = vrot.slane %v1471, %v1593
    %v1595 = vlaneseq
    %v1596 = vshrl.u32 %v1595, 7
    %v1597 = vsub.s32 2, %v1596
    %v1598 = vrot.slane %v1471, %v1597
    %v1599 = vlaneseq
    %v1600 = vshrl.u32 %v1599, 7
    %v1601 = vsub.s32 0, %v1600
    %v1602 = vrot.slane %v1472, %v1601
    %v1603 = vlaneseq
    %v1604 = vshrl.u32 %v1603, 7
    %v1605 = vsub.s32 2, %v1604
    %v1606 = vrot.slane %v1472, %v1605
    %v1607 = vlaneseq
    %v1608 = vshrl.u32 %v1607, 7
    %v1609 = vsub.s32 0, %v1608
    %v1610 = vrot.slane %v1473, %v1609
    %v1611 = vlaneseq
    %v1612 = vshrl.u32 %v1611, 7
    %v1613 = vsub.s32 2, %v1612
    %v1614 = vrot.slane %v1473, %v1613
    %v1615 = vlaneseq
    %v1616 = vshrl.u32 %v1615, 7
    %v1617 = vsub.s32 0, %v1616
    %v1618 = vrot.slane %v1474, %v1617
    %v1619 = vlaneseq
    %v1620 = vshrl.u32 %v1619, 7
    %v1621 = vsub.s32 2, %v1620
    %v1622 = vrot.slane %v1474, %v1621
    %v1655 = vpack.c.bf16 %v1498, %v1498
    %v1656 = vpack.c.bf16 %v1502, %v1502
    %v1657 = vpack.c.bf16 %v1506, %v1506
    %v1658 = vpack.c.bf16 %v1510, %v1510
    %v1659 = vpack.c.bf16 %v1514, %v1514
    %v1660 = vpack.c.bf16 %v1518, %v1518
    %v1661 = vpack.c.bf16 %v1522, %v1522
    %v1662 = vpack.c.bf16 %v1526, %v1526
    %v1663 = vpack.c.bf16 %v1530, %v1530
    %v1664 = vpack.c.bf16 %v1534, %v1534
    %v1665 = vpack.c.bf16 %v1538, %v1538
    %v1666 = vpack.c.bf16 %v1542, %v1542
    %v1667 = vpack.c.bf16 %v1546, %v1546
    %v1668 = vpack.c.bf16 %v1550, %v1550
    %v1669 = vpack.c.bf16 %v1554, %v1554
    %v1670 = vpack.c.bf16 %v1558, %v1558
    %v1671 = vpack.c.bf16 %v1562, %v1562
    %v1672 = vpack.c.bf16 %v1566, %v1566
    %v1673 = vpack.c.bf16 %v1570, %v1570
    %v1674 = vpack.c.bf16 %v1574, %v1574
    %v1675 = vpack.c.bf16 %v1578, %v1578
    %v1676 = vpack.c.bf16 %v1582, %v1582
    %v1677 = vpack.c.bf16 %v1586, %v1586
    %v1678 = vpack.c.bf16 %v1590, %v1590
    %v1679 = vpack.c.bf16 %v1594, %v1594
    %v1680 = vpack.c.bf16 %v1598, %v1598
    %v1681 = vpack.c.bf16 %v1602, %v1602
    %v1682 = vpack.c.bf16 %v1606, %v1606
    %v1683 = vpack.c.bf16 %v1610, %v1610
    %v1684 = vpack.c.bf16 %v1614, %v1614
    %v1685 = vpack.c.bf16 %v1618, %v1618
    %v1686 = vpack.c.bf16 %v1622, %v1622
    %v1687 = vld [vmem:[%s4] sm:$0xff]
    %v1688 = vld [vmem:[%s4 + $0x8] sm:$0xff]
    %v1689 = vld [vmem:[%s4 + $0x10] sm:$0xff]
    %v1690 = vld [vmem:[%s4 + $0x18] sm:$0xff]
    %v1691 = vld [vmem:[%s4 + $0x20] sm:$0xff]
    %v1692 = vld [vmem:[%s4 + $0x28] sm:$0xff]
    %v1693 = vld [vmem:[%s4 + $0x30] sm:$0xff]
    %v1694 = vld [vmem:[%s4 + $0x38] sm:$0xff]
    %v1695 = vld [vmem:[%s4 + $0x40] sm:$0xff]
    %v1696 = vld [vmem:[%s4 + $0x48] sm:$0xff]
    %v1697 = vld [vmem:[%s4 + $0x50] sm:$0xff]
    %v1698 = vld [vmem:[%s4 + $0x58] sm:$0xff]
    %v1699 = vld [vmem:[%s4 + $0x60] sm:$0xff]
    %v1700 = vld [vmem:[%s4 + $0x68] sm:$0xff]
    %v1701 = vld [vmem:[%s4 + $0x70] sm:$0xff]
    %v1702 = vld [vmem:[%s4 + $0x78] sm:$0xff]
    %v1703 = vld [vmem:[%s4 + $0x80] sm:$0xff]
    %v1704 = vld [vmem:[%s4 + $0x88] sm:$0xff]
    %v1705 = vld [vmem:[%s4 + $0x90] sm:$0xff]
    %v1706 = vld [vmem:[%s4 + $0x98] sm:$0xff]
    %v1707 = vld [vmem:[%s4 + $0xa0] sm:$0xff]
    %v1708 = vld [vmem:[%s4 + $0xa8] sm:$0xff]
    %v1709 = vld [vmem:[%s4 + $0xb0] sm:$0xff]
    %v1710 = vld [vmem:[%s4 + $0xb8] sm:$0xff]
    %v1711 = vld [vmem:[%s5] sm:$0xff]
    %v1712 = vld [vmem:[%s5 + $0x8] sm:$0xff]
    %v1713 = vld [vmem:[%s5 + $0x10] sm:$0xff]
    %v1714 = vld [vmem:[%s5 + $0x18] sm:$0xff]
    %v1715 = vld [vmem:[%s5 + $0x20] sm:$0xff]
    %v1716 = vld [vmem:[%s5 + $0x28] sm:$0xff]
    %v1717 = vld [vmem:[%s5 + $0x30] sm:$0xff]
    %v1718 = vld [vmem:[%s5 + $0x38] sm:$0xff]
    %v1719 = vld [vmem:[%s5 + $0x40] sm:$0xff]
    %v1720 = vld [vmem:[%s5 + $0x48] sm:$0xff]
    %v1721 = vld [vmem:[%s5 + $0x50] sm:$0xff]
    %v1722 = vld [vmem:[%s5 + $0x58] sm:$0xff]
    %v1723 = vld [vmem:[%s5 + $0x60] sm:$0xff]
    %v1724 = vld [vmem:[%s5 + $0x68] sm:$0xff]
    %v1725 = vld [vmem:[%s5 + $0x70] sm:$0xff]
    %v1726 = vld [vmem:[%s5 + $0x78] sm:$0xff]
    %v1727 = vld [vmem:[%s5 + $0x80] sm:$0xff]
    %v1728 = vld [vmem:[%s5 + $0x88] sm:$0xff]
    %v1729 = vld [vmem:[%s5 + $0x90] sm:$0xff]
    %v1730 = vld [vmem:[%s5 + $0x98] sm:$0xff]
    %v1731 = vld [vmem:[%s5 + $0xa0] sm:$0xff]
    %v1732 = vld [vmem:[%s5 + $0xa8] sm:$0xff]
    %v1733 = vld [vmem:[%s5 + $0xb0] sm:$0xff]
    %v1734 = vld [vmem:[%s5 + $0xb8] sm:$0xff]
    %v1737 = vlaneseq
    %v1738 = vshrl.u32 %v1737, 7
    %v1739 = vsub.s32 0, %v1738
    %v1740 = vrot.slane %v1463, %v1739
    %v1741 = vlaneseq
    %v1742 = vshrl.u32 %v1741, 7
    %v1743 = vsub.s32 2, %v1742
    %v1744 = vrot.slane %v1463, %v1743
    %v1745 = vlaneseq
    %v1746 = vshrl.u32 %v1745, 7
    %v1747 = vsub.s32 0, %v1746
    %v1748 = vrot.slane %v1475, %v1747
    %v1749 = vlaneseq
    %v1750 = vshrl.u32 %v1749, 7
    %v1751 = vsub.s32 2, %v1750
    %v1752 = vrot.slane %v1475, %v1751
    %v1757 = vpack.c.bf16 %v1740, %v1740
    %v1758 = vpack.c.bf16 %v1744, %v1744
    %v1759 = vpack.c.bf16 %v1748, %v1748
    %v1760 = vpack.c.bf16 %v1752, %v1752
    %s1761 = scalar_lea.vmem %s4, 192
    %v1762 = vld [vmem:[%s1761] sm:$0xff]
    %v1763 = vld [vmem:[%s1761 + $0x8] sm:$0xff]
    %v1764 = vld [vmem:[%s1761 + $0x10] sm:$0xff]
    %v1765 = vld [vmem:[%s1761 + $0x18] sm:$0xff]
    %v1766 = vld [vmem:[%s1761 + $0x20] sm:$0xff]
    %v1767 = vld [vmem:[%s1761 + $0x28] sm:$0xff]
    %v1768 = vld [vmem:[%s1761 + $0x30] sm:$0xff]
    %v1769 = vld [vmem:[%s1761 + $0x38] sm:$0xff]
    %v1770 = vld [vmem:[%s1761 + $0x40] sm:$0xff]
    %v1771 = vld [vmem:[%s1761 + $0x48] sm:$0xff]
    %v1772 = vld [vmem:[%s1761 + $0x50] sm:$0xff]
    %v1773 = vld [vmem:[%s1761 + $0x58] sm:$0xff]
    %v1774 = vld [vmem:[%s1761 + $0x60] sm:$0xff]
    %v1775 = vld [vmem:[%s1761 + $0x68] sm:$0xff]
    %v1776 = vld [vmem:[%s1761 + $0x70] sm:$0xff]
    %v1777 = vld [vmem:[%s1761 + $0x78] sm:$0xff]
    %v1778 = vld [vmem:[%s1761 + $0x80] sm:$0xff]
    %v1779 = vld [vmem:[%s1761 + $0x88] sm:$0xff]
    %v1780 = vld [vmem:[%s1761 + $0x90] sm:$0xff]
    %v1781 = vld [vmem:[%s1761 + $0x98] sm:$0xff]
    %v1782 = vld [vmem:[%s1761 + $0xa0] sm:$0xff]
    %v1783 = vld [vmem:[%s1761 + $0xa8] sm:$0xff]
    %v1784 = vld [vmem:[%s1761 + $0xb0] sm:$0xff]
    %v1785 = vld [vmem:[%s1761 + $0xb8] sm:$0xff]
    %v1818 = vunpack.c.l.b16 %v1657
    %v1819 = vunpack.c.l.b16 %v1658
    %v1820 = vunpack.c.l.b16 %v1659
    %v1821 = vunpack.c.l.b16 %v1660
    %v1822 = vunpack.c.l.b16 %v1661
    %v1823 = vunpack.c.l.b16 %v1662
    %v1824 = vunpack.c.l.b16 %v1663
    %v1825 = vunpack.c.l.b16 %v1664
    %v1826 = vunpack.c.l.b16 %v1665
    %v1827 = vunpack.c.l.b16 %v1666
    %v1828 = vunpack.c.l.b16 %v1667
    %v1829 = vunpack.c.l.b16 %v1668
    %v1830 = vunpack.c.l.b16 %v1669
    %v1831 = vunpack.c.l.b16 %v1670
    %v1832 = vunpack.c.l.b16 %v1757
    %v1833 = vunpack.c.l.b16 %v1758
    %v1834 = vunpack.c.l.b16 %v1673
    %v1835 = vunpack.c.l.b16 %v1674
    %v1836 = vunpack.c.l.b16 %v1675
    %v1837 = vunpack.c.l.b16 %v1676
    %v1838 = vunpack.c.l.b16 %v1677
    %v1839 = vunpack.c.l.b16 %v1678
    %v1840 = vunpack.c.l.b16 %v1679
    %v1841 = vunpack.c.l.b16 %v1680
    %v1842 = vunpack.c.l.b16 %v1681
    %v1843 = vunpack.c.l.b16 %v1682
    %v1844 = vunpack.c.l.b16 %v1683
    %v1845 = vunpack.c.l.b16 %v1684
    %v1846 = vunpack.c.l.b16 %v1685
    %v1847 = vunpack.c.l.b16 %v1686
    %v1848 = vunpack.c.l.b16 %v1759
    %v1849 = vunpack.c.l.b16 %v1760
    %v1850 = vrot.slane %v1820, 7
    %vm1851 = vcmask 1041409
    %v1852 = vsel %vm1851, %v1850, %v1818
    %v1853 = vrot.slane %v1822, 6
    %vm1854 = vcmask 1042434
    %v1855 = vsel %vm1854, %v1853, %v1852
    %v1856 = vrot.slane %v1824, 5
    %vm1857 = vcmask 1043459
    %v1858 = vsel %vm1857, %v1856, %v1855
    %v1859 = vrot.slane %v1826, 4
    %vm1860 = vcmask 1044484
    %v1861 = vsel %vm1860, %v1859, %v1858
    %v1862 = vrot.slane %v1828, 3
    %vm1863 = vcmask 1045509
    %v1864 = vsel %vm1863, %v1862, %v1861
    %v1865 = vrot.slane %v1830, 2
    %vm1866 = vcmask 1046534
    %v1867 = vsel %vm1866, %v1865, %v1864
    %v1868 = vrot.slane %v1832, 1
    %vm1869 = vcmask 1047559
    %v1870 = vsel %vm1869, %v1868, %v1867
    %v1871 = vrot.slane %v1821, 7
    %v1872 = vsel %vm1851, %v1871, %v1819
    %v1873 = vrot.slane %v1823, 6
    %v1874 = vsel %vm1854, %v1873, %v1872
    %v1875 = vrot.slane %v1825, 5
    %v1876 = vsel %vm1857, %v1875, %v1874
    %v1877 = vrot.slane %v1827, 4
    %v1878 = vsel %vm1860, %v1877, %v1876
    %v1879 = vrot.slane %v1829, 3
    %v1880 = vsel %vm1863, %v1879, %v1878
    %v1881 = vrot.slane %v1831, 2
    %v1882 = vsel %vm1866, %v1881, %v1880
    %v1883 = vrot.slane %v1833, 1
    %v1884 = vsel %vm1869, %v1883, %v1882
    %v1885 = vrot.slane %v1836, 7
    %v1886 = vsel %vm1851, %v1885, %v1834
    %v1887 = vrot.slane %v1838, 6
    %v1888 = vsel %vm1854, %v1887, %v1886
    %v1889 = vrot.slane %v1840, 5
    %v1890 = vsel %vm1857, %v1889, %v1888
    %v1891 = vrot.slane %v1842, 4
    %v1892 = vsel %vm1860, %v1891, %v1890
    %v1893 = vrot.slane %v1844, 3
    %v1894 = vsel %vm1863, %v1893, %v1892
    %v1895 = vrot.slane %v1846, 2
    %v1896 = vsel %vm1866, %v1895, %v1894
    %v1897 = vrot.slane %v1848, 1
    %v1898 = vsel %vm1869, %v1897, %v1896
    %v1899 = vrot.slane %v1837, 7
    %v1900 = vsel %vm1851, %v1899, %v1835
    %v1901 = vrot.slane %v1839, 6
    %v1902 = vsel %vm1854, %v1901, %v1900
    %v1903 = vrot.slane %v1841, 5
    %v1904 = vsel %vm1857, %v1903, %v1902
    %v1905 = vrot.slane %v1843, 4
    %v1906 = vsel %vm1860, %v1905, %v1904
    %v1907 = vrot.slane %v1845, 3
    %v1908 = vsel %vm1863, %v1907, %v1906
    %v1909 = vrot.slane %v1847, 2
    %v1910 = vsel %vm1866, %v1909, %v1908
    %v1911 = vrot.slane %v1849, 1
    %v1912 = vsel %vm1869, %v1911, %v1910
    %v1913 = vpack.c.b16 %v1898, %v1870
    %v1914 = vpack.c.b16 %v1912, %v1884
    %v1940 = vunpack.c.l.b16 %v1762
    %v1941 = vunpack.c.h.b16 %v1762
    %v1942 = vunpack.c.l.b16 %v1763
    %v1943 = vunpack.c.h.b16 %v1763
    %v1944 = vunpack.c.l.b16 %v1764
    %v1945 = vunpack.c.h.b16 %v1764
    %v1946 = vunpack.c.l.b16 %v1765
    %v1947 = vunpack.c.h.b16 %v1765
    %v1948 = vunpack.c.l.b16 %v1766
    %v1949 = vunpack.c.h.b16 %v1766
    %v1950 = vunpack.c.l.b16 %v1767
    %v1951 = vunpack.c.h.b16 %v1767
    %v1952 = vunpack.c.l.b16 %v1768
    %v1953 = vunpack.c.h.b16 %v1768
    %v1954 = vunpack.c.l.b16 %v1769
    %v1955 = vunpack.c.h.b16 %v1769
    %v1956 = vunpack.c.l.b16 %v1770
    %v1957 = vunpack.c.h.b16 %v1770
    %v1958 = vunpack.c.l.b16 %v1771
    %v1959 = vunpack.c.h.b16 %v1771
    %v1960 = vunpack.c.l.b16 %v1772
    %v1961 = vunpack.c.h.b16 %v1772
    %v1962 = vunpack.c.l.b16 %v1773
    %v1963 = vunpack.c.h.b16 %v1773
    %v1964 = vunpack.c.l.b16 %v1774
    %v1965 = vunpack.c.h.b16 %v1774
    %v1966 = vunpack.c.l.b16 %v1775
    %v1967 = vunpack.c.h.b16 %v1775
    %v1968 = vunpack.c.l.b16 %v1776
    %v1969 = vunpack.c.h.b16 %v1776
    %v1970 = vunpack.c.l.b16 %v1777
    %v1971 = vunpack.c.h.b16 %v1777
    %v1972 = vunpack.c.l.b16 %v1778
    %v1973 = vunpack.c.h.b16 %v1778
    %v1974 = vunpack.c.l.b16 %v1779
    %v1975 = vunpack.c.h.b16 %v1779
    %v1976 = vunpack.c.l.b16 %v1780
    %v1977 = vunpack.c.h.b16 %v1780
    %v1978 = vunpack.c.l.b16 %v1781
    %v1979 = vunpack.c.h.b16 %v1781
    %v1980 = vunpack.c.l.b16 %v1782
    %v1981 = vunpack.c.h.b16 %v1782
    %v1982 = vunpack.c.l.b16 %v1783
    %v1983 = vunpack.c.h.b16 %v1783
    %v1984 = vunpack.c.l.b16 %v1784
    %v1985 = vunpack.c.h.b16 %v1784
    %v1986 = vunpack.c.l.b16 %v1785
    %v1987 = vunpack.c.h.b16 %v1785
    %v1988 = vpack.c.b16 %v1942, %v1940
    %v1989 = vpack.c.b16 %v1943, %v1941
    %v1990 = vpack.c.b16 %v1946, %v1944
    %v1991 = vpack.c.b16 %v1947, %v1945
    %v1992 = vpack.c.b16 %v1950, %v1948
    %v1993 = vpack.c.b16 %v1951, %v1949
    %v1994 = vpack.c.b16 %v1954, %v1952
    %v1995 = vpack.c.b16 %v1955, %v1953
    %v1996 = vpack.c.b16 %v1958, %v1956
    %v1997 = vpack.c.b16 %v1959, %v1957
    %v1998 = vpack.c.b16 %v1962, %v1960
    %v1999 = vpack.c.b16 %v1963, %v1961
    %v2000 = vpack.c.b16 %v1966, %v1964
    %v2001 = vpack.c.b16 %v1967, %v1965
    %v2002 = vpack.c.b16 %v1970, %v1968
    %v2003 = vpack.c.b16 %v1971, %v1969
    %v2004 = vpack.c.b16 %v1974, %v1972
    %v2005 = vpack.c.b16 %v1975, %v1973
    %v2006 = vpack.c.b16 %v1978, %v1976
    %v2007 = vpack.c.b16 %v1979, %v1977
    %v2008 = vpack.c.b16 %v1982, %v1980
    %v2009 = vpack.c.b16 %v1983, %v1981
    %v2010 = vpack.c.b16 %v1986, %v1984
    %v2011 = vpack.c.b16 %v1987, %v1985
    %vm2036 = vcmask 523264
    %v2038 = vsel %vm2036, %v1914, 0
    %2040 = vmatprep.subr.bf16.mxu0 %v1989
    %2041 = vmatpush1.bf16.msra.mxu0 %v1988
    %2042 = vmatprep.subr.bf16.mxu0 %v1991
    %2043 = vmatpush1.bf16.msra.mxu0 %v1990
    %2044 = vmatprep.subr.bf16.mxu0 %v1993
    %2045 = vmatpush1.bf16.msra.mxu0 %v1992
    %2046 = vmatprep.subr.bf16.mxu0 %v1995
    %2047 = vmatpush1.bf16.msra.mxu0 %v1994
    %2048 = vmatprep.subr.bf16.mxu0 %v1997
    %2049 = vmatpush1.bf16.msra.mxu0 %v1996
    %2050 = vmatprep.subr.bf16.mxu0 %v1999
    %2051 = vmatpush1.bf16.msra.mxu0 %v1998
    %2052 = vmatprep.subr.bf16.mxu0 %v2001
    %2053 = vmatpush1.bf16.msra.mxu0 %v2000
    %2054 = vmatprep.subr.bf16.mxu0 %v2003
    %2055 = vmatpush1.bf16.msra.mxu0 %v2002
    %2056 = vmatprep.subr.bf16.mxu0 %v2005
    %2057 = vmatpush1.bf16.msra.mxu0 %v2004
    %2058 = vmatprep.subr.bf16.mxu0 %v2007
    %2059 = vmatpush1.bf16.msra.mxu0 %v2006
    %2060 = vmatprep.subr.bf16.mxu0 %v2009
    %2061 = vmatpush1.bf16.msra.mxu0 %v2008
    %2062 = vmatprep.subr.bf16.mxu0 %v2011
    %2063 = vmatpush1.bf16.msra.mxu0 %v2010
    %2064 = vmatprep.subr.bf16.mxu0 0
    %2065 = vmatpush1.bf16.msra.mxu0 0
    %2066 = vmatprep.subr.bf16.mxu0 0
    %2067 = vmatpush1.bf16.msra.mxu0 0
    %2068 = vmatprep.subr.bf16.mxu0 0
    %2069 = vmatpush1.bf16.msra.mxu0 0
    %2070 = vmatprep.subr.bf16.mxu0 0
    %2071 = vmatpush1.bf16.msra.mxu0 0
    %2072 = vmatprep.mubr.bf16.mxu0 %v2038
    %2073 = vmatmul.mubr.bf16.gmra.mrb[0].mxu0 %v1913
    %v2074 = vpop.f32.mrb[0].mxu0
    %v2075 = vadd.f32 0.0, %v2074
    %v2076 = vpop.f32.mrb[0].mxu0
    %v2077 = vadd.f32 0.0, %v2076
    %v2078 = vpop.f32.mrb[0].mxu0
    %v2079 = vadd.f32 0.0, %v2078
    %v2080 = vpop.f32.mrb[0].mxu0
    %v2081 = vadd.f32 0.0, %v2080
    %2082 = vdwg.mxu0
    %v2087 = vunpack.c.l.b16 %v1655
    %v2088 = vunpack.c.l.b16 %v1656
    %v2089 = vunpack.c.l.b16 %v1671
    %v2090 = vunpack.c.l.b16 %v1672
    %v2091 = vrot.slane %v1818, 7
    %v2092 = vsel %vm1851, %v2091, %v2087
    %v2093 = vrot.slane %v1820, 6
    %v2094 = vsel %vm1854, %v2093, %v2092
    %v2095 = vrot.slane %v1822, 5
    %v2096 = vsel %vm1857, %v2095, %v2094
    %v2097 = vrot.slane %v1824, 4
    %v2098 = vsel %vm1860, %v2097, %v2096
    %v2099 = vrot.slane %v1826, 3
    %v2100 = vsel %vm1863, %v2099, %v2098
    %v2101 = vrot.slane %v1828, 2
    %v2102 = vsel %vm1866, %v2101, %v2100
    %v2103 = vrot.slane %v1830, 1
    %v2104 = vsel %vm1869, %v2103, %v2102
    %v2105 = vrot.slane %v1819, 7
    %v2106 = vsel %vm1851, %v2105, %v2088
    %v2107 = vrot.slane %v1821, 6
    %v2108 = vsel %vm1854, %v2107, %v2106
    %v2109 = vrot.slane %v1823, 5
    %v2110 = vsel %vm1857, %v2109, %v2108
    %v2111 = vrot.slane %v1825, 4
    %v2112 = vsel %vm1860, %v2111, %v2110
    %v2113 = vrot.slane %v1827, 3
    %v2114 = vsel %vm1863, %v2113, %v2112
    %v2115 = vrot.slane %v1829, 2
    %v2116 = vsel %vm1866, %v2115, %v2114
    %v2117 = vrot.slane %v1831, 1
    %v2118 = vsel %vm1869, %v2117, %v2116
    %v2119 = vrot.slane %v1834, 7
    %v2120 = vsel %vm1851, %v2119, %v2089
    %v2121 = vrot.slane %v1836, 6
    %v2122 = vsel %vm1854, %v2121, %v2120
    %v2123 = vrot.slane %v1838, 5
    %v2124 = vsel %vm1857, %v2123, %v2122
    %v2125 = vrot.slane %v1840, 4
    %v2126 = vsel %vm1860, %v2125, %v2124
    %v2127 = vrot.slane %v1842, 3
    %v2128 = vsel %vm1863, %v2127, %v2126
    %v2129 = vrot.slane %v1844, 2
    %v2130 = vsel %vm1866, %v2129, %v2128
    %v2131 = vrot.slane %v1846, 1
    %v2132 = vsel %vm1869, %v2131, %v2130
    %v2133 = vrot.slane %v1835, 7
    %v2134 = vsel %vm1851, %v2133, %v2090
    %v2135 = vrot.slane %v1837, 6
    %v2136 = vsel %vm1854, %v2135, %v2134
    %v2137 = vrot.slane %v1839, 5
    %v2138 = vsel %vm1857, %v2137, %v2136
    %v2139 = vrot.slane %v1841, 4
    %v2140 = vsel %vm1860, %v2139, %v2138
    %v2141 = vrot.slane %v1843, 3
    %v2142 = vsel %vm1863, %v2141, %v2140
    %v2143 = vrot.slane %v1845, 2
    %v2144 = vsel %vm1866, %v2143, %v2142
    %v2145 = vrot.slane %v1847, 1
    %v2146 = vsel %vm1869, %v2145, %v2144
    %v2147 = vpack.c.b16 %v2132, %v2104
    %v2148 = vpack.c.b16 %v2146, %v2118
    %v2174 = vunpack.c.l.b16 %v1687
    %v2175 = vunpack.c.h.b16 %v1687
    %v2176 = vunpack.c.l.b16 %v1688
    %v2177 = vunpack.c.h.b16 %v1688
    %v2178 = vunpack.c.l.b16 %v1689
    %v2179 = vunpack.c.h.b16 %v1689
    %v2180 = vunpack.c.l.b16 %v1690
    %v2181 = vunpack.c.h.b16 %v1690
    %v2182 = vunpack.c.l.b16 %v1691
    %v2183 = vunpack.c.h.b16 %v1691
    %v2184 = vunpack.c.l.b16 %v1692
    %v2185 = vunpack.c.h.b16 %v1692
    %v2186 = vunpack.c.l.b16 %v1693
    %v2187 = vunpack.c.h.b16 %v1693
    %v2188 = vunpack.c.l.b16 %v1694
    %v2189 = vunpack.c.h.b16 %v1694
    %v2190 = vunpack.c.l.b16 %v1695
    %v2191 = vunpack.c.h.b16 %v1695
    %v2192 = vunpack.c.l.b16 %v1696
    %v2193 = vunpack.c.h.b16 %v1696
    %v2194 = vunpack.c.l.b16 %v1697
    %v2195 = vunpack.c.h.b16 %v1697
    %v2196 = vunpack.c.l.b16 %v1698
    %v2197 = vunpack.c.h.b16 %v1698
    %v2198 = vunpack.c.l.b16 %v1699
    %v2199 = vunpack.c.h.b16 %v1699
    %v2200 = vunpack.c.l.b16 %v1700
    %v2201 = vunpack.c.h.b16 %v1700
    %v2202 = vunpack.c.l.b16 %v1701
    %v2203 = vunpack.c.h.b16 %v1701
    %v2204 = vunpack.c.l.b16 %v1702
    %v2205 = vunpack.c.h.b16 %v1702
    %v2206 = vunpack.c.l.b16 %v1703
    %v2207 = vunpack.c.h.b16 %v1703
    %v2208 = vunpack.c.l.b16 %v1704
    %v2209 = vunpack.c.h.b16 %v1704
    %v2210 = vunpack.c.l.b16 %v1705
    %v2211 = vunpack.c.h.b16 %v1705
    %v2212 = vunpack.c.l.b16 %v1706
    %v2213 = vunpack.c.h.b16 %v1706
    %v2214 = vunpack.c.l.b16 %v1707
    %v2215 = vunpack.c.h.b16 %v1707
    %v2216 = vunpack.c.l.b16 %v1708
    %v2217 = vunpack.c.h.b16 %v1708
    %v2218 = vunpack.c.l.b16 %v1709
    %v2219 = vunpack.c.h.b16 %v1709
    %v2220 = vunpack.c.l.b16 %v1710
    %v2221 = vunpack.c.h.b16 %v1710
    %v2222 = vpack.c.b16 %v2176, %v2174
    %v2223 = vpack.c.b16 %v2177, %v2175
    %v2224 = vpack.c.b16 %v2180, %v2178
    %v2225 = vpack.c.b16 %v2181, %v2179
    %v2226 = vpack.c.b16 %v2184, %v2182
    %v2227 = vpack.c.b16 %v2185, %v2183
    %v2228 = vpack.c.b16 %v2188, %v2186
    %v2229 = vpack.c.b16 %v2189, %v2187
    %v2230 = vpack.c.b16 %v2192, %v2190
    %v2231 = vpack.c.b16 %v2193, %v2191
    %v2232 = vpack.c.b16 %v2196, %v2194
    %v2233 = vpack.c.b16 %v2197, %v2195
    %v2234 = vpack.c.b16 %v2200, %v2198
    %v2235 = vpack.c.b16 %v2201, %v2199
    %v2236 = vpack.c.b16 %v2204, %v2202
    %v2237 = vpack.c.b16 %v2205, %v2203
    %v2238 = vpack.c.b16 %v2208, %v2206
    %v2239 = vpack.c.b16 %v2209, %v2207
    %v2240 = vpack.c.b16 %v2212, %v2210
    %v2241 = vpack.c.b16 %v2213, %v2211
    %v2242 = vpack.c.b16 %v2216, %v2214
    %v2243 = vpack.c.b16 %v2217, %v2215
    %v2244 = vpack.c.b16 %v2220, %v2218
    %v2245 = vpack.c.b16 %v2221, %v2219
    %v2271 = vsel %vm2036, %v2148, 0
    %2273 = vmatprep.subr.bf16.mxu0 %v2223
    %2274 = vmatpush1.bf16.msra.mxu0 %v2222
    %2275 = vmatprep.subr.bf16.mxu0 %v2225
    %2276 = vmatpush1.bf16.msra.mxu0 %v2224
    %2277 = vmatprep.subr.bf16.mxu0 %v2227
    %2278 = vmatpush1.bf16.msra.mxu0 %v2226
    %2279 = vmatprep.subr.bf16.mxu0 %v2229
    %2280 = vmatpush1.bf16.msra.mxu0 %v2228
    %2281 = vmatprep.subr.bf16.mxu0 %v2231
    %2282 = vmatpush1.bf16.msra.mxu0 %v2230
    %2283 = vmatprep.subr.bf16.mxu0 %v2233
    %2284 = vmatpush1.bf16.msra.mxu0 %v2232
    %2285 = vmatprep.subr.bf16.mxu0 %v2235
    %2286 = vmatpush1.bf16.msra.mxu0 %v2234
    %2287 = vmatprep.subr.bf16.mxu0 %v2237
    %2288 = vmatpush1.bf16.msra.mxu0 %v2236
    %2289 = vmatprep.subr.bf16.mxu0 %v2239
    %2290 = vmatpush1.bf16.msra.mxu0 %v2238
    %2291 = vmatprep.subr.bf16.mxu0 %v2241
    %2292 = vmatpush1.bf16.msra.mxu0 %v2240
    %2293 = vmatprep.subr.bf16.mxu0 %v2243
    %2294 = vmatpush1.bf16.msra.mxu0 %v2242
    %2295 = vmatprep.subr.bf16.mxu0 %v2245
    %2296 = vmatpush1.bf16.msra.mxu0 %v2244
    %2297 = vmatprep.subr.bf16.mxu0 0
    %2298 = vmatpush1.bf16.msra.mxu0 0
    %2299 = vmatprep.subr.bf16.mxu0 0
    %2300 = vmatpush1.bf16.msra.mxu0 0
    %2301 = vmatprep.subr.bf16.mxu0 0
    %2302 = vmatpush1.bf16.msra.mxu0 0
    %2303 = vmatprep.subr.bf16.mxu0 0
    %2304 = vmatpush1.bf16.msra.mxu0 0
    %2305 = vmatprep.mubr.bf16.mxu0 %v2271
    %2306 = vmatmul.mubr.bf16.gmra.mrb[0].mxu0 %v2147
    %v2307 = vpop.f32.mrb[0].mxu0
    %v2308 = vadd.f32 %v2075, %v2307
    %v2309 = vpop.f32.mrb[0].mxu0
    %v2310 = vadd.f32 %v2077, %v2309
    %v2311 = vpop.f32.mrb[0].mxu0
    %v2312 = vadd.f32 %v2079, %v2311
    %v2313 = vpop.f32.mrb[0].mxu0
    %v2314 = vadd.f32 %v2081, %v2313
    %2315 = vdwg.mxu0
    %s2316 = scalar_lea.vmem %s5, 192
    %v2317 = vld [vmem:[%s2316] sm:$0xff]
    %v2318 = vld [vmem:[%s2316 + $0x8] sm:$0xff]
    %v2319 = vld [vmem:[%s2316 + $0x10] sm:$0xff]
    %v2320 = vld [vmem:[%s2316 + $0x18] sm:$0xff]
    %v2321 = vld [vmem:[%s2316 + $0x20] sm:$0xff]
    %v2322 = vld [vmem:[%s2316 + $0x28] sm:$0xff]
    %v2323 = vld [vmem:[%s2316 + $0x30] sm:$0xff]
    %v2324 = vld [vmem:[%s2316 + $0x38] sm:$0xff]
    %v2325 = vld [vmem:[%s2316 + $0x40] sm:$0xff]
    %v2326 = vld [vmem:[%s2316 + $0x48] sm:$0xff]
    %v2327 = vld [vmem:[%s2316 + $0x50] sm:$0xff]
    %v2328 = vld [vmem:[%s2316 + $0x58] sm:$0xff]
    %v2329 = vld [vmem:[%s2316 + $0x60] sm:$0xff]
    %v2330 = vld [vmem:[%s2316 + $0x68] sm:$0xff]
    %v2331 = vld [vmem:[%s2316 + $0x70] sm:$0xff]
    %v2332 = vld [vmem:[%s2316 + $0x78] sm:$0xff]
    %v2333 = vld [vmem:[%s2316 + $0x80] sm:$0xff]
    %v2334 = vld [vmem:[%s2316 + $0x88] sm:$0xff]
    %v2335 = vld [vmem:[%s2316 + $0x90] sm:$0xff]
    %v2336 = vld [vmem:[%s2316 + $0x98] sm:$0xff]
    %v2337 = vld [vmem:[%s2316 + $0xa0] sm:$0xff]
    %v2338 = vld [vmem:[%s2316 + $0xa8] sm:$0xff]
    %v2339 = vld [vmem:[%s2316 + $0xb0] sm:$0xff]
    %v2340 = vld [vmem:[%s2316 + $0xb8] sm:$0xff]
    %v2365 = vunpack.c.l.b16 %v2317
    %v2366 = vunpack.c.h.b16 %v2317
    %v2367 = vunpack.c.l.b16 %v2318
    %v2368 = vunpack.c.h.b16 %v2318
    %v2369 = vunpack.c.l.b16 %v2319
    %v2370 = vunpack.c.h.b16 %v2319
    %v2371 = vunpack.c.l.b16 %v2320
    %v2372 = vunpack.c.h.b16 %v2320
    %v2373 = vunpack.c.l.b16 %v2321
    %v2374 = vunpack.c.h.b16 %v2321
    %v2375 = vunpack.c.l.b16 %v2322
    %v2376 = vunpack.c.h.b16 %v2322
    %v2377 = vunpack.c.l.b16 %v2323
    %v2378 = vunpack.c.h.b16 %v2323
    %v2379 = vunpack.c.l.b16 %v2324
    %v2380 = vunpack.c.h.b16 %v2324
    %v2381 = vunpack.c.l.b16 %v2325
    %v2382 = vunpack.c.h.b16 %v2325
    %v2383 = vunpack.c.l.b16 %v2326
    %v2384 = vunpack.c.h.b16 %v2326
    %v2385 = vunpack.c.l.b16 %v2327
    %v2386 = vunpack.c.h.b16 %v2327
    %v2387 = vunpack.c.l.b16 %v2328
    %v2388 = vunpack.c.h.b16 %v2328
    %v2389 = vunpack.c.l.b16 %v2329
    %v2390 = vunpack.c.h.b16 %v2329
    %v2391 = vunpack.c.l.b16 %v2330
    %v2392 = vunpack.c.h.b16 %v2330
    %v2393 = vunpack.c.l.b16 %v2331
    %v2394 = vunpack.c.h.b16 %v2331
    %v2395 = vunpack.c.l.b16 %v2332
    %v2396 = vunpack.c.h.b16 %v2332
    %v2397 = vunpack.c.l.b16 %v2333
    %v2398 = vunpack.c.h.b16 %v2333
    %v2399 = vunpack.c.l.b16 %v2334
    %v2400 = vunpack.c.h.b16 %v2334
    %v2401 = vunpack.c.l.b16 %v2335
    %v2402 = vunpack.c.h.b16 %v2335
    %v2403 = vunpack.c.l.b16 %v2336
    %v2404 = vunpack.c.h.b16 %v2336
    %v2405 = vunpack.c.l.b16 %v2337
    %v2406 = vunpack.c.h.b16 %v2337
    %v2407 = vunpack.c.l.b16 %v2338
    %v2408 = vunpack.c.h.b16 %v2338
    %v2409 = vunpack.c.l.b16 %v2339
    %v2410 = vunpack.c.h.b16 %v2339
    %v2411 = vunpack.c.l.b16 %v2340
    %v2412 = vunpack.c.h.b16 %v2340
    %v2413 = vpack.c.b16 %v2367, %v2365
    %v2414 = vpack.c.b16 %v2368, %v2366
    %v2415 = vpack.c.b16 %v2371, %v2369
    %v2416 = vpack.c.b16 %v2372, %v2370
    %v2417 = vpack.c.b16 %v2375, %v2373
    %v2418 = vpack.c.b16 %v2376, %v2374
    %v2419 = vpack.c.b16 %v2379, %v2377
    %v2420 = vpack.c.b16 %v2380, %v2378
    %v2421 = vpack.c.b16 %v2383, %v2381
    %v2422 = vpack.c.b16 %v2384, %v2382
    %v2423 = vpack.c.b16 %v2387, %v2385
    %v2424 = vpack.c.b16 %v2388, %v2386
    %v2425 = vpack.c.b16 %v2391, %v2389
    %v2426 = vpack.c.b16 %v2392, %v2390
    %v2427 = vpack.c.b16 %v2395, %v2393
    %v2428 = vpack.c.b16 %v2396, %v2394
    %v2429 = vpack.c.b16 %v2399, %v2397
    %v2430 = vpack.c.b16 %v2400, %v2398
    %v2431 = vpack.c.b16 %v2403, %v2401
    %v2432 = vpack.c.b16 %v2404, %v2402
    %v2433 = vpack.c.b16 %v2407, %v2405
    %v2434 = vpack.c.b16 %v2408, %v2406
    %v2435 = vpack.c.b16 %v2411, %v2409
    %v2436 = vpack.c.b16 %v2412, %v2410
    %2461 = vmatprep.subr.bf16.mxu0 %v2414
    %2462 = vmatpush1.bf16.msra.mxu0 %v2413
    %2463 = vmatprep.subr.bf16.mxu0 %v2416
    %2464 = vmatpush1.bf16.msra.mxu0 %v2415
    %2465 = vmatprep.subr.bf16.mxu0 %v2418
    %2466 = vmatpush1.bf16.msra.mxu0 %v2417
    %2467 = vmatprep.subr.bf16.mxu0 %v2420
    %2468 = vmatpush1.bf16.msra.mxu0 %v2419
    %2469 = vmatprep.subr.bf16.mxu0 %v2422
    %2470 = vmatpush1.bf16.msra.mxu0 %v2421
    %2471 = vmatprep.subr.bf16.mxu0 %v2424
    %2472 = vmatpush1.bf16.msra.mxu0 %v2423
    %2473 = vmatprep.subr.bf16.mxu0 %v2426
    %2474 = vmatpush1.bf16.msra.mxu0 %v2425
    %2475 = vmatprep.subr.bf16.mxu0 %v2428
    %2476 = vmatpush1.bf16.msra.mxu0 %v2427
    %2477 = vmatprep.subr.bf16.mxu0 %v2430
    %2478 = vmatpush1.bf16.msra.mxu0 %v2429
    %2479 = vmatprep.subr.bf16.mxu0 %v2432
    %2480 = vmatpush1.bf16.msra.mxu0 %v2431
    %2481 = vmatprep.subr.bf16.mxu0 %v2434
    %2482 = vmatpush1.bf16.msra.mxu0 %v2433
    %2483 = vmatprep.subr.bf16.mxu0 %v2436
    %2484 = vmatpush1.bf16.msra.mxu0 %v2435
    %2485 = vmatprep.subr.bf16.mxu0 0
    %2486 = vmatpush1.bf16.msra.mxu0 0
    %2487 = vmatprep.subr.bf16.mxu0 0
    %2488 = vmatpush1.bf16.msra.mxu0 0
    %2489 = vmatprep.subr.bf16.mxu0 0
    %2490 = vmatpush1.bf16.msra.mxu0 0
    %2491 = vmatprep.subr.bf16.mxu0 0
    %2492 = vmatpush1.bf16.msra.mxu0 0
    %2493 = vmatprep.mubr.bf16.mxu0 %v2038
    %2494 = vmatmul.mubr.bf16.gmra.mrb[0].mxu0 %v1913
    %v2495 = vpop.f32.mrb[0].mxu0
    %v2496 = vadd.f32 0.0, %v2495
    %v2497 = vpop.f32.mrb[0].mxu0
    %v2498 = vadd.f32 0.0, %v2497
    %v2499 = vpop.f32.mrb[0].mxu0
    %v2500 = vadd.f32 0.0, %v2499
    %v2501 = vpop.f32.mrb[0].mxu0
    %v2502 = vadd.f32 0.0, %v2501
    %2503 = vdwg.mxu0
    %v2528 = vunpack.c.l.b16 %v1711
    %v2529 = vunpack.c.h.b16 %v1711
    %v2530 = vunpack.c.l.b16 %v1712
    %v2531 = vunpack.c.h.b16 %v1712
    %v2532 = vunpack.c.l.b16 %v1713
    %v2533 = vunpack.c.h.b16 %v1713
    %v2534 = vunpack.c.l.b16 %v1714
    %v2535 = vunpack.c.h.b16 %v1714
    %v2536 = vunpack.c.l.b16 %v1715
    %v2537 = vunpack.c.h.b16 %v1715
    %v2538 = vunpack.c.l.b16 %v1716
    %v2539 = vunpack.c.h.b16 %v1716
    %v2540 = vunpack.c.l.b16 %v1717
    %v2541 = vunpack.c.h.b16 %v1717
    %v2542 = vunpack.c.l.b16 %v1718
    %v2543 = vunpack.c.h.b16 %v1718
    %v2544 = vunpack.c.l.b16 %v1719
    %v2545 = vunpack.c.h.b16 %v1719
    %v2546 = vunpack.c.l.b16 %v1720
    %v2547 = vunpack.c.h.b16 %v1720
    %v2548 = vunpack.c.l.b16 %v1721
    %v2549 = vunpack.c.h.b16 %v1721
    %v2550 = vunpack.c.l.b16 %v1722
    %v2551 = vunpack.c.h.b16 %v1722
    %v2552 = vunpack.c.l.b16 %v1723
    %v2553 = vunpack.c.h.b16 %v1723
    %v2554 = vunpack.c.l.b16 %v1724
    %v2555 = vunpack.c.h.b16 %v1724
    %v2556 = vunpack.c.l.b16 %v1725
    %v2557 = vunpack.c.h.b16 %v1725
    %v2558 = vunpack.c.l.b16 %v1726
    %v2559 = vunpack.c.h.b16 %v1726
    %v2560 = vunpack.c.l.b16 %v1727
    %v2561 = vunpack.c.h.b16 %v1727
    %v2562 = vunpack.c.l.b16 %v1728
    %v2563 = vunpack.c.h.b16 %v1728
    %v2564 = vunpack.c.l.b16 %v1729
    %v2565 = vunpack.c.h.b16 %v1729
    %v2566 = vunpack.c.l.b16 %v1730
    %v2567 = vunpack.c.h.b16 %v1730
    %v2568 = vunpack.c.l.b16 %v1731
    %v2569 = vunpack.c.h.b16 %v1731
    %v2570 = vunpack.c.l.b16 %v1732
    %v2571 = vunpack.c.h.b16 %v1732
    %v2572 = vunpack.c.l.b16 %v1733
    %v2573 = vunpack.c.h.b16 %v1733
    %v2574 = vunpack.c.l.b16 %v1734
    %v2575 = vunpack.c.h.b16 %v1734
    %v2576 = vpack.c.b16 %v2530, %v2528
    %v2577 = vpack.c.b16 %v2531, %v2529
    %v2578 = vpack.c.b16 %v2534, %v2532
    %v2579 = vpack.c.b16 %v2535, %v2533
    %v2580 = vpack.c.b16 %v2538, %v2536
    %v2581 = vpack.c.b16 %v2539, %v2537
    %v2582 = vpack.c.b16 %v2542, %v2540
    %v2583 = vpack.c.b16 %v2543, %v2541
    %v2584 = vpack.c.b16 %v2546, %v2544
    %v2585 = vpack.c.b16 %v2547, %v2545
    %v2586 = vpack.c.b16 %v2550, %v2548
    %v2587 = vpack.c.b16 %v2551, %v2549
    %v2588 = vpack.c.b16 %v2554, %v2552
    %v2589 = vpack.c.b16 %v2555, %v2553
    %v2590 = vpack.c.b16 %v2558, %v2556
    %v2591 = vpack.c.b16 %v2559, %v2557
    %v2592 = vpack.c.b16 %v2562, %v2560
    %v2593 = vpack.c.b16 %v2563, %v2561
    %v2594 = vpack.c.b16 %v2566, %v2564
    %v2595 = vpack.c.b16 %v2567, %v2565
    %v2596 = vpack.c.b16 %v2570, %v2568
    %v2597 = vpack.c.b16 %v2571, %v2569
    %v2598 = vpack.c.b16 %v2574, %v2572
    %v2599 = vpack.c.b16 %v2575, %v2573
    %2624 = vmatprep.subr.bf16.mxu0 %v2577
    %2625 = vmatpush1.bf16.msra.mxu0 %v2576
    %2626 = vmatprep.subr.bf16.mxu0 %v2579
    %2627 = vmatpush1.bf16.msra.mxu0 %v2578
    %2628 = vmatprep.subr.bf16.mxu0 %v2581
    %2629 = vmatpush1.bf16.msra.mxu0 %v2580
    %2630 = vmatprep.subr.bf16.mxu0 %v2583
    %2631 = vmatpush1.bf16.msra.mxu0 %v2582
    %2632 = vmatprep.subr.bf16.mxu0 %v2585
    %2633 = vmatpush1.bf16.msra.mxu0 %v2584
    %2634 = vmatprep.subr.bf16.mxu0 %v2587
    %2635 = vmatpush1.bf16.msra.mxu0 %v2586
    %2636 = vmatprep.subr.bf16.mxu0 %v2589
    %2637 = vmatpush1.bf16.msra.mxu0 %v2588
    %2638 = vmatprep.subr.bf16.mxu0 %v2591
    %2639 = vmatpush1.bf16.msra.mxu0 %v2590
    %2640 = vmatprep.subr.bf16.mxu0 %v2593
    %2641 = vmatpush1.bf16.msra.mxu0 %v2592
    %2642 = vmatprep.subr.bf16.mxu0 %v2595
    %2643 = vmatpush1.bf16.msra.mxu0 %v2594
    %2644 = vmatprep.subr.bf16.mxu0 %v2597
    %2645 = vmatpush1.bf16.msra.mxu0 %v2596
    %2646 = vmatprep.subr.bf16.mxu0 %v2599
    %2647 = vmatpush1.bf16.msra.mxu0 %v2598
    %2648 = vmatprep.subr.bf16.mxu0 0
    %2649 = vmatpush1.bf16.msra.mxu0 0
    %2650 = vmatprep.subr.bf16.mxu0 0
    %2651 = vmatpush1.bf16.msra.mxu0 0
    %2652 = vmatprep.subr.bf16.mxu0 0
    %2653 = vmatpush1.bf16.msra.mxu0 0
    %2654 = vmatprep.subr.bf16.mxu0 0
    %2655 = vmatpush1.bf16.msra.mxu0 0
    %2656 = vmatprep.mubr.bf16.mxu0 %v2271
    %2657 = vmatmul.mubr.bf16.gmra.mrb[0].mxu0 %v2147
    %v2658 = vpop.f32.mrb[0].mxu0
    %v2659 = vadd.f32 %v2496, %v2658
    %v2660 = vpop.f32.mrb[0].mxu0
    %v2661 = vadd.f32 %v2498, %v2660
    %v2662 = vpop.f32.mrb[0].mxu0
    %v2663 = vadd.f32 %v2500, %v2662
    %v2664 = vpop.f32.mrb[0].mxu0
    %v2665 = vadd.f32 %v2502, %v2664
    %2666 = vdwg.mxu0
    %v2669 = vlaneseq
    %v2670 = vshrl.u32 %v2669, 7
    %v2671 = vsub.s32 0, %v2670
    %v2672 = vrot.slane %v1464, %v2671
    %v2673 = vlaneseq
    %v2674 = vshrl.u32 %v2673, 7
    %v2675 = vsub.s32 2, %v2674
    %v2676 = vrot.slane %v1464, %v2675
    %v2677 = vlaneseq
    %v2678 = vshrl.u32 %v2677, 7
    %v2679 = vsub.s32 0, %v2678
    %v2680 = vrot.slane %v1476, %v2679
    %v2681 = vlaneseq
    %v2682 = vshrl.u32 %v2681, 7
    %v2683 = vsub.s32 2, %v2682
    %v2684 = vrot.slane %v1476, %v2683
    %v2689 = vpack.c.bf16 %v2672, %v2672
    %v2690 = vpack.c.bf16 %v2676, %v2676
    %v2691 = vpack.c.bf16 %v2680, %v2680
    %v2692 = vpack.c.bf16 %v2684, %v2684
    %s2693 = scalar_lea.vmem %s4, 384
    %v2694 = vld [vmem:[%s2693] sm:$0xff]
    %v2695 = vld [vmem:[%s2693 + $0x8] sm:$0xff]
    %v2696 = vld [vmem:[%s2693 + $0x10] sm:$0xff]
    %v2697 = vld [vmem:[%s2693 + $0x18] sm:$0xff]
    %v2698 = vld [vmem:[%s2693 + $0x20] sm:$0xff]
    %v2699 = vld [vmem:[%s2693 + $0x28] sm:$0xff]
    %v2700 = vld [vmem:[%s2693 + $0x30] sm:$0xff]
    %v2701 = vld [vmem:[%s2693 + $0x38] sm:$0xff]
    %v2702 = vld [vmem:[%s2693 + $0x40] sm:$0xff]
    %v2703 = vld [vmem:[%s2693 + $0x48] sm:$0xff]
    %v2704 = vld [vmem:[%s2693 + $0x50] sm:$0xff]
    %v2705 = vld [vmem:[%s2693 + $0x58] sm:$0xff]
    %v2706 = vld [vmem:[%s2693 + $0x60] sm:$0xff]
    %v2707 = vld [vmem:[%s2693 + $0x68] sm:$0xff]
    %v2708 = vld [vmem:[%s2693 + $0x70] sm:$0xff]
    %v2709 = vld [vmem:[%s2693 + $0x78] sm:$0xff]
    %v2710 = vld [vmem:[%s2693 + $0x80] sm:$0xff]
    %v2711 = vld [vmem:[%s2693 + $0x88] sm:$0xff]
    %v2712 = vld [vmem:[%s2693 + $0x90] sm:$0xff]
    %v2713 = vld [vmem:[%s2693 + $0x98] sm:$0xff]
    %v2714 = vld [vmem:[%s2693 + $0xa0] sm:$0xff]
    %v2715 = vld [vmem:[%s2693 + $0xa8] sm:$0xff]
    %v2716 = vld [vmem:[%s2693 + $0xb0] sm:$0xff]
    %v2717 = vld [vmem:[%s2693 + $0xb8] sm:$0xff]
    %v2722 = vunpack.c.l.b16 %v2689
    %v2723 = vunpack.c.l.b16 %v2690
    %v2724 = vunpack.c.l.b16 %v2691
    %v2725 = vunpack.c.l.b16 %v2692
    %v2726 = vrot.slane %v1822, 7
    %v2727 = vsel %vm1851, %v2726, %v1820
    %v2728 = vrot.slane %v1824, 6
    %v2729 = vsel %vm1854, %v2728, %v2727
    %v2730 = vrot.slane %v1826, 5
    %v2731 = vsel %vm1857, %v2730, %v2729
    %v2732 = vrot.slane %v1828, 4
    %v2733 = vsel %vm1860, %v2732, %v2731
    %v2734 = vrot.slane %v1830, 3
    %v2735 = vsel %vm1863, %v2734, %v2733
    %v2736 = vrot.slane %v1832, 2
    %v2737 = vsel %vm1866, %v2736, %v2735
    %v2738 = vrot.slane %v2722, 1
    %v2739 = vsel %vm1869, %v2738, %v2737
    %v2740 = vrot.slane %v1823, 7
    %v2741 = vsel %vm1851, %v2740, %v1821
    %v2742 = vrot.slane %v1825, 6
    %v2743 = vsel %vm1854, %v2742, %v2741
    %v2744 = vrot.slane %v1827, 5
    %v2745 = vsel %vm1857, %v2744, %v2743
    %v2746 = vrot.slane %v1829, 4
    %v2747 = vsel %vm1860, %v2746, %v2745
    %v2748 = vrot.slane %v1831, 3
    %v2749 = vsel %vm1863, %v2748, %v2747
    %v2750 = vrot.slane %v1833, 2
    %v2751 = vsel %vm1866, %v2750, %v2749
    %v2752 = vrot.slane %v2723, 1
    %v2753 = vsel %vm1869, %v2752, %v2751
    %v2754 = vrot.slane %v1838, 7
    %v2755 = vsel %vm1851, %v2754, %v1836
    %v2756 = vrot.slane %v1840, 6
    %v2757 = vsel %vm1854, %v2756, %v2755
    %v2758 = vrot.slane %v1842, 5
    %v2759 = vsel %vm1857, %v2758, %v2757
    %v2760 = vrot.slane %v1844, 4
    %v2761 = vsel %vm1860, %v2760, %v2759
    %v2762 = vrot.slane %v1846, 3
    %v2763 = vsel %vm1863, %v2762, %v2761
    %v2764 = vrot.slane %v1848, 2
    %v2765 = vsel %vm1866, %v2764, %v2763
    %v2766 = vrot.slane %v2724, 1
    %v2767 = vsel %vm1869, %v2766, %v2765
    %v2768 = vrot.slane %v1839, 7
    %v2769 = vsel %vm1851, %v2768, %v1837
    %v2770 = vrot.slane %v1841, 6
    %v2771 = vsel %vm1854, %v2770, %v2769
    %v2772 = vrot.slane %v1843, 5
    %v2773 = vsel %vm1857, %v2772, %v2771
    %v2774 = vrot.slane %v1845, 4
    %v2775 = vsel %vm1860, %v2774, %v2773
    %v2776 = vrot.slane %v1847, 3
    %v2777 = vsel %vm1863, %v2776, %v2775
    %v2778 = vrot.slane %v1849, 2
    %v2779 = vsel %vm1866, %v2778, %v2777
    %v2780 = vrot.slane %v2725, 1
    %v2781 = vsel %vm1869, %v2780, %v2779
    %v2782 = vpack.c.b16 %v2767, %v2739
    %v2783 = vpack.c.b16 %v2781, %v2753
    %v2809 = vunpack.c.l.b16 %v2694
    %v2810 = vunpack.c.h.b16 %v2694
    %v2811 = vunpack.c.l.b16 %v2695
    %v2812 = vunpack.c.h.b16 %v2695
    %v2813 = vunpack.c.l.b16 %v2696
    %v2814 = vunpack.c.h.b16 %v2696
    %v2815 = vunpack.c.l.b16 %v2697
    %v2816 = vunpack.c.h.b16 %v2697
    %v2817 = vunpack.c.l.b16 %v2698
    %v2818 = vunpack.c.h.b16 %v2698
    %v2819 = vunpack.c.l.b16 %v2699
    %v2820 = vunpack.c.h.b16 %v2699
    %v2821 = vunpack.c.l.b16 %v2700
    %v2822 = vunpack.c.h.b16 %v2700
    %v2823 = vunpack.c.l.b16 %v2701
    %v2824 = vunpack.c.h.b16 %v2701
    %v2825 = vunpack.c.l.b16 %v2702
    %v2826 = vunpack.c.h.b16 %v2702
    %v2827 = vunpack.c.l.b16 %v2703
    %v2828 = vunpack.c.h.b16 %v2703
    %v2829 = vunpack.c.l.b16 %v2704
    %v2830 = vunpack.c.h.b16 %v2704
    %v2831 = vunpack.c.l.b16 %v2705
    %v2832 = vunpack.c.h.b16 %v2705
    %v2833 = vunpack.c.l.b16 %v2706
    %v2834 = vunpack.c.h.b16 %v2706
    %v2835 = vunpack.c.l.b16 %v2707
    %v2836 = vunpack.c.h.b16 %v2707
    %v2837 = vunpack.c.l.b16 %v2708
    %v2838 = vunpack.c.h.b16 %v2708
    %v2839 = vunpack.c.l.b16 %v2709
    %v2840 = vunpack.c.h.b16 %v2709
    %v2841 = vunpack.c.l.b16 %v2710
    %v2842 = vunpack.c.h.b16 %v2710
    %v2843 = vunpack.c.l.b16 %v2711
    %v2844 = vunpack.c.h.b16 %v2711
    %v2845 = vunpack.c.l.b16 %v2712
    %v2846 = vunpack.c.h.b16 %v2712
    %v2847 = vunpack.c.l.b16 %v2713
    %v2848 = vunpack.c.h.b16 %v2713
    %v2849 = vunpack.c.l.b16 %v2714
    %v2850 = vunpack.c.h.b16 %v2714
    %v2851 = vunpack.c.l.b16 %v2715
    %v2852 = vunpack.c.h.b16 %v2715
    %v2853 = vunpack.c.l.b16 %v2716
    %v2854 = vunpack.c.h.b16 %v2716
    %v2855 = vunpack.c.l.b16 %v2717
    %v2856 = vunpack.c.h.b16 %v2717
    %v2857 = vpack.c.b16 %v2811, %v2809
    %v2858 = vpack.c.b16 %v2812, %v2810
    %v2859 = vpack.c.b16 %v2815, %v2813
    %v2860 = vpack.c.b16 %v2816, %v2814
    %v2861 = vpack.c.b16 %v2819, %v2817
    %v2862 = vpack.c.b16 %v2820, %v2818
    %v2863 = vpack.c.b16 %v2823, %v2821
    %v2864 = vpack.c.b16 %v2824, %v2822
    %v2865 = vpack.c.b16 %v2827, %v2825
    %v2866 = vpack.c.b16 %v2828, %v2826
    %v2867 = vpack.c.b16 %v2831, %v2829
    %v2868 = vpack.c.b16 %v2832, %v2830
    %v2869 = vpack.c.b16 %v2835, %v2833
    %v2870 = vpack.c.b16 %v2836, %v2834
    %v2871 = vpack.c.b16 %v2839, %v2837
    %v2872 = vpack.c.b16 %v2840, %v2838
    %v2873 = vpack.c.b16 %v2843, %v2841
    %v2874 = vpack.c.b16 %v2844, %v2842
    %v2875 = vpack.c.b16 %v2847, %v2845
    %v2876 = vpack.c.b16 %v2848, %v2846
    %v2877 = vpack.c.b16 %v2851, %v2849
    %v2878 = vpack.c.b16 %v2852, %v2850
    %v2879 = vpack.c.b16 %v2855, %v2853
    %v2880 = vpack.c.b16 %v2856, %v2854
    %v2906 = vsel %vm2036, %v2783, 0
    %2908 = vmatprep.subr.bf16.mxu0 %v2858
    %2909 = vmatpush1.bf16.msra.mxu0 %v2857
    %2910 = vmatprep.subr.bf16.mxu0 %v2860
    %2911 = vmatpush1.bf16.msra.mxu0 %v2859
    %2912 = vmatprep.subr.bf16.mxu0 %v2862
    %2913 = vmatpush1.bf16.msra.mxu0 %v2861
    %2914 = vmatprep.subr.bf16.mxu0 %v2864
    %2915 = vmatpush1.bf16.msra.mxu0 %v2863
    %2916 = vmatprep.subr.bf16.mxu0 %v2866
    %2917 = vmatpush1.bf16.msra.mxu0 %v2865
    %2918 = vmatprep.subr.bf16.mxu0 %v2868
    %2919 = vmatpush1.bf16.msra.mxu0 %v2867
    %2920 = vmatprep.subr.bf16.mxu0 %v2870
    %2921 = vmatpush1.bf16.msra.mxu0 %v2869
    %2922 = vmatprep.subr.bf16.mxu0 %v2872
    %2923 = vmatpush1.bf16.msra.mxu0 %v2871
    %2924 = vmatprep.subr.bf16.mxu0 %v2874
    %2925 = vmatpush1.bf16.msra.mxu0 %v2873
    %2926 = vmatprep.subr.bf16.mxu0 %v2876
    %2927 = vmatpush1.bf16.msra.mxu0 %v2875
    %2928 = vmatprep.subr.bf16.mxu0 %v2878
    %2929 = vmatpush1.bf16.msra.mxu0 %v2877
    %2930 = vmatprep.subr.bf16.mxu0 %v2880
    %2931 = vmatpush1.bf16.msra.mxu0 %v2879
    %2932 = vmatprep.subr.bf16.mxu0 0
    %2933 = vmatpush1.bf16.msra.mxu0 0
    %2934 = vmatprep.subr.bf16.mxu0 0
    %2935 = vmatpush1.bf16.msra.mxu0 0
    %2936 = vmatprep.subr.bf16.mxu0 0
    %2937 = vmatpush1.bf16.msra.mxu0 0
    %2938 = vmatprep.subr.bf16.mxu0 0
    %2939 = vmatpush1.bf16.msra.mxu0 0
    %2940 = vmatprep.mubr.bf16.mxu0 %v2906
    %2941 = vmatmul.mubr.bf16.gmra.mrb[0].mxu0 %v2782
    %v2942 = vpop.f32.mrb[0].mxu0
    %v2943 = vadd.f32 0.0, %v2942
    %v2944 = vpop.f32.mrb[0].mxu0
    %v2945 = vadd.f32 0.0, %v2944
    %v2946 = vpop.f32.mrb[0].mxu0
    %v2947 = vadd.f32 0.0, %v2946
    %v2948 = vpop.f32.mrb[0].mxu0
    %v2949 = vadd.f32 0.0, %v2948
    %2950 = vdwg.mxu0
    %v2951 = vadd.f32 %v2308, %v2943
    %v2952 = vadd.f32 %v2310, %v2945
    %v2953 = vadd.f32 %v2312, %v2947
    %v2954 = vadd.f32 %v2314, %v2949
    %s2955 = scalar_lea.vmem %s5, 384
    %v2956 = vld [vmem:[%s2955] sm:$0xff]
    %v2957 = vld [vmem:[%s2955 + $0x8] sm:$0xff]
    %v2958 = vld [vmem:[%s2955 + $0x10] sm:$0xff]
    %v2959 = vld [vmem:[%s2955 + $0x18] sm:$0xff]
    %v2960 = vld [vmem:[%s2955 + $0x20] sm:$0xff]
    %v2961 = vld [vmem:[%s2955 + $0x28] sm:$0xff]
    %v2962 = vld [vmem:[%s2955 + $0x30] sm:$0xff]
    %v2963 = vld [vmem:[%s2955 + $0x38] sm:$0xff]
    %v2964 = vld [vmem:[%s2955 + $0x40] sm:$0xff]
    %v2965 = vld [vmem:[%s2955 + $0x48] sm:$0xff]
    %v2966 = vld [vmem:[%s2955 + $0x50] sm:$0xff]
    %v2967 = vld [vmem:[%s2955 + $0x58] sm:$0xff]
    %v2968 = vld [vmem:[%s2955 + $0x60] sm:$0xff]
    %v2969 = vld [vmem:[%s2955 + $0x68] sm:$0xff]
    %v2970 = vld [vmem:[%s2955 + $0x70] sm:$0xff]
    %v2971 = vld [vmem:[%s2955 + $0x78] sm:$0xff]
    %v2972 = vld [vmem:[%s2955 + $0x80] sm:$0xff]
    %v2973 = vld [vmem:[%s2955 + $0x88] sm:$0xff]
    %v2974 = vld [vmem:[%s2955 + $0x90] sm:$0xff]
    %v2975 = vld [vmem:[%s2955 + $0x98] sm:$0xff]
    %v2976 = vld [vmem:[%s2955 + $0xa0] sm:$0xff]
    %v2977 = vld [vmem:[%s2955 + $0xa8] sm:$0xff]
    %v2978 = vld [vmem:[%s2955 + $0xb0] sm:$0xff]
    %v2979 = vld [vmem:[%s2955 + $0xb8] sm:$0xff]
    %v3004 = vunpack.c.l.b16 %v2956
    %v3005 = vunpack.c.h.b16 %v2956
    %v3006 = vunpack.c.l.b16 %v2957
    %v3007 = vunpack.c.h.b16 %v2957
    %v3008 = vunpack.c.l.b16 %v2958
    %v3009 = vunpack.c.h.b16 %v2958
    %v3010 = vunpack.c.l.b16 %v2959
    %v3011 = vunpack.c.h.b16 %v2959
    %v3012 = vunpack.c.l.b16 %v2960
    %v3013 = vunpack.c.h.b16 %v2960
    %v3014 = vunpack.c.l.b16 %v2961
    %v3015 = vunpack.c.h.b16 %v2961
    %v3016 = vunpack.c.l.b16 %v2962
    %v3017 = vunpack.c.h.b16 %v2962
    %v3018 = vunpack.c.l.b16 %v2963
    %v3019 = vunpack.c.h.b16 %v2963
    %v3020 = vunpack.c.l.b16 %v2964
    %v3021 = vunpack.c.h.b16 %v2964
    %v3022 = vunpack.c.l.b16 %v2965
    %v3023 = vunpack.c.h.b16 %v2965
    %v3024 = vunpack.c.l.b16 %v2966
    %v3025 = vunpack.c.h.b16 %v2966
    %v3026 = vunpack.c.l.b16 %v2967
    %v3027 = vunpack.c.h.b16 %v2967
    %v3028 = vunpack.c.l.b16 %v2968
    %v3029 = vunpack.c.h.b16 %v2968
    %v3030 = vunpack.c.l.b16 %v2969
    %v3031 = vunpack.c.h.b16 %v2969
    %v3032 = vunpack.c.l.b16 %v2970
    %v3033 = vunpack.c.h.b16 %v2970
    %v3034 = vunpack.c.l.b16 %v2971
    %v3035 = vunpack.c.h.b16 %v2971
    %v3036 = vunpack.c.l.b16 %v2972
    %v3037 = vunpack.c.h.b16 %v2972
    %v3038 = vunpack.c.l.b16 %v2973
    %v3039 = vunpack.c.h.b16 %v2973
    %v3040 = vunpack.c.l.b16 %v2974
    %v3041 = vunpack.c.h.b16 %v2974
    %v3042 = vunpack.c.l.b16 %v2975
    %v3043 = vunpack.c.h.b16 %v2975
    %v3044 = vunpack.c.l.b16 %v2976
    %v3045 = vunpack.c.h.b16 %v2976
    %v3046 = vunpack.c.l.b16 %v2977
    %v3047 = vunpack.c.h.b16 %v2977
    %v3048 = vunpack.c.l.b16 %v2978
    %v3049 = vunpack.c.h.b16 %v2978
    %v3050 = vunpack.c.l.b16 %v2979
    %v3051 = vunpack.c.h.b16 %v2979
    %v3052 = vpack.c.b16 %v3006, %v3004
    %v3053 = vpack.c.b16 %v3007, %v3005
    %v3054 = vpack.c.b16 %v3010, %v3008
    %v3055 = vpack.c.b16 %v3011, %v3009
    %v3056 = vpack.c.b16 %v3014, %v3012
    %v3057 = vpack.c.b16 %v3015, %v3013
    %v3058 = vpack.c.b16 %v3018, %v3016
    %v3059 = vpack.c.b16 %v3019, %v3017
    %v3060 = vpack.c.b16 %v3022, %v3020
    %v3061 = vpack.c.b16 %v3023, %v3021
    %v3062 = vpack.c.b16 %v3026, %v3024
    %v3063 = vpack.c.b16 %v3027, %v3025
    %v3064 = vpack.c.b16 %v3030, %v3028
    %v3065 = vpack.c.b16 %v3031, %v3029
    %v3066 = vpack.c.b16 %v3034, %v3032
    %v3067 = vpack.c.b16 %v3035, %v3033
    %v3068 = vpack.c.b16 %v3038, %v3036
    %v3069 = vpack.c.b16 %v3039, %v3037
    %v3070 = vpack.c.b16 %v3042, %v3040
    %v3071 = vpack.c.b16 %v3043, %v3041
    %v3072 = vpack.c.b16 %v3046, %v3044
    %v3073 = vpack.c.b16 %v3047, %v3045
    %v3074 = vpack.c.b16 %v3050, %v3048
    %v3075 = vpack.c.b16 %v3051, %v3049
    %3100 = vmatprep.subr.bf16.mxu0 %v3053
    %3101 = vmatpush1.bf16.msra.mxu0 %v3052
    %3102 = vmatprep.subr.bf16.mxu0 %v3055
    %3103 = vmatpush1.bf16.msra.mxu0 %v3054
    %3104 = vmatprep.subr.bf16.mxu0 %v3057
    %3105 = vmatpush1.bf16.msra.mxu0 %v3056
    %3106 = vmatprep.subr.bf16.mxu0 %v3059
    %3107 = vmatpush1.bf16.msra.mxu0 %v3058
    %3108 = vmatprep.subr.bf16.mxu0 %v3061
    %3109 = vmatpush1.bf16.msra.mxu0 %v3060
    %3110 = vmatprep.subr.bf16.mxu0 %v3063
    %3111 = vmatpush1.bf16.msra.mxu0 %v3062
    %3112 = vmatprep.subr.bf16.mxu0 %v3065
    %3113 = vmatpush1.bf16.msra.mxu0 %v3064
    %3114 = vmatprep.subr.bf16.mxu0 %v3067
    %3115 = vmatpush1.bf16.msra.mxu0 %v3066
    %3116 = vmatprep.subr.bf16.mxu0 %v3069
    %3117 = vmatpush1.bf16.msra.mxu0 %v3068
    %3118 = vmatprep.subr.bf16.mxu0 %v3071
    %3119 = vmatpush1.bf16.msra.mxu0 %v3070
    %3120 = vmatprep.subr.bf16.mxu0 %v3073
    %3121 = vmatpush1.bf16.msra.mxu0 %v3072
    %3122 = vmatprep.subr.bf16.mxu0 %v3075
    %3123 = vmatpush1.bf16.msra.mxu0 %v3074
    %3124 = vmatprep.subr.bf16.mxu0 0
    %3125 = vmatpush1.bf16.msra.mxu0 0
    %3126 = vmatprep.subr.bf16.mxu0 0
    %3127 = vmatpush1.bf16.msra.mxu0 0
    %3128 = vmatprep.subr.bf16.mxu0 0
    %3129 = vmatpush1.bf16.msra.mxu0 0
    %3130 = vmatprep.subr.bf16.mxu0 0
    %3131 = vmatpush1.bf16.msra.mxu0 0
    %3132 = vmatprep.mubr.bf16.mxu0 %v2906
    %3133 = vmatmul.mubr.bf16.gmra.mrb[0].mxu0 %v2782
    %v3134 = vpop.f32.mrb[0].mxu0
    %v3135 = vadd.f32 0.0, %v3134
    %v3136 = vpop.f32.mrb[0].mxu0
    %v3137 = vadd.f32 0.0, %v3136
    %v3138 = vpop.f32.mrb[0].mxu0
    %v3139 = vadd.f32 0.0, %v3138
    %v3140 = vpop.f32.mrb[0].mxu0
    %v3141 = vadd.f32 0.0, %v3140
    %3142 = vdwg.mxu0
    %v3143 = vadd.f32 %v2659, %v3135
    %v3144 = vadd.f32 %v2661, %v3137
    %v3145 = vadd.f32 %v2663, %v3139
    %v3146 = vadd.f32 %v2665, %v3141
    %v3149 = vlaneseq
    %v3150 = vshrl.u32 %v3149, 7
    %v3151 = vsub.s32 0, %v3150
    %v3152 = vrot.slane %v1465, %v3151
    %v3153 = vlaneseq
    %v3154 = vshrl.u32 %v3153, 7
    %v3155 = vsub.s32 2, %v3154
    %v3156 = vrot.slane %v1465, %v3155
    %v3157 = vlaneseq
    %v3158 = vshrl.u32 %v3157, 7
    %v3159 = vsub.s32 0, %v3158
    %v3160 = vrot.slane %v1477, %v3159
    %v3161 = vlaneseq
    %v3162 = vshrl.u32 %v3161, 7
    %v3163 = vsub.s32 2, %v3162
    %v3164 = vrot.slane %v1477, %v3163
    %v3169 = vpack.c.bf16 %v3152, %v3152
    %v3170 = vpack.c.bf16 %v3156, %v3156
    %v3171 = vpack.c.bf16 %v3160, %v3160
    %v3172 = vpack.c.bf16 %v3164, %v3164
    %s3173 = scalar_lea.vmem %s4, 576
    %v3174 = vld [vmem:[%s3173] sm:$0xff]
    %v3175 = vld [vmem:[%s3173 + $0x8] sm:$0xff]
    %v3176 = vld [vmem:[%s3173 + $0x10] sm:$0xff]
    %v3177 = vld [vmem:[%s3173 + $0x18] sm:$0xff]
    %v3178 = vld [vmem:[%s3173 + $0x20] sm:$0xff]
    %v3179 = vld [vmem:[%s3173 + $0x28] sm:$0xff]
    %v3180 = vld [vmem:[%s3173 + $0x30] sm:$0xff]
    %v3181 = vld [vmem:[%s3173 + $0x38] sm:$0xff]
    %v3182 = vld [vmem:[%s3173 + $0x40] sm:$0xff]
    %v3183 = vld [vmem:[%s3173 + $0x48] sm:$0xff]
    %v3184 = vld [vmem:[%s3173 + $0x50] sm:$0xff]
    %v3185 = vld [vmem:[%s3173 + $0x58] sm:$0xff]
    %v3186 = vld [vmem:[%s3173 + $0x60] sm:$0xff]
    %v3187 = vld [vmem:[%s3173 + $0x68] sm:$0xff]
    %v3188 = vld [vmem:[%s3173 + $0x70] sm:$0xff]
    %v3189 = vld [vmem:[%s3173 + $0x78] sm:$0xff]
    %v3190 = vld [vmem:[%s3173 + $0x80] sm:$0xff]
    %v3191 = vld [vmem:[%s3173 + $0x88] sm:$0xff]
    %v3192 = vld [vmem:[%s3173 + $0x90] sm:$0xff]
    %v3193 = vld [vmem:[%s3173 + $0x98] sm:$0xff]
    %v3194 = vld [vmem:[%s3173 + $0xa0] sm:$0xff]
    %v3195 = vld [vmem:[%s3173 + $0xa8] sm:$0xff]
    %v3196 = vld [vmem:[%s3173 + $0xb0] sm:$0xff]
    %v3197 = vld [vmem:[%s3173 + $0xb8] sm:$0xff]
    %v3202 = vunpack.c.l.b16 %v3169
    %v3203 = vunpack.c.l.b16 %v3170
    %v3204 = vunpack.c.l.b16 %v3171
    %v3205 = vunpack.c.l.b16 %v3172
    %v3206 = vrot.slane %v1824, 7
    %v3207 = vsel %vm1851, %v3206, %v1822
    %v3208 = vrot.slane %v1826, 6
    %v3209 = vsel %vm1854, %v3208, %v3207
    %v3210 = vrot.slane %v1828, 5
    %v3211 = vsel %vm1857, %v3210, %v3209
    %v3212 = vrot.slane %v1830, 4
    %v3213 = vsel %vm1860, %v3212, %v3211
    %v3214 = vrot.slane %v1832, 3
    %v3215 = vsel %vm1863, %v3214, %v3213
    %v3216 = vrot.slane %v2722, 2
    %v3217 = vsel %vm1866, %v3216, %v3215
    %v3218 = vrot.slane %v3202, 1
    %v3219 = vsel %vm1869, %v3218, %v3217
    %v3220 = vrot.slane %v1825, 7
    %v3221 = vsel %vm1851, %v3220, %v1823
    %v3222 = vrot.slane %v1827, 6
    %v3223 = vsel %vm1854, %v3222, %v3221
    %v3224 = vrot.slane %v1829, 5
    %v3225 = vsel %vm1857, %v3224, %v3223
    %v3226 = vrot.slane %v1831, 4
    %v3227 = vsel %vm1860, %v3226, %v3225
    %v3228 = vrot.slane %v1833, 3
    %v3229 = vsel %vm1863, %v3228, %v3227
    %v3230 = vrot.slane %v2723, 2
    %v3231 = vsel %vm1866, %v3230, %v3229
    %v3232 = vrot.slane %v3203, 1
    %v3233 = vsel %vm1869, %v3232, %v3231
    %v3234 = vrot.slane %v1840, 7
    %v3235 = vsel %vm1851, %v3234, %v1838
    %v3236 = vrot.slane %v1842, 6
    %v3237 = vsel %vm1854, %v3236, %v3235
    %v3238 = vrot.slane %v1844, 5
    %v3239 = vsel %vm1857, %v3238, %v3237
    %v3240 = vrot.slane %v1846, 4
    %v3241 = vsel %vm1860, %v3240, %v3239
    %v3242 = vrot.slane %v1848, 3
    %v3243 = vsel %vm1863, %v3242, %v3241
    %v3244 = vrot.slane %v2724, 2
    %v3245 = vsel %vm1866, %v3244, %v3243
    %v3246 = vrot.slane %v3204, 1
    %v3247 = vsel %vm1869, %v3246, %v3245
    %v3248 = vrot.slane %v1841, 7
    %v3249 = vsel %vm1851, %v3248, %v1839
    %v3250 = vrot.slane %v1843, 6
    %v3251 = vsel %vm1854, %v3250, %v3249
    %v3252 = vrot.slane %v1845, 5
    %v3253 = vsel %vm1857, %v3252, %v3251
    %v3254 = vrot.slane %v1847, 4
    %v3255 = vsel %vm1860, %v3254, %v3253
    %v3256 = vrot.slane %v1849, 3
    %v3257 = vsel %vm1863, %v3256, %v3255
    %v3258 = vrot.slane %v2725, 2
    %v3259 = vsel %vm1866, %v3258, %v3257
    %v3260 = vrot.slane %v3205, 1
    %v3261 = vsel %vm1869, %v3260, %v3259
    %v3262 = vpack.c.b16 %v3247, %v3219
    %v3263 = vpack.c.b16 %v3261, %v3233
    %v3289 = vunpack.c.l.b16 %v3174
    %v3290 = vunpack.c.h.b16 %v3174
    %v3291 = vunpack.c.l.b16 %v3175
    %v3292 = vunpack.c.h.b16 %v3175
    %v3293 = vunpack.c.l.b16 %v3176
    %v3294 = vunpack.c.h.b16 %v3176
    %v3295 = vunpack.c.l.b16 %v3177
    %v3296 = vunpack.c.h.b16 %v3177
    %v3297 = vunpack.c.l.b16 %v3178
    %v3298 = vunpack.c.h.b16 %v3178
    %v3299 = vunpack.c.l.b16 %v3179
    %v3300 = vunpack.c.h.b16 %v3179
    %v3301 = vunpack.c.l.b16 %v3180
    %v3302 = vunpack.c.h.b16 %v3180
    %v3303 = vunpack.c.l.b16 %v3181
    %v3304 = vunpack.c.h.b16 %v3181
    %v3305 = vunpack.c.l.b16 %v3182
    %v3306 = vunpack.c.h.b16 %v3182
    %v3307 = vunpack.c.l.b16 %v3183
    %v3308 = vunpack.c.h.b16 %v3183
    %v3309 = vunpack.c.l.b16 %v3184
    %v3310 = vunpack.c.h.b16 %v3184
    %v3311 = vunpack.c.l.b16 %v3185
    %v3312 = vunpack.c.h.b16 %v3185
    %v3313 = vunpack.c.l.b16 %v3186
    %v3314 = vunpack.c.h.b16 %v3186
    %v3315 = vunpack.c.l.b16 %v3187
    %v3316 = vunpack.c.h.b16 %v3187
    %v3317 = vunpack.c.l.b16 %v3188
    %v3318 = vunpack.c.h.b16 %v3188
    %v3319 = vunpack.c.l.b16 %v3189
    %v3320 = vunpack.c.h.b16 %v3189
    %v3321 = vunpack.c.l.b16 %v3190
    %v3322 = vunpack.c.h.b16 %v3190
    %v3323 = vunpack.c.l.b16 %v3191
    %v3324 = vunpack.c.h.b16 %v3191
    %v3325 = vunpack.c.l.b16 %v3192
    %v3326 = vunpack.c.h.b16 %v3192
    %v3327 = vunpack.c.l.b16 %v3193
    %v3328 = vunpack.c.h.b16 %v3193
    %v3329 = vunpack.c.l.b16 %v3194
    %v3330 = vunpack.c.h.b16 %v3194
    %v3331 = vunpack.c.l.b16 %v3195
    %v3332 = vunpack.c.h.b16 %v3195
    %v3333 = vunpack.c.l.b16 %v3196
    %v3334 = vunpack.c.h.b16 %v3196
    %v3335 = vunpack.c.l.b16 %v3197
    %v3336 = vunpack.c.h.b16 %v3197
    %v3337 = vpack.c.b16 %v3291, %v3289
    %v3338 = vpack.c.b16 %v3292, %v3290
    %v3339 = vpack.c.b16 %v3295, %v3293
    %v3340 = vpack.c.b16 %v3296, %v3294
    %v3341 = vpack.c.b16 %v3299, %v3297
    %v3342 = vpack.c.b16 %v3300, %v3298
    %v3343 = vpack.c.b16 %v3303, %v3301
    %v3344 = vpack.c.b16 %v3304, %v3302
    %v3345 = vpack.c.b16 %v3307, %v3305
    %v3346 = vpack.c.b16 %v3308, %v3306
    %v3347 = vpack.c.b16 %v3311, %v3309
    %v3348 = vpack.c.b16 %v3312, %v3310
    %v3349 = vpack.c.b16 %v3315, %v3313
    %v3350 = vpack.c.b16 %v3316, %v3314
    %v3351 = vpack.c.b16 %v3319, %v3317
    %v3352 = vpack.c.b16 %v3320, %v3318
    %v3353 = vpack.c.b16 %v3323, %v3321
    %v3354 = vpack.c.b16 %v3324, %v3322
    %v3355 = vpack.c.b16 %v3327, %v3325
    %v3356 = vpack.c.b16 %v3328, %v3326
    %v3357 = vpack.c.b16 %v3331, %v3329
    %v3358 = vpack.c.b16 %v3332, %v3330
    %v3359 = vpack.c.b16 %v3335, %v3333
    %v3360 = vpack.c.b16 %v3336, %v3334
    %v3386 = vsel %vm2036, %v3263, 0
    %3388 = vmatprep.subr.bf16.mxu0 %v3338
    %3389 = vmatpush1.bf16.msra.mxu0 %v3337
    %3390 = vmatprep.subr.bf16.mxu0 %v3340
    %3391 = vmatpush1.bf16.msra.mxu0 %v3339
    %3392 = vmatprep.subr.bf16.mxu0 %v3342
    %3393 = vmatpush1.bf16.msra.mxu0 %v3341
    %3394 = vmatprep.subr.bf16.mxu0 %v3344
    %3395 = vmatpush1.bf16.msra.mxu0 %v3343
    %3396 = vmatprep.subr.bf16.mxu0 %v3346
    %3397 = vmatpush1.bf16.msra.mxu0 %v3345
    %3398 = vmatprep.subr.bf16.mxu0 %v3348
    %3399 = vmatpush1.bf16.msra.mxu0 %v3347
    %3400 = vmatprep.subr.bf16.mxu0 %v3350
    %3401 = vmatpush1.bf16.msra.mxu0 %v3349
    %3402 = vmatprep.subr.bf16.mxu0 %v3352
    %3403 = vmatpush1.bf16.msra.mxu0 %v3351
    %3404 = vmatprep.subr.bf16.mxu0 %v3354
    %3405 = vmatpush1.bf16.msra.mxu0 %v3353
    %3406 = vmatprep.subr.bf16.mxu0 %v3356
    %3407 = vmatpush1.bf16.msra.mxu0 %v3355
    %3408 = vmatprep.subr.bf16.mxu0 %v3358
    %3409 = vmatpush1.bf16.msra.mxu0 %v3357
    %3410 = vmatprep.subr.bf16.mxu0 %v3360
    %3411 = vmatpush1.bf16.msra.mxu0 %v3359
    %3412 = vmatprep.subr.bf16.mxu0 0
    %3413 = vmatpush1.bf16.msra.mxu0 0
    %3414 = vmatprep.subr.bf16.mxu0 0
    %3415 = vmatpush1.bf16.msra.mxu0 0
    %3416 = vmatprep.subr.bf16.mxu0 0
    %3417 = vmatpush1.bf16.msra.mxu0 0
    %3418 = vmatprep.subr.bf16.mxu0 0
    %3419 = vmatpush1.bf16.msra.mxu0 0
    %3420 = vmatprep.mubr.bf16.mxu0 %v3386
    %3421 = vmatmul.mubr.bf16.gmra.mrb[0].mxu0 %v3262
    %v3422 = vpop.f32.mrb[0].mxu0
    %v3423 = vadd.f32 0.0, %v3422
    %v3424 = vpop.f32.mrb[0].mxu0
    %v3425 = vadd.f32 0.0, %v3424
    %v3426 = vpop.f32.mrb[0].mxu0
    %v3427 = vadd.f32 0.0, %v3426
    %v3428 = vpop.f32.mrb[0].mxu0
    %v3429 = vadd.f32 0.0, %v3428
    %3430 = vdwg.mxu0
    %v3431 = vadd.f32 %v2951, %v3423
    %v3432 = vadd.f32 %v2952, %v3425
    %v3433 = vadd.f32 %v2953, %v3427
    %v3434 = vadd.f32 %v2954, %v3429
    %s3435 = scalar_lea.vmem %s5, 576
    %v3436 = vld [vmem:[%s3435] sm:$0xff]
    %v3437 = vld [vmem:[%s3435 + $0x8] sm:$0xff]
    %v3438 = vld [vmem:[%s3435 + $0x10] sm:$0xff]
    %v3439 = vld [vmem:[%s3435 + $0x18] sm:$0xff]
    %v3440 = vld [vmem:[%s3435 + $0x20] sm:$0xff]
    %v3441 = vld [vmem:[%s3435 + $0x28] sm:$0xff]
    %v3442 = vld [vmem:[%s3435 + $0x30] sm:$0xff]
    %v3443 = vld [vmem:[%s3435 + $0x38] sm:$0xff]
    %v3444 = vld [vmem:[%s3435 + $0x40] sm:$0xff]
    %v3445 = vld [vmem:[%s3435 + $0x48] sm:$0xff]
    %v3446 = vld [vmem:[%s3435 + $0x50] sm:$0xff]
    %v3447 = vld [vmem:[%s3435 + $0x58] sm:$0xff]
    %v3448 = vld [vmem:[%s3435 + $0x60] sm:$0xff]
    %v3449 = vld [vmem:[%s3435 + $0x68] sm:$0xff]
    %v3450 = vld [vmem:[%s3435 + $0x70] sm:$0xff]
    %v3451 = vld [vmem:[%s3435 + $0x78] sm:$0xff]
    %v3452 = vld [vmem:[%s3435 + $0x80] sm:$0xff]
    %v3453 = vld [vmem:[%s3435 + $0x88] sm:$0xff]
    %v3454 = vld [vmem:[%s3435 + $0x90] sm:$0xff]
    %v3455 = vld [vmem:[%s3435 + $0x98] sm:$0xff]
    %v3456 = vld [vmem:[%s3435 + $0xa0] sm:$0xff]
    %v3457 = vld [vmem:[%s3435 + $0xa8] sm:$0xff]
    %v3458 = vld [vmem:[%s3435 + $0xb0] sm:$0xff]
    %v3459 = vld [vmem:[%s3435 + $0xb8] sm:$0xff]
    %v3484 = vunpack.c.l.b16 %v3436
    %v3485 = vunpack.c.h.b16 %v3436
    %v3486 = vunpack.c.l.b16 %v3437
    %v3487 = vunpack.c.h.b16 %v3437
    %v3488 = vunpack.c.l.b16 %v3438
    %v3489 = vunpack.c.h.b16 %v3438
    %v3490 = vunpack.c.l.b16 %v3439
    %v3491 = vunpack.c.h.b16 %v3439
    %v3492 = vunpack.c.l.b16 %v3440
    %v3493 = vunpack.c.h.b16 %v3440
    %v3494 = vunpack.c.l.b16 %v3441
    %v3495 = vunpack.c.h.b16 %v3441
    %v3496 = vunpack.c.l.b16 %v3442
    %v3497 = vunpack.c.h.b16 %v3442
    %v3498 = vunpack.c.l.b16 %v3443
    %v3499 = vunpack.c.h.b16 %v3443
    %v3500 = vunpack.c.l.b16 %v3444
    %v3501 = vunpack.c.h.b16 %v3444
    %v3502 = vunpack.c.l.b16 %v3445
    %v3503 = vunpack.c.h.b16 %v3445
    %v3504 = vunpack.c.l.b16 %v3446
    %v3505 = vunpack.c.h.b16 %v3446
    %v3506 = vunpack.c.l.b16 %v3447
    %v3507 = vunpack.c.h.b16 %v3447
    %v3508 = vunpack.c.l.b16 %v3448
    %v3509 = vunpack.c.h.b16 %v3448
    %v3510 = vunpack.c.l.b16 %v3449
    %v3511 = vunpack.c.h.b16 %v3449
    %v3512 = vunpack.c.l.b16 %v3450
    %v3513 = vunpack.c.h.b16 %v3450
    %v3514 = vunpack.c.l.b16 %v3451
    %v3515 = vunpack.c.h.b16 %v3451
    %v3516 = vunpack.c.l.b16 %v3452
    %v3517 = vunpack.c.h.b16 %v3452
    %v3518 = vunpack.c.l.b16 %v3453
    %v3519 = vunpack.c.h.b16 %v3453
    %v3520 = vunpack.c.l.b16 %v3454
    %v3521 = vunpack.c.h.b16 %v3454
    %v3522 = vunpack.c.l.b16 %v3455
    %v3523 = vunpack.c.h.b16 %v3455
    %v3524 = vunpack.c.l.b16 %v3456
    %v3525 = vunpack.c.h.b16 %v3456
    %v3526 = vunpack.c.l.b16 %v3457
    %v3527 = vunpack.c.h.b16 %v3457
    %v3528 = vunpack.c.l.b16 %v3458
    %v3529 = vunpack.c.h.b16 %v3458
    %v3530 = vunpack.c.l.b16 %v3459
    %v3531 = vunpack.c.h.b16 %v3459
    %v3532 = vpack.c.b16 %v3486, %v3484
    %v3533 = vpack.c.b16 %v3487, %v3485
    %v3534 = vpack.c.b16 %v3490, %v3488
    %v3535 = vpack.c.b16 %v3491, %v3489
    %v3536 = vpack.c.b16 %v3494, %v3492
    %v3537 = vpack.c.b16 %v3495, %v3493
    %v3538 = vpack.c.b16 %v3498, %v3496
    %v3539 = vpack.c.b16 %v3499, %v3497
    %v3540 = vpack.c.b16 %v3502, %v3500
    %v3541 = vpack.c.b16 %v3503, %v3501
    %v3542 = vpack.c.b16 %v3506, %v3504
    %v3543 = vpack.c.b16 %v3507, %v3505
    %v3544 = vpack.c.b16 %v3510, %v3508
    %v3545 = vpack.c.b16 %v3511, %v3509
    %v3546 = vpack.c.b16 %v3514, %v3512
    %v3547 = vpack.c.b16 %v3515, %v3513
    %v3548 = vpack.c.b16 %v3518, %v3516
    %v3549 = vpack.c.b16 %v3519, %v3517
    %v3550 = vpack.c.b16 %v3522, %v3520
    %v3551 = vpack.c.b16 %v3523, %v3521
    %v3552 = vpack.c.b16 %v3526, %v3524
    %v3553 = vpack.c.b16 %v3527, %v3525
    %v3554 = vpack.c.b16 %v3530, %v3528
    %v3555 = vpack.c.b16 %v3531, %v3529
    %3580 = vmatprep.subr.bf16.mxu0 %v3533
    %3581 = vmatpush1.bf16.msra.mxu0 %v3532
    %3582 = vmatprep.subr.bf16.mxu0 %v3535
    %3583 = vmatpush1.bf16.msra.mxu0 %v3534
    %3584 = vmatprep.subr.bf16.mxu0 %v3537
    %3585 = vmatpush1.bf16.msra.mxu0 %v3536
    %3586 = vmatprep.subr.bf16.mxu0 %v3539
    %3587 = vmatpush1.bf16.msra.mxu0 %v3538
    %3588 = vmatprep.subr.bf16.mxu0 %v3541
    %3589 = vmatpush1.bf16.msra.mxu0 %v3540
    %3590 = vmatprep.subr.bf16.mxu0 %v3543
    %3591 = vmatpush1.bf16.msra.mxu0 %v3542
    %3592 = vmatprep.subr.bf16.mxu0 %v3545
    %3593 = vmatpush1.bf16.msra.mxu0 %v3544
    %3594 = vmatprep.subr.bf16.mxu0 %v3547
    %3595 = vmatpush1.bf16.msra.mxu0 %v3546
    %3596 = vmatprep.subr.bf16.mxu0 %v3549
    %3597 = vmatpush1.bf16.msra.mxu0 %v3548
    %3598 = vmatprep.subr.bf16.mxu0 %v3551
    %3599 = vmatpush1.bf16.msra.mxu0 %v3550
    %3600 = vmatprep.subr.bf16.mxu0 %v3553
    %3601 = vmatpush1.bf16.msra.mxu0 %v3552
    %3602 = vmatprep.subr.bf16.mxu0 %v3555
    %3603 = vmatpush1.bf16.msra.mxu0 %v3554
    %3604 = vmatprep.subr.bf16.mxu0 0
    %3605 = vmatpush1.bf16.msra.mxu0 0
    %3606 = vmatprep.subr.bf16.mxu0 0
    %3607 = vmatpush1.bf16.msra.mxu0 0
    %3608 = vmatprep.subr.bf16.mxu0 0
    %3609 = vmatpush1.bf16.msra.mxu0 0
    %3610 = vmatprep.subr.bf16.mxu0 0
    %3611 = vmatpush1.bf16.msra.mxu0 0
    %3612 = vmatprep.mubr.bf16.mxu0 %v3386
    %3613 = vmatmul.mubr.bf16.gmra.mrb[0].mxu0 %v3262
    %v3614 = vpop.f32.mrb[0].mxu0
    %v3615 = vadd.f32 0.0, %v3614
    %v3616 = vpop.f32.mrb[0].mxu0
    %v3617 = vadd.f32 0.0, %v3616
    %v3618 = vpop.f32.mrb[0].mxu0
    %v3619 = vadd.f32 0.0, %v3618
    %v3620 = vpop.f32.mrb[0].mxu0
    %v3621 = vadd.f32 0.0, %v3620
    %3622 = vdwg.mxu0
    %v3623 = vadd.f32 %v3143, %v3615
    %v3624 = vadd.f32 %v3144, %v3617
    %v3625 = vadd.f32 %v3145, %v3619
    %v3626 = vadd.f32 %v3146, %v3621
    %v3629 = vlaneseq
    %v3630 = vshrl.u32 %v3629, 7
    %v3631 = vsub.s32 0, %v3630
    %v3632 = vrot.slane %v1466, %v3631
    %v3633 = vlaneseq
    %v3634 = vshrl.u32 %v3633, 7
    %v3635 = vsub.s32 2, %v3634
    %v3636 = vrot.slane %v1466, %v3635
    %v3637 = vlaneseq
    %v3638 = vshrl.u32 %v3637, 7
    %v3639 = vsub.s32 0, %v3638
    %v3640 = vrot.slane %v1478, %v3639
    %v3641 = vlaneseq
    %v3642 = vshrl.u32 %v3641, 7
    %v3643 = vsub.s32 2, %v3642
    %v3644 = vrot.slane %v1478, %v3643
    %v3649 = vpack.c.bf16 %v3632, %v3632
    %v3650 = vpack.c.bf16 %v3636, %v3636
    %v3651 = vpack.c.bf16 %v3640, %v3640
    %v3652 = vpack.c.bf16 %v3644, %v3644
    %s3653 = scalar_lea.vmem %s4, 768
    %v3654 = vld [vmem:[%s3653] sm:$0xff]
    %v3655 = vld [vmem:[%s3653 + $0x8] sm:$0xff]
    %v3656 = vld [vmem:[%s3653 + $0x10] sm:$0xff]
    %v3657 = vld [vmem:[%s3653 + $0x18] sm:$0xff]
    %v3658 = vld [vmem:[%s3653 + $0x20] sm:$0xff]
    %v3659 = vld [vmem:[%s3653 + $0x28] sm:$0xff]
    %v3660 = vld [vmem:[%s3653 + $0x30] sm:$0xff]
    %v3661 = vld [vmem:[%s3653 + $0x38] sm:$0xff]
    %v3662 = vld [vmem:[%s3653 + $0x40] sm:$0xff]
    %v3663 = vld [vmem:[%s3653 + $0x48] sm:$0xff]
    %v3664 = vld [vmem:[%s3653 + $0x50] sm:$0xff]
    %v3665 = vld [vmem:[%s3653 + $0x58] sm:$0xff]
    %v3666 = vld [vmem:[%s3653 + $0x60] sm:$0xff]
    %v3667 = vld [vmem:[%s3653 + $0x68] sm:$0xff]
    %v3668 = vld [vmem:[%s3653 + $0x70] sm:$0xff]
    %v3669 = vld [vmem:[%s3653 + $0x78] sm:$0xff]
    %v3670 = vld [vmem:[%s3653 + $0x80] sm:$0xff]
    %v3671 = vld [vmem:[%s3653 + $0x88] sm:$0xff]
    %v3672 = vld [vmem:[%s3653 + $0x90] sm:$0xff]
    %v3673 = vld [vmem:[%s3653 + $0x98] sm:$0xff]
    %v3674 = vld [vmem:[%s3653 + $0xa0] sm:$0xff]
    %v3675 = vld [vmem:[%s3653 + $0xa8] sm:$0xff]
    %v3676 = vld [vmem:[%s3653 + $0xb0] sm:$0xff]
    %v3677 = vld [vmem:[%s3653 + $0xb8] sm:$0xff]
    %v3682 = vunpack.c.l.b16 %v3649
    %v3683 = vunpack.c.l.b16 %v3650
    %v3684 = vunpack.c.l.b16 %v3651
    %v3685 = vunpack.c.l.b16 %v3652
    %v3686 = vrot.slane %v1826, 7
    %v3687 = vsel %vm1851, %v3686, %v1824
    %v3688 = vrot.slane %v1828, 6
    %v3689 = vsel %vm1854, %v3688, %v3687
    %v3690 = vrot.slane %v1830, 5
    %v3691 = vsel %vm1857, %v3690, %v3689
    %v3692 = vrot.slane %v1832, 4
    %v3693 = vsel %vm1860, %v3692, %v3691
    %v3694 = vrot.slane %v2722, 3
    %v3695 = vsel %vm1863, %v3694, %v3693
    %v3696 = vrot.slane %v3202, 2
    %v3697 = vsel %vm1866, %v3696, %v3695
    %v3698 = vrot.slane %v3682, 1
    %v3699 = vsel %vm1869, %v3698, %v3697
    %v3700 = vrot.slane %v1827, 7
    %v3701 = vsel %vm1851, %v3700, %v1825
    %v3702 = vrot.slane %v1829, 6
    %v3703 = vsel %vm1854, %v3702, %v3701
    %v3704 = vrot.slane %v1831, 5
    %v3705 = vsel %vm1857, %v3704, %v3703
    %v3706 = vrot.slane %v1833, 4
    %v3707 = vsel %vm1860, %v3706, %v3705
    %v3708 = vrot.slane %v2723, 3
    %v3709 = vsel %vm1863, %v3708, %v3707
    %v3710 = vrot.slane %v3203, 2
    %v3711 = vsel %vm1866, %v3710, %v3709
    %v3712 = vrot.slane %v3683, 1
    %v3713 = vsel %vm1869, %v3712, %v3711
    %v3714 = vrot.slane %v1842, 7
    %v3715 = vsel %vm1851, %v3714, %v1840
    %v3716 = vrot.slane %v1844, 6
    %v3717 = vsel %vm1854, %v3716, %v3715
    %v3718 = vrot.slane %v1846, 5
    %v3719 = vsel %vm1857, %v3718, %v3717
    %v3720 = vrot.slane %v1848, 4
    %v3721 = vsel %vm1860, %v3720, %v3719
    %v3722 = vrot.slane %v2724, 3
    %v3723 = vsel %vm1863, %v3722, %v3721
    %v3724 = vrot.slane %v3204, 2
    %v3725 = vsel %vm1866, %v3724, %v3723
    %v3726 = vrot.slane %v3684, 1
    %v3727 = vsel %vm1869, %v3726, %v3725
    %v3728 = vrot.slane %v1843, 7
    %v3729 = vsel %vm1851, %v3728, %v1841
    %v3730 = vrot.slane %v1845, 6
    %v3731 = vsel %vm1854, %v3730, %v3729
    %v3732 = vrot.slane %v1847, 5
    %v3733 = vsel %vm1857, %v3732, %v3731
    %v3734 = vrot.slane %v1849, 4
    %v3735 = vsel %vm1860, %v3734, %v3733
    %v3736 = vrot.slane %v2725, 3
    %v3737 = vsel %vm1863, %v3736, %v3735
    %v3738 = vrot.slane %v3205, 2
    %v3739 = vsel %vm1866, %v3738, %v3737
    %v3740 = vrot.slane %v3685, 1
    %v3741 = vsel %vm1869, %v3740, %v3739
    %v3742 = vpack.c.b16 %v3727, %v3699
    %v3743 = vpack.c.b16 %v3741, %v3713
    %v3769 = vunpack.c.l.b16 %v3654
    %v3770 = vunpack.c.h.b16 %v3654
    %v3771 = vunpack.c.l.b16 %v3655
    %v3772 = vunpack.c.h.b16 %v3655
    %v3773 = vunpack.c.l.b16 %v3656
    %v3774 = vunpack.c.h.b16 %v3656
    %v3775 = vunpack.c.l.b16 %v3657
    %v3776 = vunpack.c.h.b16 %v3657
    %v3777 = vunpack.c.l.b16 %v3658
    %v3778 = vunpack.c.h.b16 %v3658
    %v3779 = vunpack.c.l.b16 %v3659
    %v3780 = vunpack.c.h.b16 %v3659
    %v3781 = vunpack.c.l.b16 %v3660
    %v3782 = vunpack.c.h.b16 %v3660
    %v3783 = vunpack.c.l.b16 %v3661
    %v3784 = vunpack.c.h.b16 %v3661
    %v3785 = vunpack.c.l.b16 %v3662
    %v3786 = vunpack.c.h.b16 %v3662
    %v3787 = vunpack.c.l.b16 %v3663
    %v3788 = vunpack.c.h.b16 %v3663
    %v3789 = vunpack.c.l.b16 %v3664
    %v3790 = vunpack.c.h.b16 %v3664
    %v3791 = vunpack.c.l.b16 %v3665
    %v3792 = vunpack.c.h.b16 %v3665
    %v3793 = vunpack.c.l.b16 %v3666
    %v3794 = vunpack.c.h.b16 %v3666
    %v3795 = vunpack.c.l.b16 %v3667
    %v3796 = vunpack.c.h.b16 %v3667
    %v3797 = vunpack.c.l.b16 %v3668
    %v3798 = vunpack.c.h.b16 %v3668
    %v3799 = vunpack.c.l.b16 %v3669
    %v3800 = vunpack.c.h.b16 %v3669
    %v3801 = vunpack.c.l.b16 %v3670
    %v3802 = vunpack.c.h.b16 %v3670
    %v3803 = vunpack.c.l.b16 %v3671
    %v3804 = vunpack.c.h.b16 %v3671
    %v3805 = vunpack.c.l.b16 %v3672
    %v3806 = vunpack.c.h.b16 %v3672
    %v3807 = vunpack.c.l.b16 %v3673
    %v3808 = vunpack.c.h.b16 %v3673
    %v3809 = vunpack.c.l.b16 %v3674
    %v3810 = vunpack.c.h.b16 %v3674
    %v3811 = vunpack.c.l.b16 %v3675
    %v3812 = vunpack.c.h.b16 %v3675
    %v3813 = vunpack.c.l.b16 %v3676
    %v3814 = vunpack.c.h.b16 %v3676
    %v3815 = vunpack.c.l.b16 %v3677
    %v3816 = vunpack.c.h.b16 %v3677
    %v3817 = vpack.c.b16 %v3771, %v3769
    %v3818 = vpack.c.b16 %v3772, %v3770
    %v3819 = vpack.c.b16 %v3775, %v3773
    %v3820 = vpack.c.b16 %v3776, %v3774
    %v3821 = vpack.c.b16 %v3779, %v3777
    %v3822 = vpack.c.b16 %v3780, %v3778
    %v3823 = vpack.c.b16 %v3783, %v3781
    %v3824 = vpack.c.b16 %v3784, %v3782
    %v3825 = vpack.c.b16 %v3787, %v3785
    %v3826 = vpack.c.b16 %v3788, %v3786
    %v3827 = vpack.c.b16 %v3791, %v3789
    %v3828 = vpack.c.b16 %v3792, %v3790
    %v3829 = vpack.c.b16 %v3795, %v3793
    %v3830 = vpack.c.b16 %v3796, %v3794
    %v3831 = vpack.c.b16 %v3799, %v3797
    %v3832 = vpack.c.b16 %v3800, %v3798
    %v3833 = vpack.c.b16 %v3803, %v3801
    %v3834 = vpack.c.b16 %v3804, %v3802
    %v3835 = vpack.c.b16 %v3807, %v3805
    %v3836 = vpack.c.b16 %v3808, %v3806
    %v3837 = vpack.c.b16 %v3811, %v3809
    %v3838 = vpack.c.b16 %v3812, %v3810
    %v3839 = vpack.c.b16 %v3815, %v3813
    %v3840 = vpack.c.b16 %v3816, %v3814
    %v3866 = vsel %vm2036, %v3743, 0
    %3868 = vmatprep.subr.bf16.mxu0 %v3818
    %3869 = vmatpush1.bf16.msra.mxu0 %v3817
    %3870 = vmatprep.subr.bf16.mxu0 %v3820
    %3871 = vmatpush1.bf16.msra.mxu0 %v3819
    %3872 = vmatprep.subr.bf16.mxu0 %v3822
    %3873 = vmatpush1.bf16.msra.mxu0 %v3821
    %3874 = vmatprep.subr.bf16.mxu0 %v3824
    %3875 = vmatpush1.bf16.msra.mxu0 %v3823
    %3876 = vmatprep.subr.bf16.mxu0 %v3826
    %3877 = vmatpush1.bf16.msra.mxu0 %v3825
    %3878 = vmatprep.subr.bf16.mxu0 %v3828
    %3879 = vmatpush1.bf16.msra.mxu0 %v3827
    %3880 = vmatprep.subr.bf16.mxu0 %v3830
    %3881 = vmatpush1.bf16.msra.mxu0 %v3829
    %3882 = vmatprep.subr.bf16.mxu0 %v3832
    %3883 = vmatpush1.bf16.msra.mxu0 %v3831
    %3884 = vmatprep.subr.bf16.mxu0 %v3834
    %3885 = vmatpush1.bf16.msra.mxu0 %v3833
    %3886 = vmatprep.subr.bf16.mxu0 %v3836
    %3887 = vmatpush1.bf16.msra.mxu0 %v3835
    %3888 = vmatprep.subr.bf16.mxu0 %v3838
    %3889 = vmatpush1.bf16.msra.mxu0 %v3837
    %3890 = vmatprep.subr.bf16.mxu0 %v3840
    %3891 = vmatpush1.bf16.msra.mxu0 %v3839
    %3892 = vmatprep.subr.bf16.mxu0 0
    %3893 = vmatpush1.bf16.msra.mxu0 0
    %3894 = vmatprep.subr.bf16.mxu0 0
    %3895 = vmatpush1.bf16.msra.mxu0 0
    %3896 = vmatprep.subr.bf16.mxu0 0
    %3897 = vmatpush1.bf16.msra.mxu0 0
    %3898 = vmatprep.subr.bf16.mxu0 0
    %3899 = vmatpush1.bf16.msra.mxu0 0
    %3900 = vmatprep.mubr.bf16.mxu0 %v3866
    %3901 = vmatmul.mubr.bf16.gmra.mrb[0].mxu0 %v3742
    %v3902 = vpop.f32.mrb[0].mxu0
    %v3903 = vadd.f32 0.0, %v3902
    %v3904 = vpop.f32.mrb[0].mxu0
    %v3905 = vadd.f32 0.0, %v3904
    %v3906 = vpop.f32.mrb[0].mxu0
    %v3907 = vadd.f32 0.0, %v3906
    %v3908 = vpop.f32.mrb[0].mxu0
    %v3909 = vadd.f32 0.0, %v3908
    %3910 = vdwg.mxu0
    %v3911 = vadd.f32 %v3431, %v3903
    %v3912 = vadd.f32 %v3432, %v3905
    %v3913 = vadd.f32 %v3433, %v3907
    %v3914 = vadd.f32 %v3434, %v3909
    %s3915 = scalar_lea.vmem %s5, 768
    %v3916 = vld [vmem:[%s3915] sm:$0xff]
    %v3917 = vld [vmem:[%s3915 + $0x8] sm:$0xff]
    %v3918 = vld [vmem:[%s3915 + $0x10] sm:$0xff]
    %v3919 = vld [vmem:[%s3915 + $0x18] sm:$0xff]
    %v3920 = vld [vmem:[%s3915 + $0x20] sm:$0xff]
    %v3921 = vld [vmem:[%s3915 + $0x28] sm:$0xff]
    %v3922 = vld [vmem:[%s3915 + $0x30] sm:$0xff]
    %v3923 = vld [vmem:[%s3915 + $0x38] sm:$0xff]
    %v3924 = vld [vmem:[%s3915 + $0x40] sm:$0xff]
    %v3925 = vld [vmem:[%s3915 + $0x48] sm:$0xff]
    %v3926 = vld [vmem:[%s3915 + $0x50] sm:$0xff]
    %v3927 = vld [vmem:[%s3915 + $0x58] sm:$0xff]
    %v3928 = vld [vmem:[%s3915 + $0x60] sm:$0xff]
    %v3929 = vld [vmem:[%s3915 + $0x68] sm:$0xff]
    %v3930 = vld [vmem:[%s3915 + $0x70] sm:$0xff]
    %v3931 = vld [vmem:[%s3915 + $0x78] sm:$0xff]
    %v3932 = vld [vmem:[%s3915 + $0x80] sm:$0xff]
    %v3933 = vld [vmem:[%s3915 + $0x88] sm:$0xff]
    %v3934 = vld [vmem:[%s3915 + $0x90] sm:$0xff]
    %v3935 = vld [vmem:[%s3915 + $0x98] sm:$0xff]
    %v3936 = vld [vmem:[%s3915 + $0xa0] sm:$0xff]
    %v3937 = vld [vmem:[%s3915 + $0xa8] sm:$0xff]
    %v3938 = vld [vmem:[%s3915 + $0xb0] sm:$0xff]
    %v3939 = vld [vmem:[%s3915 + $0xb8] sm:$0xff]
    %v3964 = vunpack.c.l.b16 %v3916
    %v3965 = vunpack.c.h.b16 %v3916
    %v3966 = vunpack.c.l.b16 %v3917
    %v3967 = vunpack.c.h.b16 %v3917
    %v3968 = vunpack.c.l.b16 %v3918
    %v3969 = vunpack.c.h.b16 %v3918
    %v3970 = vunpack.c.l.b16 %v3919
    %v3971 = vunpack.c.h.b16 %v3919
    %v3972 = vunpack.c.l.b16 %v3920
    %v3973 = vunpack.c.h.b16 %v3920
    %v3974 = vunpack.c.l.b16 %v3921
    %v3975 = vunpack.c.h.b16 %v3921
    %v3976 = vunpack.c.l.b16 %v3922
    %v3977 = vunpack.c.h.b16 %v3922
    %v3978 = vunpack.c.l.b16 %v3923
    %v3979 = vunpack.c.h.b16 %v3923
    %v3980 = vunpack.c.l.b16 %v3924
    %v3981 = vunpack.c.h.b16 %v3924
    %v3982 = vunpack.c.l.b16 %v3925
    %v3983 = vunpack.c.h.b16 %v3925
    %v3984 = vunpack.c.l.b16 %v3926
    %v3985 = vunpack.c.h.b16 %v3926
    %v3986 = vunpack.c.l.b16 %v3927
    %v3987 = vunpack.c.h.b16 %v3927
    %v3988 = vunpack.c.l.b16 %v3928
    %v3989 = vunpack.c.h.b16 %v3928
    %v3990 = vunpack.c.l.b16 %v3929
    %v3991 = vunpack.c.h.b16 %v3929
    %v3992 = vunpack.c.l.b16 %v3930
    %v3993 = vunpack.c.h.b16 %v3930
    %v3994 = vunpack.c.l.b16 %v3931
    %v3995 = vunpack.c.h.b16 %v3931
    %v3996 = vunpack.c.l.b16 %v3932
    %v3997 = vunpack.c.h.b16 %v3932
    %v3998 = vunpack.c.l.b16 %v3933
    %v3999 = vunpack.c.h.b16 %v3933
    %v4000 = vunpack.c.l.b16 %v3934
    %v4001 = vunpack.c.h.b16 %v3934
    %v4002 = vunpack.c.l.b16 %v3935
    %v4003 = vunpack.c.h.b16 %v3935
    %v4004 = vunpack.c.l.b16 %v3936
    %v4005 = vunpack.c.h.b16 %v3936
    %v4006 = vunpack.c.l.b16 %v3937
    %v4007 = vunpack.c.h.b16 %v3937
    %v4008 = vunpack.c.l.b16 %v3938
    %v4009 = vunpack.c.h.b16 %v3938
    %v4010 = vunpack.c.l.b16 %v3939
    %v4011 = vunpack.c.h.b16 %v3939
    %v4012 = vpack.c.b16 %v3966, %v3964
    %v4013 = vpack.c.b16 %v3967, %v3965
    %v4014 = vpack.c.b16 %v3970, %v3968
    %v4015 = vpack.c.b16 %v3971, %v3969
    %v4016 = vpack.c.b16 %v3974, %v3972
    %v4017 = vpack.c.b16 %v3975, %v3973
    %v4018 = vpack.c.b16 %v3978, %v3976
    %v4019 = vpack.c.b16 %v3979, %v3977
    %v4020 = vpack.c.b16 %v3982, %v3980
    %v4021 = vpack.c.b16 %v3983, %v3981
    %v4022 = vpack.c.b16 %v3986, %v3984
    %v4023 = vpack.c.b16 %v3987, %v3985
    %v4024 = vpack.c.b16 %v3990, %v3988
    %v4025 = vpack.c.b16 %v3991, %v3989
    %v4026 = vpack.c.b16 %v3994, %v3992
    %v4027 = vpack.c.b16 %v3995, %v3993
    %v4028 = vpack.c.b16 %v3998, %v3996
    %v4029 = vpack.c.b16 %v3999, %v3997
    %v4030 = vpack.c.b16 %v4002, %v4000
    %v4031 = vpack.c.b16 %v4003, %v4001
    %v4032 = vpack.c.b16 %v4006, %v4004
    %v4033 = vpack.c.b16 %v4007, %v4005
    %v4034 = vpack.c.b16 %v4010, %v4008
    %v4035 = vpack.c.b16 %v4011, %v4009
    %4060 = vmatprep.subr.bf16.mxu0 %v4013
    %4061 = vmatpush1.bf16.msra.mxu0 %v4012
    %4062 = vmatprep.subr.bf16.mxu0 %v4015
    %4063 = vmatpush1.bf16.msra.mxu0 %v4014
    %4064 = vmatprep.subr.bf16.mxu0 %v4017
    %4065 = vmatpush1.bf16.msra.mxu0 %v4016
    %4066 = vmatprep.subr.bf16.mxu0 %v4019
    %4067 = vmatpush1.bf16.msra.mxu0 %v4018
    %4068 = vmatprep.subr.bf16.mxu0 %v4021
    %4069 = vmatpush1.bf16.msra.mxu0 %v4020
    %4070 = vmatprep.subr.bf16.mxu0 %v4023
    %4071 = vmatpush1.bf16.msra.mxu0 %v4022
    %4072 = vmatprep.subr.bf16.mxu0 %v4025
    %4073 = vmatpush1.bf16.msra.mxu0 %v4024
    %4074 = vmatprep.subr.bf16.mxu0 %v4027
    %4075 = vmatpush1.bf16.msra.mxu0 %v4026
    %4076 = vmatprep.subr.bf16.mxu0 %v4029
    %4077 = vmatpush1.bf16.msra.mxu0 %v4028
    %4078 = vmatprep.subr.bf16.mxu0 %v4031
    %4079 = vmatpush1.bf16.msra.mxu0 %v4030
    %4080 = vmatprep.subr.bf16.mxu0 %v4033
    %4081 = vmatpush1.bf16.msra.mxu0 %v4032
    %4082 = vmatprep.subr.bf16.mxu0 %v4035
    %4083 = vmatpush1.bf16.msra.mxu0 %v4034
    %4084 = vmatprep.subr.bf16.mxu0 0
    %4085 = vmatpush1.bf16.msra.mxu0 0
    %4086 = vmatprep.subr.bf16.mxu0 0
    %4087 = vmatpush1.bf16.msra.mxu0 0
    %4088 = vmatprep.subr.bf16.mxu0 0
    %4089 = vmatpush1.bf16.msra.mxu0 0
    %4090 = vmatprep.subr.bf16.mxu0 0
    %4091 = vmatpush1.bf16.msra.mxu0 0
    %4092 = vmatprep.mubr.bf16.mxu0 %v3866
    %4093 = vmatmul.mubr.bf16.gmra.mrb[0].mxu0 %v3742
    %v4094 = vpop.f32.mrb[0].mxu0
    %v4095 = vadd.f32 0.0, %v4094
    %v4096 = vpop.f32.mrb[0].mxu0
    %v4097 = vadd.f32 0.0, %v4096
    %v4098 = vpop.f32.mrb[0].mxu0
    %v4099 = vadd.f32 0.0, %v4098
    %v4100 = vpop.f32.mrb[0].mxu0
    %v4101 = vadd.f32 0.0, %v4100
    %4102 = vdwg.mxu0
    %v4103 = vadd.f32 %v3623, %v4095
    %v4104 = vadd.f32 %v3624, %v4097
    %v4105 = vadd.f32 %v3625, %v4099
    %v4106 = vadd.f32 %v3626, %v4101
    %v4107 = vmax.f32 %v3911, %v4103
    %v4108 = vmax.f32 %v3912, %v4104
    %v4109 = vmax.f32 %v3913, %v4105
    %v4110 = vmax.f32 %v3914, %v4106
    %v4111 = vld [vmem:[%s6] sm:$0x3]
    %v4113 = vlaneseq
    %v4114 = vshrl.u32 %v4113, 7
    %v4115 = vsub.s32 0, %v4114
    %v4116 = vrot.slane %v4111, %v4115
    %v4117 = vlaneseq
    %v4118 = vshrl.u32 %v4117, 7
    %v4119 = vsub.s32 1, %v4118
    %v4120 = vrot.slane %v4111, %v4119
    %v4123 = vadd.f32 %v4107, %v4116
    %v4124 = vadd.f32 %v4108, %v4120
    %v4125 = vadd.f32 %v4109, %v4116
    %v4126 = vadd.f32 %v4110, %v4120
    %v4127 = vmax.f32 %v4123, 0.0
    %v4128 = vmax.f32 %v4124, 0.0
    %v4129 = vmax.f32 %v4125, 0.0
    %v4130 = vmax.f32 %v4126, 0.0
    %v4135 = vcombine.low %v4127, %v4128
    %v4136 = vcombine.high %v4127, %v4128
    %v4138 = vunpack.c.l.s4 1983009808
    %v4139 = vunpack.c.0.s8 %v4138
    %v4140 = vlaneseq
    %v4141 = vshrl.u32 %v4140, 7
    %v4142 = vsub.s32 %v4139, %v4141
    %v4143 = vrot.slane %v4135, %v4142
    %v4145 = vunpack.c.l.s4 1983009808
    %v4146 = vunpack.c.0.s8 %v4145
    %v4147 = vlaneseq
    %v4148 = vshrl.u32 %v4147, 7
    %v4149 = vsub.s32 %v4146, %v4148
    %v4150 = vrot.slane %v4136, %v4149
    %v4151 = vcombine.high %v4143, %v4143
    %v4152 = vcombine.high %v4150, %v4150
    %v4153 = vcombine.low %v4129, %v4130
    %v4154 = vcombine.high %v4129, %v4130
    %v4156 = vunpack.c.l.s4 1983009808
    %v4157 = vunpack.c.0.s8 %v4156
    %v4158 = vlaneseq
    %v4159 = vshrl.u32 %v4158, 7
    %v4160 = vsub.s32 %v4157, %v4159
    %v4161 = vrot.slane %v4153, %v4160
    %v4163 = vunpack.c.l.s4 1983009808
    %v4164 = vunpack.c.0.s8 %v4163
    %v4165 = vlaneseq
    %v4166 = vshrl.u32 %v4165, 7
    %v4167 = vsub.s32 %v4164, %v4166
    %v4168 = vrot.slane %v4154, %v4167
    %v4169 = vcombine.high %v4161, %v4161
    %v4170 = vcombine.high %v4168, %v4168
    %v4179 = vrot.slane %v4143, 7
    %v4180 = vrot.slane %v4179, 2
    %v4181 = vrot.slane %v4151, 7
    %v4182 = vrot.slane %v4181, 2
    %v4183 = vrot.slane %v4150, 7
    %v4184 = vrot.slane %v4183, 2
    %v4185 = vrot.slane %v4152, 7
    %v4186 = vrot.slane %v4185, 2
    %v4187 = vrot.slane %v4161, 7
    %v4188 = vrot.slane %v4187, 2
    %v4189 = vrot.slane %v4169, 7
    %v4190 = vrot.slane %v4189, 2
    %v4191 = vrot.slane %v4168, 7
    %v4192 = vrot.slane %v4191, 2
    %v4193 = vrot.slane %v4170, 7
    %v4194 = vrot.slane %v4193, 2
    %v4203 = vmax.f32 %v4143, %v4180
    %v4204 = vmax.f32 %v4151, %v4182
    %v4205 = vmax.f32 %v4150, %v4184
    %v4206 = vmax.f32 %v4152, %v4186
    %v4207 = vmax.f32 %v4161, %v4188
    %v4208 = vmax.f32 %v4169, %v4190
    %v4209 = vmax.f32 %v4168, %v4192
    %v4210 = vmax.f32 %v4170, %v4194
    %v4213 = vlaneseq
    %v4214 = vshrl.u32 %v4213, 7
    %v4215 = vsub.s32 0, %v4214
    %v4216 = vrot.slane %v4203, %v4215
    %v4217 = vlaneseq
    %v4218 = vshrl.u32 %v4217, 7
    %v4219 = vsub.s32 2, %v4218
    %v4220 = vrot.slane %v4203, %v4219
    %v4221 = vlaneseq
    %v4222 = vshrl.u32 %v4221, 7
    %v4223 = vsub.s32 0, %v4222
    %v4224 = vrot.slane %v4207, %v4223
    %v4225 = vlaneseq
    %v4226 = vshrl.u32 %v4225, 7
    %v4227 = vsub.s32 2, %v4226
    %v4228 = vrot.slane %v4207, %v4227
    %v4233 = vpack.c.bf16 %v4216, %v4216
    %v4234 = vpack.c.bf16 %v4220, %v4220
    %v4235 = vpack.c.bf16 %v4224, %v4224
    %v4236 = vpack.c.bf16 %v4228, %v4228
    %v4237 = vld [vmem:[%s7] sm:$0xf]
    %v4238 = vld [vmem:[%s7 + $0x4] sm:$0xf]
    %v4239 = vld [vmem:[%s7 + $0x8] sm:$0xf]
    %v4240 = vld [vmem:[%s7 + $0xc] sm:$0xf]
    %v4241 = vld [vmem:[%s7 + $0x10] sm:$0xf]
    %v4242 = vld [vmem:[%s7 + $0x14] sm:$0xf]
    %v4243 = vld [vmem:[%s7 + $0x18] sm:$0xf]
    %v4244 = vld [vmem:[%s7 + $0x1c] sm:$0xf]
    %v4245 = vld [vmem:[%s7 + $0x20] sm:$0xf]
    %v4246 = vld [vmem:[%s7 + $0x24] sm:$0xf]
    %v4247 = vld [vmem:[%s7 + $0x28] sm:$0xf]
    %v4248 = vld [vmem:[%s7 + $0x2c] sm:$0xf]
    %v4249 = vld [vmem:[%s7 + $0x30] sm:$0xf]
    %v4250 = vld [vmem:[%s7 + $0x34] sm:$0xf]
    %v4251 = vld [vmem:[%s7 + $0x38] sm:$0xf]
    %v4252 = vld [vmem:[%s7 + $0x3c] sm:$0xf]
    %v4253 = vld [vmem:[%s7 + $0x40] sm:$0xf]
    %v4254 = vld [vmem:[%s7 + $0x44] sm:$0xf]
    %v4257 = vlaneseq
    %v4258 = vshrl.u32 %v4257, 7
    %v4259 = vsub.s32 0, %v4258
    %v4260 = vrot.slane %v4204, %v4259
    %v4261 = vlaneseq
    %v4262 = vshrl.u32 %v4261, 7
    %v4263 = vsub.s32 2, %v4262
    %v4264 = vrot.slane %v4204, %v4263
    %v4265 = vlaneseq
    %v4266 = vshrl.u32 %v4265, 7
    %v4267 = vsub.s32 0, %v4266
    %v4268 = vrot.slane %v4208, %v4267
    %v4269 = vlaneseq
    %v4270 = vshrl.u32 %v4269, 7
    %v4271 = vsub.s32 2, %v4270
    %v4272 = vrot.slane %v4208, %v4271
    %v4277 = vpack.c.bf16 %v4260, %v4260
    %v4278 = vpack.c.bf16 %v4264, %v4264
    %v4279 = vpack.c.bf16 %v4268, %v4268
    %v4280 = vpack.c.bf16 %v4272, %v4272
    %s4281 = scalar_lea.vmem %s7, 72
    %v4282 = vld [vmem:[%s4281] sm:$0xf]
    %v4283 = vld [vmem:[%s4281 + $0x4] sm:$0xf]
    %v4284 = vld [vmem:[%s4281 + $0x8] sm:$0xf]
    %v4285 = vld [vmem:[%s4281 + $0xc] sm:$0xf]
    %v4286 = vld [vmem:[%s4281 + $0x10] sm:$0xf]
    %v4287 = vld [vmem:[%s4281 + $0x14] sm:$0xf]
    %v4288 = vld [vmem:[%s4281 + $0x18] sm:$0xf]
    %v4289 = vld [vmem:[%s4281 + $0x1c] sm:$0xf]
    %v4290 = vld [vmem:[%s4281 + $0x20] sm:$0xf]
    %v4291 = vld [vmem:[%s4281 + $0x24] sm:$0xf]
    %v4292 = vld [vmem:[%s4281 + $0x28] sm:$0xf]
    %v4293 = vld [vmem:[%s4281 + $0x2c] sm:$0xf]
    %v4294 = vld [vmem:[%s4281 + $0x30] sm:$0xf]
    %v4295 = vld [vmem:[%s4281 + $0x34] sm:$0xf]
    %v4296 = vld [vmem:[%s4281 + $0x38] sm:$0xf]
    %v4297 = vld [vmem:[%s4281 + $0x3c] sm:$0xf]
    %v4298 = vld [vmem:[%s4281 + $0x40] sm:$0xf]
    %v4299 = vld [vmem:[%s4281 + $0x44] sm:$0xf]
    %v4304 = vunpack.c.l.b16 %v4277
    %v4305 = vunpack.c.l.b16 %v4278
    %v4306 = vunpack.c.l.b16 %v4279
    %v4307 = vunpack.c.l.b16 %v4280
    %v4308 = vrot.slane %v4306, 7
    %v4309 = vsel %vm1851, %v4308, %v4304
    %v4310 = vrot.slane %v4307, 7
    %v4311 = vsel %vm1851, %v4310, %v4305
    %v4312 = vpack.c.b16 %v4309, %v4309
    %v4313 = vpack.c.b16 %v4311, %v4311
    %v4333 = vunpack.c.l.b16 %v4282
    %v4334 = vunpack.c.l.b16 %v4283
    %v4335 = vunpack.c.l.b16 %v4284
    %v4336 = vunpack.c.l.b16 %v4285
    %v4337 = vunpack.c.l.b16 %v4286
    %v4338 = vunpack.c.l.b16 %v4287
    %v4339 = vunpack.c.l.b16 %v4288
    %v4340 = vunpack.c.l.b16 %v4289
    %v4341 = vunpack.c.l.b16 %v4290
    %v4342 = vunpack.c.l.b16 %v4291
    %v4343 = vunpack.c.l.b16 %v4292
    %v4344 = vunpack.c.l.b16 %v4293
    %v4345 = vunpack.c.l.b16 %v4294
    %v4346 = vunpack.c.l.b16 %v4295
    %v4347 = vunpack.c.l.b16 %v4296
    %v4348 = vunpack.c.l.b16 %v4297
    %v4349 = vunpack.c.l.b16 %v4298
    %v4350 = vunpack.c.l.b16 %v4299
    %v4351 = vpack.c.b16 %v4334, %v4333
    %v4352 = vpack.c.b16 %v4336, %v4335
    %v4353 = vpack.c.b16 %v4338, %v4337
    %v4354 = vpack.c.b16 %v4340, %v4339
    %v4355 = vpack.c.b16 %v4342, %v4341
    %v4356 = vpack.c.b16 %v4344, %v4343
    %v4357 = vpack.c.b16 %v4346, %v4345
    %v4358 = vpack.c.b16 %v4348, %v4347
    %v4359 = vpack.c.b16 %v4350, %v4349
    %vm4369 = vcmask 130048
    %v4371 = vsel %vm4369, %v4313, 0
    %4373 = vmatprep.subr.bf16.mxu0 0
    %4374 = vmatpush1.bf16.msra.mxu0 %v4351
    %4375 = vmatprep.subr.bf16.mxu0 0
    %4376 = vmatpush1.bf16.msra.mxu0 %v4352
    %4377 = vmatprep.subr.bf16.mxu0 0
    %4378 = vmatpush1.bf16.msra.mxu0 %v4353
    %4379 = vmatprep.subr.bf16.mxu0 0
    %4380 = vmatpush1.bf16.msra.mxu0 %v4354
    %4381 = vmatprep.subr.bf16.mxu0 0
    %4382 = vmatpush1.bf16.msra.mxu0 %v4355
    %4383 = vmatprep.subr.bf16.mxu0 0
    %4384 = vmatpush1.bf16.msra.mxu0 %v4356
    %4385 = vmatprep.subr.bf16.mxu0 0
    %4386 = vmatpush1.bf16.msra.mxu0 %v4357
    %4387 = vmatprep.subr.bf16.mxu0 0
    %4388 = vmatpush1.bf16.msra.mxu0 %v4358
    %4389 = vmatprep.subr.bf16.mxu0 0
    %4390 = vmatpush1.bf16.msra.mxu0 %v4359
    %4391 = vmatprep.subr.bf16.mxu0 0
    %4392 = vmatpush1.bf16.msra.mxu0 0
    %4393 = vmatprep.subr.bf16.mxu0 0
    %4394 = vmatpush1.bf16.msra.mxu0 0
    %4395 = vmatprep.subr.bf16.mxu0 0
    %4396 = vmatpush1.bf16.msra.mxu0 0
    %4397 = vmatprep.subr.bf16.mxu0 0
    %4398 = vmatpush1.bf16.msra.mxu0 0
    %4399 = vmatprep.subr.bf16.mxu0 0
    %4400 = vmatpush1.bf16.msra.mxu0 0
    %4401 = vmatprep.subr.bf16.mxu0 0
    %4402 = vmatpush1.bf16.msra.mxu0 0
    %4403 = vmatprep.subr.bf16.mxu0 0
    %4404 = vmatpush1.bf16.msra.mxu0 0
    %4405 = vmatprep.mubr.bf16.mxu0 %v4371
    %4406 = vmatmul.mubr.bf16.gmra.mrb[0].mxu0 %v4312
    %v4407 = vpop.f32.mrb[0].mxu0
    %v4408 = vadd.f32 0.0, %v4407
    %v4409 = vpop.f32.mrb[0].mxu0
    %v4410 = vpop.f32.mrb[0].mxu0
    %v4411 = vpop.f32.mrb[0].mxu0
    %4412 = vdwg.mxu0
    %v4417 = vunpack.c.l.b16 %v4233
    %v4418 = vunpack.c.l.b16 %v4234
    %v4419 = vunpack.c.l.b16 %v4235
    %v4420 = vunpack.c.l.b16 %v4236
    %v4421 = vrot.slane %v4419, 7
    %v4422 = vsel %vm1851, %v4421, %v4417
    %v4423 = vrot.slane %v4420, 7
    %v4424 = vsel %vm1851, %v4423, %v4418
    %v4425 = vpack.c.b16 %v4422, %v4422
    %v4426 = vpack.c.b16 %v4424, %v4424
    %v4446 = vunpack.c.l.b16 %v4237
    %v4447 = vunpack.c.l.b16 %v4238
    %v4448 = vunpack.c.l.b16 %v4239
    %v4449 = vunpack.c.l.b16 %v4240
    %v4450 = vunpack.c.l.b16 %v4241
    %v4451 = vunpack.c.l.b16 %v4242
    %v4452 = vunpack.c.l.b16 %v4243
    %v4453 = vunpack.c.l.b16 %v4244
    %v4454 = vunpack.c.l.b16 %v4245
    %v4455 = vunpack.c.l.b16 %v4246
    %v4456 = vunpack.c.l.b16 %v4247
    %v4457 = vunpack.c.l.b16 %v4248
    %v4458 = vunpack.c.l.b16 %v4249
    %v4459 = vunpack.c.l.b16 %v4250
    %v4460 = vunpack.c.l.b16 %v4251
    %v4461 = vunpack.c.l.b16 %v4252
    %v4462 = vunpack.c.l.b16 %v4253
    %v4463 = vunpack.c.l.b16 %v4254
    %v4464 = vpack.c.b16 %v4447, %v4446
    %v4465 = vpack.c.b16 %v4449, %v4448
    %v4466 = vpack.c.b16 %v4451, %v4450
    %v4467 = vpack.c.b16 %v4453, %v4452
    %v4468 = vpack.c.b16 %v4455, %v4454
    %v4469 = vpack.c.b16 %v4457, %v4456
    %v4470 = vpack.c.b16 %v4459, %v4458
    %v4471 = vpack.c.b16 %v4461, %v4460
    %v4472 = vpack.c.b16 %v4463, %v4462
    %v4483 = vsel %vm4369, %v4426, 0
    %4485 = vmatprep.subr.bf16.mxu0 0
    %4486 = vmatpush1.bf16.msra.mxu0 %v4464
    %4487 = vmatprep.subr.bf16.mxu0 0
    %4488 = vmatpush1.bf16.msra.mxu0 %v4465
    %4489 = vmatprep.subr.bf16.mxu0 0
    %4490 = vmatpush1.bf16.msra.mxu0 %v4466
    %4491 = vmatprep.subr.bf16.mxu0 0
    %4492 = vmatpush1.bf16.msra.mxu0 %v4467
    %4493 = vmatprep.subr.bf16.mxu0 0
    %4494 = vmatpush1.bf16.msra.mxu0 %v4468
    %4495 = vmatprep.subr.bf16.mxu0 0
    %4496 = vmatpush1.bf16.msra.mxu0 %v4469
    %4497 = vmatprep.subr.bf16.mxu0 0
    %4498 = vmatpush1.bf16.msra.mxu0 %v4470
    %4499 = vmatprep.subr.bf16.mxu0 0
    %4500 = vmatpush1.bf16.msra.mxu0 %v4471
    %4501 = vmatprep.subr.bf16.mxu0 0
    %4502 = vmatpush1.bf16.msra.mxu0 %v4472
    %4503 = vmatprep.subr.bf16.mxu0 0
    %4504 = vmatpush1.bf16.msra.mxu0 0
    %4505 = vmatprep.subr.bf16.mxu0 0
    %4506 = vmatpush1.bf16.msra.mxu0 0
    %4507 = vmatprep.subr.bf16.mxu0 0
    %4508 = vmatpush1.bf16.msra.mxu0 0
    %4509 = vmatprep.subr.bf16.mxu0 0
    %4510 = vmatpush1.bf16.msra.mxu0 0
    %4511 = vmatprep.subr.bf16.mxu0 0
    %4512 = vmatpush1.bf16.msra.mxu0 0
    %4513 = vmatprep.subr.bf16.mxu0 0
    %4514 = vmatpush1.bf16.msra.mxu0 0
    %4515 = vmatprep.subr.bf16.mxu0 0
    %4516 = vmatpush1.bf16.msra.mxu0 0
    %4517 = vmatprep.mubr.bf16.mxu0 %v4483
    %4518 = vmatmul.mubr.bf16.gmra.mrb[0].mxu0 %v4425
    %v4519 = vpop.f32.mrb[0].mxu0
    %v4520 = vadd.f32 %v4408, %v4519
    %v4521 = vpop.f32.mrb[0].mxu0
    %v4522 = vpop.f32.mrb[0].mxu0
    %v4523 = vpop.f32.mrb[0].mxu0
    %4524 = vdwg.mxu0
    %v4527 = vlaneseq
    %v4528 = vshrl.u32 %v4527, 7
    %v4529 = vsub.s32 0, %v4528
    %v4530 = vrot.slane %v4205, %v4529
    %v4531 = vlaneseq
    %v4532 = vshrl.u32 %v4531, 7
    %v4533 = vsub.s32 2, %v4532
    %v4534 = vrot.slane %v4205, %v4533
    %v4535 = vlaneseq
    %v4536 = vshrl.u32 %v4535, 7
    %v4537 = vsub.s32 0, %v4536
    %v4538 = vrot.slane %v4209, %v4537
    %v4539 = vlaneseq
    %v4540 = vshrl.u32 %v4539, 7
    %v4541 = vsub.s32 2, %v4540
    %v4542 = vrot.slane %v4209, %v4541
    %v4547 = vpack.c.bf16 %v4530, %v4530
    %v4548 = vpack.c.bf16 %v4534, %v4534
    %v4549 = vpack.c.bf16 %v4538, %v4538
    %v4550 = vpack.c.bf16 %v4542, %v4542
    %s4551 = scalar_lea.vmem %s7, 144
    %v4552 = vld [vmem:[%s4551] sm:$0xf]
    %v4553 = vld [vmem:[%s4551 + $0x4] sm:$0xf]
    %v4554 = vld [vmem:[%s4551 + $0x8] sm:$0xf]
    %v4555 = vld [vmem:[%s4551 + $0xc] sm:$0xf]
    %v4556 = vld [vmem:[%s4551 + $0x10] sm:$0xf]
    %v4557 = vld [vmem:[%s4551 + $0x14] sm:$0xf]
    %v4558 = vld [vmem:[%s4551 + $0x18] sm:$0xf]
    %v4559 = vld [vmem:[%s4551 + $0x1c] sm:$0xf]
    %v4560 = vld [vmem:[%s4551 + $0x20] sm:$0xf]
    %v4561 = vld [vmem:[%s4551 + $0x24] sm:$0xf]
    %v4562 = vld [vmem:[%s4551 + $0x28] sm:$0xf]
    %v4563 = vld [vmem:[%s4551 + $0x2c] sm:$0xf]
    %v4564 = vld [vmem:[%s4551 + $0x30] sm:$0xf]
    %v4565 = vld [vmem:[%s4551 + $0x34] sm:$0xf]
    %v4566 = vld [vmem:[%s4551 + $0x38] sm:$0xf]
    %v4567 = vld [vmem:[%s4551 + $0x3c] sm:$0xf]
    %v4568 = vld [vmem:[%s4551 + $0x40] sm:$0xf]
    %v4569 = vld [vmem:[%s4551 + $0x44] sm:$0xf]
    %v4574 = vunpack.c.l.b16 %v4547
    %v4575 = vunpack.c.l.b16 %v4548
    %v4576 = vunpack.c.l.b16 %v4549
    %v4577 = vunpack.c.l.b16 %v4550
    %v4578 = vrot.slane %v4576, 7
    %v4579 = vsel %vm1851, %v4578, %v4574
    %v4580 = vrot.slane %v4577, 7
    %v4581 = vsel %vm1851, %v4580, %v4575
    %v4582 = vpack.c.b16 %v4579, %v4579
    %v4583 = vpack.c.b16 %v4581, %v4581
    %v4603 = vunpack.c.l.b16 %v4552
    %v4604 = vunpack.c.l.b16 %v4553
    %v4605 = vunpack.c.l.b16 %v4554
    %v4606 = vunpack.c.l.b16 %v4555
    %v4607 = vunpack.c.l.b16 %v4556
    %v4608 = vunpack.c.l.b16 %v4557
    %v4609 = vunpack.c.l.b16 %v4558
    %v4610 = vunpack.c.l.b16 %v4559
    %v4611 = vunpack.c.l.b16 %v4560
    %v4612 = vunpack.c.l.b16 %v4561
    %v4613 = vunpack.c.l.b16 %v4562
    %v4614 = vunpack.c.l.b16 %v4563
    %v4615 = vunpack.c.l.b16 %v4564
    %v4616 = vunpack.c.l.b16 %v4565
    %v4617 = vunpack.c.l.b16 %v4566
    %v4618 = vunpack.c.l.b16 %v4567
    %v4619 = vunpack.c.l.b16 %v4568
    %v4620 = vunpack.c.l.b16 %v4569
    %v4621 = vpack.c.b16 %v4604, %v4603
    %v4622 = vpack.c.b16 %v4606, %v4605
    %v4623 = vpack.c.b16 %v4608, %v4607
    %v4624 = vpack.c.b16 %v4610, %v4609
    %v4625 = vpack.c.b16 %v4612, %v4611
    %v4626 = vpack.c.b16 %v4614, %v4613
    %v4627 = vpack.c.b16 %v4616, %v4615
    %v4628 = vpack.c.b16 %v4618, %v4617
    %v4629 = vpack.c.b16 %v4620, %v4619
    %v4640 = vsel %vm4369, %v4583, 0
    %4642 = vmatprep.subr.bf16.mxu0 0
    %4643 = vmatpush1.bf16.msra.mxu0 %v4621
    %4644 = vmatprep.subr.bf16.mxu0 0
    %4645 = vmatpush1.bf16.msra.mxu0 %v4622
    %4646 = vmatprep.subr.bf16.mxu0 0
    %4647 = vmatpush1.bf16.msra.mxu0 %v4623
    %4648 = vmatprep.subr.bf16.mxu0 0
    %4649 = vmatpush1.bf16.msra.mxu0 %v4624
    %4650 = vmatprep.subr.bf16.mxu0 0
    %4651 = vmatpush1.bf16.msra.mxu0 %v4625
    %4652 = vmatprep.subr.bf16.mxu0 0
    %4653 = vmatpush1.bf16.msra.mxu0 %v4626
    %4654 = vmatprep.subr.bf16.mxu0 0
    %4655 = vmatpush1.bf16.msra.mxu0 %v4627
    %4656 = vmatprep.subr.bf16.mxu0 0
    %4657 = vmatpush1.bf16.msra.mxu0 %v4628
    %4658 = vmatprep.subr.bf16.mxu0 0
    %4659 = vmatpush1.bf16.msra.mxu0 %v4629
    %4660 = vmatprep.subr.bf16.mxu0 0
    %4661 = vmatpush1.bf16.msra.mxu0 0
    %4662 = vmatprep.subr.bf16.mxu0 0
    %4663 = vmatpush1.bf16.msra.mxu0 0
    %4664 = vmatprep.subr.bf16.mxu0 0
    %4665 = vmatpush1.bf16.msra.mxu0 0
    %4666 = vmatprep.subr.bf16.mxu0 0
    %4667 = vmatpush1.bf16.msra.mxu0 0
    %4668 = vmatprep.subr.bf16.mxu0 0
    %4669 = vmatpush1.bf16.msra.mxu0 0
    %4670 = vmatprep.subr.bf16.mxu0 0
    %4671 = vmatpush1.bf16.msra.mxu0 0
    %4672 = vmatprep.subr.bf16.mxu0 0
    %4673 = vmatpush1.bf16.msra.mxu0 0
    %4674 = vmatprep.mubr.bf16.mxu0 %v4640
    %4675 = vmatmul.mubr.bf16.gmra.mrb[0].mxu0 %v4582
    %v4676 = vpop.f32.mrb[0].mxu0
    %v4677 = vadd.f32 0.0, %v4676
    %v4678 = vpop.f32.mrb[0].mxu0
    %v4679 = vpop.f32.mrb[0].mxu0
    %v4680 = vpop.f32.mrb[0].mxu0
    %4681 = vdwg.mxu0
    %v4682 = vadd.f32 %v4520, %v4677
    %v4685 = vlaneseq
    %v4686 = vshrl.u32 %v4685, 7
    %v4687 = vsub.s32 0, %v4686
    %v4688 = vrot.slane %v4206, %v4687
    %v4689 = vlaneseq
    %v4690 = vshrl.u32 %v4689, 7
    %v4691 = vsub.s32 2, %v4690
    %v4692 = vrot.slane %v4206, %v4691
    %v4693 = vlaneseq
    %v4694 = vshrl.u32 %v4693, 7
    %v4695 = vsub.s32 0, %v4694
    %v4696 = vrot.slane %v4210, %v4695
    %v4697 = vlaneseq
    %v4698 = vshrl.u32 %v4697, 7
    %v4699 = vsub.s32 2, %v4698
    %v4700 = vrot.slane %v4210, %v4699
    %v4705 = vpack.c.bf16 %v4688, %v4688
    %v4706 = vpack.c.bf16 %v4692, %v4692
    %v4707 = vpack.c.bf16 %v4696, %v4696
    %v4708 = vpack.c.bf16 %v4700, %v4700
    %s4709 = scalar_lea.vmem %s7, 216
    %v4710 = vld [vmem:[%s4709] sm:$0xf]
    %v4711 = vld [vmem:[%s4709 + $0x4] sm:$0xf]
    %v4712 = vld [vmem:[%s4709 + $0x8] sm:$0xf]
    %v4713 = vld [vmem:[%s4709 + $0xc] sm:$0xf]
    %v4714 = vld [vmem:[%s4709 + $0x10] sm:$0xf]
    %v4715 = vld [vmem:[%s4709 + $0x14] sm:$0xf]
    %v4716 = vld [vmem:[%s4709 + $0x18] sm:$0xf]
    %v4717 = vld [vmem:[%s4709 + $0x1c] sm:$0xf]
    %v4718 = vld [vmem:[%s4709 + $0x20] sm:$0xf]
    %v4719 = vld [vmem:[%s4709 + $0x24] sm:$0xf]
    %v4720 = vld [vmem:[%s4709 + $0x28] sm:$0xf]
    %v4721 = vld [vmem:[%s4709 + $0x2c] sm:$0xf]
    %v4722 = vld [vmem:[%s4709 + $0x30] sm:$0xf]
    %v4723 = vld [vmem:[%s4709 + $0x34] sm:$0xf]
    %v4724 = vld [vmem:[%s4709 + $0x38] sm:$0xf]
    %v4725 = vld [vmem:[%s4709 + $0x3c] sm:$0xf]
    %v4726 = vld [vmem:[%s4709 + $0x40] sm:$0xf]
    %v4727 = vld [vmem:[%s4709 + $0x44] sm:$0xf]
    %v4732 = vunpack.c.l.b16 %v4705
    %v4733 = vunpack.c.l.b16 %v4706
    %v4734 = vunpack.c.l.b16 %v4707
    %v4735 = vunpack.c.l.b16 %v4708
    %v4736 = vrot.slane %v4734, 7
    %v4737 = vsel %vm1851, %v4736, %v4732
    %v4738 = vrot.slane %v4735, 7
    %v4739 = vsel %vm1851, %v4738, %v4733
    %v4740 = vpack.c.b16 %v4737, %v4737
    %v4741 = vpack.c.b16 %v4739, %v4739
    %v4761 = vunpack.c.l.b16 %v4710
    %v4762 = vunpack.c.l.b16 %v4711
    %v4763 = vunpack.c.l.b16 %v4712
    %v4764 = vunpack.c.l.b16 %v4713
    %v4765 = vunpack.c.l.b16 %v4714
    %v4766 = vunpack.c.l.b16 %v4715
    %v4767 = vunpack.c.l.b16 %v4716
    %v4768 = vunpack.c.l.b16 %v4717
    %v4769 = vunpack.c.l.b16 %v4718
    %v4770 = vunpack.c.l.b16 %v4719
    %v4771 = vunpack.c.l.b16 %v4720
    %v4772 = vunpack.c.l.b16 %v4721
    %v4773 = vunpack.c.l.b16 %v4722
    %v4774 = vunpack.c.l.b16 %v4723
    %v4775 = vunpack.c.l.b16 %v4724
    %v4776 = vunpack.c.l.b16 %v4725
    %v4777 = vunpack.c.l.b16 %v4726
    %v4778 = vunpack.c.l.b16 %v4727
    %v4779 = vpack.c.b16 %v4762, %v4761
    %v4780 = vpack.c.b16 %v4764, %v4763
    %v4781 = vpack.c.b16 %v4766, %v4765
    %v4782 = vpack.c.b16 %v4768, %v4767
    %v4783 = vpack.c.b16 %v4770, %v4769
    %v4784 = vpack.c.b16 %v4772, %v4771
    %v4785 = vpack.c.b16 %v4774, %v4773
    %v4786 = vpack.c.b16 %v4776, %v4775
    %v4787 = vpack.c.b16 %v4778, %v4777
    %v4798 = vsel %vm4369, %v4741, 0
    %4800 = vmatprep.subr.bf16.mxu0 0
    %4801 = vmatpush1.bf16.msra.mxu0 %v4779
    %4802 = vmatprep.subr.bf16.mxu0 0
    %4803 = vmatpush1.bf16.msra.mxu0 %v4780
    %4804 = vmatprep.subr.bf16.mxu0 0
    %4805 = vmatpush1.bf16.msra.mxu0 %v4781
    %4806 = vmatprep.subr.bf16.mxu0 0
    %4807 = vmatpush1.bf16.msra.mxu0 %v4782
    %4808 = vmatprep.subr.bf16.mxu0 0
    %4809 = vmatpush1.bf16.msra.mxu0 %v4783
    %4810 = vmatprep.subr.bf16.mxu0 0
    %4811 = vmatpush1.bf16.msra.mxu0 %v4784
    %4812 = vmatprep.subr.bf16.mxu0 0
    %4813 = vmatpush1.bf16.msra.mxu0 %v4785
    %4814 = vmatprep.subr.bf16.mxu0 0
    %4815 = vmatpush1.bf16.msra.mxu0 %v4786
    %4816 = vmatprep.subr.bf16.mxu0 0
    %4817 = vmatpush1.bf16.msra.mxu0 %v4787
    %4818 = vmatprep.subr.bf16.mxu0 0
    %4819 = vmatpush1.bf16.msra.mxu0 0
    %4820 = vmatprep.subr.bf16.mxu0 0
    %4821 = vmatpush1.bf16.msra.mxu0 0
    %4822 = vmatprep.subr.bf16.mxu0 0
    %4823 = vmatpush1.bf16.msra.mxu0 0
    %4824 = vmatprep.subr.bf16.mxu0 0
    %4825 = vmatpush1.bf16.msra.mxu0 0
    %4826 = vmatprep.subr.bf16.mxu0 0
    %4827 = vmatpush1.bf16.msra.mxu0 0
    %4828 = vmatprep.subr.bf16.mxu0 0
    %4829 = vmatpush1.bf16.msra.mxu0 0
    %4830 = vmatprep.subr.bf16.mxu0 0
    %4831 = vmatpush1.bf16.msra.mxu0 0
    %4832 = vmatprep.mubr.bf16.mxu0 %v4798
    %4833 = vmatmul.mubr.bf16.gmra.mrb[0].mxu0 %v4740
    %v4834 = vpop.f32.mrb[0].mxu0
    %v4835 = vadd.f32 0.0, %v4834
    %v4836 = vpop.f32.mrb[0].mxu0
    %v4837 = vpop.f32.mrb[0].mxu0
    %v4838 = vpop.f32.mrb[0].mxu0
    %4839 = vdwg.mxu0
    %v4840 = vadd.f32 %v4682, %v4835
    %v4841 = vld [vmem:[%s8] sm:$0x1]
    %v4843 = vlaneseq
    %v4844 = vshrl.u32 %v4843, 7
    %v4845 = vsub.s32 0, %v4844
    %v4846 = vrot.slane %v4841, %v4845
    %v4848 = vadd.f32 %v4840, %v4846
    %v4849 = vmax.f32 %v4848, 0.0
    %v4850 = vpack.c.bf16 %v4849, %v4849
    %v4851 = vld [vmem:[%s9] sm:$0xf]
    %v4852 = vld [vmem:[%s9 + $0x4] sm:$0xf]
    %v4853 = vld [vmem:[%s9 + $0x8] sm:$0xf]
    %v4854 = vld [vmem:[%s9 + $0xc] sm:$0xf]
    %v4855 = vld [vmem:[%s9 + $0x10] sm:$0xf]
    %v4856 = vld [vmem:[%s9 + $0x14] sm:$0xf]
    %v4857 = vld [vmem:[%s9 + $0x18] sm:$0xf]
    %v4858 = vld [vmem:[%s9 + $0x1c] sm:$0xf]
    %v4859 = vld [vmem:[%s9 + $0x20] sm:$0xf]
    %v4860 = vld [vmem:[%s9 + $0x24] sm:$0xf]
    %v4861 = vld [vmem:[%s9 + $0x28] sm:$0xf]
    %v4862 = vld [vmem:[%s9 + $0x2c] sm:$0xf]
    %v4863 = vld [vmem:[%s9 + $0x30] sm:$0xf]
    %v4864 = vld [vmem:[%s9 + $0x34] sm:$0xf]
    %v4865 = vld [vmem:[%s9 + $0x38] sm:$0xf]
    %v4866 = vld [vmem:[%s9 + $0x3c] sm:$0xf]
    %v4867 = vld [vmem:[%s10] sm:$0x1]
    %v4869 = vlaneseq
    %v4870 = vshrl.u32 %v4869, 7
    %v4871 = vsub.s32 0, %v4870
    %v4872 = vrot.slane %v4867, %v4871
    %v4890 = vunpack.c.l.b16 %v4851
    %v4891 = vunpack.c.l.b16 %v4852
    %v4892 = vunpack.c.l.b16 %v4853
    %v4893 = vunpack.c.l.b16 %v4854
    %v4894 = vunpack.c.l.b16 %v4855
    %v4895 = vunpack.c.l.b16 %v4856
    %v4896 = vunpack.c.l.b16 %v4857
    %v4897 = vunpack.c.l.b16 %v4858
    %v4898 = vunpack.c.l.b16 %v4859
    %v4899 = vunpack.c.l.b16 %v4860
    %v4900 = vunpack.c.l.b16 %v4861
    %v4901 = vunpack.c.l.b16 %v4862
    %v4902 = vunpack.c.l.b16 %v4863
    %v4903 = vunpack.c.l.b16 %v4864
    %v4904 = vunpack.c.l.b16 %v4865
    %v4905 = vunpack.c.l.b16 %v4866
    %v4906 = vpack.c.b16 %v4891, %v4890
    %v4907 = vpack.c.b16 %v4893, %v4892
    %v4908 = vpack.c.b16 %v4895, %v4894
    %v4909 = vpack.c.b16 %v4897, %v4896
    %v4910 = vpack.c.b16 %v4899, %v4898
    %v4911 = vpack.c.b16 %v4901, %v4900
    %v4912 = vpack.c.b16 %v4903, %v4902
    %v4913 = vpack.c.b16 %v4905, %v4904
    %4922 = vmatprep.subr.bf16.mxu0 0
    %4923 = vmatpush1.bf16.msra.mxu0 %v4906
    %4924 = vmatprep.subr.bf16.mxu0 0
    %4925 = vmatpush1.bf16.msra.mxu0 %v4907
    %4926 = vmatprep.subr.bf16.mxu0 0
    %4927 = vmatpush1.bf16.msra.mxu0 %v4908
    %4928 = vmatprep.subr.bf16.mxu0 0
    %4929 = vmatpush1.bf16.msra.mxu0 %v4909
    %4930 = vmatprep.subr.bf16.mxu0 0
    %4931 = vmatpush1.bf16.msra.mxu0 %v4910
    %4932 = vmatprep.subr.bf16.mxu0 0
    %4933 = vmatpush1.bf16.msra.mxu0 %v4911
    %4934 = vmatprep.subr.bf16.mxu0 0
    %4935 = vmatpush1.bf16.msra.mxu0 %v4912
    %4936 = vmatprep.subr.bf16.mxu0 0
    %4937 = vmatpush1.bf16.msra.mxu0 %v4913
    %4938 = vmatprep.subr.bf16.mxu0 0
    %4939 = vmatpush1.bf16.msra.mxu0 0
    %4940 = vmatprep.subr.bf16.mxu0 0
    %4941 = vmatpush1.bf16.msra.mxu0 0
    %4942 = vmatprep.subr.bf16.mxu0 0
    %4943 = vmatpush1.bf16.msra.mxu0 0
    %4944 = vmatprep.subr.bf16.mxu0 0
    %4945 = vmatpush1.bf16.msra.mxu0 0
    %4946 = vmatprep.subr.bf16.mxu0 0
    %4947 = vmatpush1.bf16.msra.mxu0 0
    %4948 = vmatprep.subr.bf16.mxu0 0
    %4949 = vmatpush1.bf16.msra.mxu0 0
    %4950 = vmatprep.subr.bf16.mxu0 0
    %4951 = vmatpush1.bf16.msra.mxu0 0
    %4952 = vmatprep.subr.bf16.mxu0 0
    %4953 = vmatpush1.bf16.msra.mxu0 0
    %4954 = vmatprep.mubr.bf16.mxu0 0
    %4955 = vmatmul.mubr.bf16.gmra.mrb[0].mxu0 %v4850
    %v4956 = vpop.f32.mrb[0].mxu0
    %v4957 = vadd.f32 %v4872, %v4956
    %v4958 = vpop.f32.mrb[0].mxu0
    %v4959 = vpop.f32.mrb[0].mxu0
    %v4960 = vpop.f32.mrb[0].mxu0
    %4961 = vdwg.mxu0
    %4962 = vst [vmem:[#allocation2] sm:$0x3] %v4957
    // Predicated region
    $region46: #{net_forward.1} parent=1 // pred_check
      _
    $region47: #{net_forward.1} parent=1 // pred_check_branch
      %4964 = sbr.rel (0) target = $region49
    $region48: #{net_forward.1} parent=1 // pred_region
      %s4966 = ssub.s32 32, 32
      %4967 = vsyncadd [#allocation3], %s4966
      %s4969 = sshll.u32 [#allocation2], 4
      %s4970 = int_to_ptr.vmem [resolvable:$true] %s4969
      %4972 = dma.vmem_to_hbm [thread:$0]  %s4970, 32, %s11, [#allocation3]
    $region49: #{net_forward.1} parent=1 // pred_fallthru
      _
    // Predicated region
    $region50: #{net_forward.1} parent=1 // pred_check
      _
    $region51: #{net_forward.1} parent=1 // pred_check_branch
      %4974 = sbr.rel (0) target = $region53
    $region52: #{net_forward.1} parent=1 // pred_region
      %4975 = dma.done [#allocation3], 32
    $region53: #{net_forward.1} parent=1 // pred_fallthru
      _
    %4976 = vsyncpa [#allocation3], 1

</llo_original>
